<compile_context>
chip_gen: v7x
topology: tpu7x:2x2x1
jax: 0.10.0
libtpu: 0.0.40
codegen_flags: <defaults>
</compile_context>

<pallas_src>
import jax
import jax.numpy as jnp
from jax.experimental import pallas as pl
from jax.experimental.pallas import tpu as pltpu

B = 2             # batch (clouds)
N = 64            # points per cloud
D_IN = 3          # xyz
H1 = 64           # per-point MLP hidden
FEAT = 512        # PctClass output feature dim
NUM_CLASSES = 33
C_PAD = 128       # lane-dense padded class dim


def teeth_kernel(res_ref, pts_ref,          # flattened point clouds (B*N, 3) f32
                 w1b_ref,                   # packed layer-1 weights+biases (8, H1) f32
                 w2_ref, b2_ref,            # block-diag layer-2 (2*H1, 2*FEAT) bf16 / (1, 2*FEAT) f32
                 wfc1_ref, bfc1_ref,        # fused fc1 + folded BN (2*FEAT, FEAT) bf16 / (1, FEAT) f32
                 wfc2_ref, bfc2_ref,        # padded fc2 (FEAT, C_PAD) bf16 / (1, C_PAD) f32
                 out_ref):                  # (B, C_PAD) f32 softmax (padded lanes ~ 0)
    x_r = res_ref[...]                      # (B*N, 3) resamples -> single_tooth branch
    x_p = pts_ref[...]                      # (B*N, 3) points    -> whole_tooth branch
    w1b = w1b_ref[...]                      # rows 0..2 st_w1, 3 st_b1, 4..6 wt_w1, 7 wt_b1

    def layer1(x, w0, w1, w2, b):
        # depth-3 contraction as VPU broadcast FMAs (no MXU pass)
        h = x[:, 0:1] * w0 + x[:, 1:2] * w1 + x[:, 2:3] * w2 + b
        return jnp.maximum(h, 0.0)          # (B*N, H1)

    h_st = layer1(x_r, w1b[0:1, :], w1b[1:2, :], w1b[2:3, :], w1b[3:4, :])
    h_wt = layer1(x_p, w1b[4:5, :], w1b[5:6, :], w1b[6:7, :], w1b[7:8, :])
    h1 = jnp.concatenate([h_st, h_wt], axis=-1)              # (B*N, 2*H1)

    # Fused layer 2: one MXU pass against a block-diagonal (2*H1, 2*FEAT) bf16 weight.
    h2 = jnp.dot(h1.astype(jnp.bfloat16), w2_ref[...],
                 preferred_element_type=jnp.float32) + b2_ref[...]
    h2 = jnp.maximum(h2, 0.0)                                 # (B*N, 2*FEAT): [st | wt]

    # Max-pool over points per cloud via static sublane-aligned slices (no reshape).
    pooled = [jnp.max(h2[b * N:(b + 1) * N, :], axis=0, keepdims=True) for b in range(B)]
    f = jnp.concatenate(pooled, axis=0)                       # (B, 2*FEAT) == cat(f1, f2)

    # fc1 (1024 -> 512) with BatchNorm folded into weight/bias; ReLU; Dropout = identity.
    h = jnp.dot(f.astype(jnp.bfloat16), wfc1_ref[...],
                preferred_element_type=jnp.float32) + bfc1_ref[...]
    h = jnp.maximum(h, 0.0)                                   # (B, FEAT)

    # fc2 (512 -> 33, padded to 128 lanes). Padded lanes get bias -1e30 -> exp == 0.
    logits = jnp.dot(h.astype(jnp.bfloat16), wfc2_ref[...],
                     preferred_element_type=jnp.float32) + bfc2_ref[...]   # (B, C_PAD)

    # softmax over classes (f32)
    m = jnp.max(logits, axis=1, keepdims=True)
    e = jnp.exp(logits - m)
    out_ref[...] = e / jnp.sum(e, axis=1, keepdims=True)


def teeth_classifier_forward(points, resamples, params):
    b = points.shape[0]
    res_flat = resamples.reshape(b * N, D_IN)
    pts_flat = points.reshape(b * N, D_IN)
    args = (res_flat, pts_flat) + tuple(params)
    out = pl.pallas_call(
        teeth_kernel,
        out_shape=jax.ShapeDtypeStruct((b, C_PAD), jnp.float32),
        in_specs=[pl.BlockSpec(memory_space=pltpu.MemorySpace.VMEM)] * len(args),
        out_specs=pl.BlockSpec(memory_space=pltpu.MemorySpace.VMEM),
    )(*args)
    return out[:, :NUM_CLASSES]


def init_params(key):
    ks = jax.random.split(key, 8)

    def w(k, shape, fan_in):
        return jax.random.normal(k, shape, jnp.float32) / jnp.sqrt(fan_in)

    # PctClass stand-ins (3 -> 64 -> 512, ReLU, max-pool)
    st_w1 = w(ks[0], (D_IN, H1), D_IN); st_b1 = jnp.zeros((1, H1), jnp.float32)
    st_w2 = w(ks[1], (H1, FEAT), H1);   st_b2 = jnp.zeros((1, FEAT), jnp.float32)
    wt_w1 = w(ks[2], (D_IN, H1), D_IN); wt_b1 = jnp.zeros((1, H1), jnp.float32)
    wt_w2 = w(ks[3], (H1, FEAT), H1);   wt_b2 = jnp.zeros((1, FEAT), jnp.float32)

    # head fc1 (1024 -> 512) + BatchNorm1d(512) eval-mode
    fc1_w = w(ks[4], (2 * FEAT, FEAT), 2 * FEAT)
    fc1_b = jnp.zeros((1, FEAT), jnp.float32)
    gamma = jnp.ones((1, FEAT), jnp.float32)
    beta = jnp.zeros((1, FEAT), jnp.float32)
    run_mean = jnp.zeros((1, FEAT), jnp.float32)
    run_var = jnp.ones((1, FEAT), jnp.float32)
    eps = 1e-5
    bn_scale = gamma / jnp.sqrt(run_var + eps)
    bn_shift = beta - run_mean * bn_scale

    # head fc2 (512 -> 33)
    fc2_w = w(ks[5], (FEAT, NUM_CLASSES), FEAT)
    fc2_b = jnp.zeros((1, NUM_CLASSES), jnp.float32)

    # ---- pack / fold for the kernel ----
    # layer 1: one (8, H1) f32 tile (weights interleaved with biases)
    w1b_pack = jnp.concatenate([st_w1, st_b1, wt_w1, wt_b1], axis=0)        # (8, H1)

    # layer 2: block-diagonal fused weight, bf16
    z = jnp.zeros((H1, FEAT), jnp.float32)
    w2_bd = jnp.concatenate(
        [jnp.concatenate([st_w2, z], axis=1),
         jnp.concatenate([z, wt_w2], axis=1)], axis=0).astype(jnp.bfloat16)  # (2*H1, 2*FEAT)
    b2_cat = jnp.concatenate([st_b2, wt_b2], axis=1)                         # (1, 2*FEAT)

    # fc1 with BN folded (h = (f@W + b)*scale + shift == f@(W*scale) + (b*scale + shift))
    wfc1 = (fc1_w * bn_scale).astype(jnp.bfloat16)                           # (2*FEAT, FEAT)
    bfc1 = fc1_b * bn_scale + bn_shift                                       # (1, FEAT)

    # fc2 padded to lane-dense 128; padded bias = -1e30 so softmax ignores those lanes
    wfc2 = jnp.concatenate(
        [fc2_w, jnp.zeros((FEAT, C_PAD - NUM_CLASSES), jnp.float32)],
        axis=1).astype(jnp.bfloat16)                                         # (FEAT, C_PAD)
    bfc2 = jnp.concatenate(
        [fc2_b, jnp.full((1, C_PAD - NUM_CLASSES), -1e30, jnp.float32)], axis=1)

    return (w1b_pack, w2_bd, b2_cat, wfc1, bfc1, wfc2, bfc2)


def reference_forward(points, resamples, params):
    """Pure-JAX reference using the exact same packed/quantized parameters."""
    (w1b, w2_bd, b2, wfc1, bfc1, wfc2, bfc2) = params
    res_flat = resamples.reshape(-1, D_IN)
    pts_flat = points.reshape(-1, D_IN)

    h_st = jnp.maximum(res_flat @ w1b[0:3, :] + w1b[3:4, :], 0.0)
    h_wt = jnp.maximum(pts_flat @ w1b[4:7, :] + w1b[7:8, :], 0.0)
    h1 = jnp.concatenate([h_st, h_wt], axis=-1)

    h2 = jnp.maximum(jnp.dot(h1.astype(jnp.bfloat16), w2_bd,
                             preferred_element_type=jnp.float32) + b2, 0.0)
    f = jnp.max(h2.reshape(-1, N, 2 * FEAT), axis=1)                         # (B, 2*FEAT)

    h = jnp.maximum(jnp.dot(f.astype(jnp.bfloat16), wfc1,
                            preferred_element_type=jnp.float32) + bfc1, 0.0)
    logits = jnp.dot(h.astype(jnp.bfloat16), wfc2,
                     preferred_element_type=jnp.float32) + bfc2
    return jax.nn.softmax(logits, axis=1)[:, :NUM_CLASSES]


if __name__ == "__main__":
    key = jax.random.PRNGKey(0)
    k_pts, k_res, k_par = jax.random.split(key, 3)
    points = jax.random.normal(k_pts, (B, N, D_IN), jnp.float32)
    resamples = jax.random.normal(k_res, (B, N, D_IN), jnp.float32)
    params = init_params(k_par)

    out = teeth_classifier_forward(points, resamples, params)
    out = jax.block_until_ready(out)

    ref = reference_forward(points, resamples, params)
    assert out.shape == (B, NUM_CLASSES)
    assert jnp.allclose(jnp.sum(out, axis=1), 1.0, atol=1e-4)
    assert jnp.allclose(out, ref, atol=1e-3, rtol=1e-3)

    print("KERNEL_OK")
</pallas_src>

<mosaic_0001>
module attributes {stable_mosaic.version = 11 : i64} {
  func.func @teeth_kernel(%arg0: memref<128x3xf32, #tpu.memory_space<vmem>>, %arg1: memref<128x3xf32, #tpu.memory_space<vmem>>, %arg2: memref<8x64xf32, #tpu.memory_space<vmem>>, %arg3: memref<128x1024xbf16, #tpu.memory_space<vmem>>, %arg4: memref<1x1024xf32, #tpu.memory_space<vmem>>, %arg5: memref<1024x512xbf16, #tpu.memory_space<vmem>>, %arg6: memref<1x512xf32, #tpu.memory_space<vmem>>, %arg7: memref<512x128xbf16, #tpu.memory_space<vmem>>, %arg8: memref<1x128xf32, #tpu.memory_space<vmem>>, %arg9: memref<2x128xf32, #tpu.memory_space<vmem>>) attributes {dimension_semantics = [], scalar_prefetch = 0 : i64, scratch_operands = 0 : i64, tpu.core_type = #tpu.core_type<tc>} {
    %c0 = arith.constant 0 : index
    %c0_0 = arith.constant 0 : index
    %0 = vector.load %arg0[%c0, %c0_0] : memref<128x3xf32, #tpu.memory_space<vmem>>, vector<128x3xf32>
    %c0_1 = arith.constant 0 : index
    %c0_2 = arith.constant 0 : index
    %1 = vector.load %arg1[%c0_1, %c0_2] : memref<128x3xf32, #tpu.memory_space<vmem>>, vector<128x3xf32>
    %c0_3 = arith.constant 0 : index
    %c0_4 = arith.constant 0 : index
    %2 = vector.load %arg2[%c0_3, %c0_4] : memref<8x64xf32, #tpu.memory_space<vmem>>, vector<8x64xf32>
    %3 = vector.extract_strided_slice %2 {offsets = [0, 0], sizes = [1, 64], strides = [1, 1]} : vector<8x64xf32> to vector<1x64xf32>
    %4 = vector.extract_strided_slice %2 {offsets = [1, 0], sizes = [1, 64], strides = [1, 1]} : vector<8x64xf32> to vector<1x64xf32>
    %5 = vector.extract_strided_slice %2 {offsets = [2, 0], sizes = [1, 64], strides = [1, 1]} : vector<8x64xf32> to vector<1x64xf32>
    %6 = vector.extract_strided_slice %2 {offsets = [3, 0], sizes = [1, 64], strides = [1, 1]} : vector<8x64xf32> to vector<1x64xf32>
    %7 = vector.extract_strided_slice %0 {offsets = [0, 0], sizes = [128, 1], strides = [1, 1]} : vector<128x3xf32> to vector<128x1xf32>
    %8 = vector.broadcast %7 : vector<128x1xf32> to vector<128x64xf32>
    %9 = vector.broadcast %3 : vector<1x64xf32> to vector<128x64xf32>
    %10 = arith.mulf %8, %9 : vector<128x64xf32>
    %11 = vector.extract_strided_slice %0 {offsets = [0, 1], sizes = [128, 1], strides = [1, 1]} : vector<128x3xf32> to vector<128x1xf32>
    %12 = vector.broadcast %11 : vector<128x1xf32> to vector<128x64xf32>
    %13 = vector.broadcast %4 : vector<1x64xf32> to vector<128x64xf32>
    %14 = arith.mulf %12, %13 : vector<128x64xf32>
    %15 = arith.addf %10, %14 : vector<128x64xf32>
    %16 = vector.extract_strided_slice %0 {offsets = [0, 2], sizes = [128, 1], strides = [1, 1]} : vector<128x3xf32> to vector<128x1xf32>
    %17 = vector.broadcast %16 : vector<128x1xf32> to vector<128x64xf32>
    %18 = vector.broadcast %5 : vector<1x64xf32> to vector<128x64xf32>
    %19 = arith.mulf %17, %18 : vector<128x64xf32>
    %20 = arith.addf %15, %19 : vector<128x64xf32>
    %21 = vector.broadcast %6 : vector<1x64xf32> to vector<128x64xf32>
    %22 = arith.addf %20, %21 : vector<128x64xf32>
    %cst = arith.constant 0.000000e+00 : f32
    %23 = vector.broadcast %cst : f32 to vector<128x64xf32>
    %24 = arith.maximumf %22, %23 : vector<128x64xf32>
    %25 = vector.extract_strided_slice %2 {offsets = [4, 0], sizes = [1, 64], strides = [1, 1]} : vector<8x64xf32> to vector<1x64xf32>
    %26 = vector.extract_strided_slice %2 {offsets = [5, 0], sizes = [1, 64], strides = [1, 1]} : vector<8x64xf32> to vector<1x64xf32>
    %27 = vector.extract_strided_slice %2 {offsets = [6, 0], sizes = [1, 64], strides = [1, 1]} : vector<8x64xf32> to vector<1x64xf32>
    %28 = vector.extract_strided_slice %2 {offsets = [7, 0], sizes = [1, 64], strides = [1, 1]} : vector<8x64xf32> to vector<1x64xf32>
    %29 = vector.extract_strided_slice %1 {offsets = [0, 0], sizes = [128, 1], strides = [1, 1]} : vector<128x3xf32> to vector<128x1xf32>
    %30 = vector.broadcast %29 : vector<128x1xf32> to vector<128x64xf32>
    %31 = vector.broadcast %25 : vector<1x64xf32> to vector<128x64xf32>
    %32 = arith.mulf %30, %31 : vector<128x64xf32>
    %33 = vector.extract_strided_slice %1 {offsets = [0, 1], sizes = [128, 1], strides = [1, 1]} : vector<128x3xf32> to vector<128x1xf32>
    %34 = vector.broadcast %33 : vector<128x1xf32> to vector<128x64xf32>
    %35 = vector.broadcast %26 : vector<1x64xf32> to vector<128x64xf32>
    %36 = arith.mulf %34, %35 : vector<128x64xf32>
    %37 = arith.addf %32, %36 : vector<128x64xf32>
    %38 = vector.extract_strided_slice %1 {offsets = [0, 2], sizes = [128, 1], strides = [1, 1]} : vector<128x3xf32> to vector<128x1xf32>
    %39 = vector.broadcast %38 : vector<128x1xf32> to vector<128x64xf32>
    %40 = vector.broadcast %27 : vector<1x64xf32> to vector<128x64xf32>
    %41 = arith.mulf %39, %40 : vector<128x64xf32>
    %42 = arith.addf %37, %41 : vector<128x64xf32>
    %43 = vector.broadcast %28 : vector<1x64xf32> to vector<128x64xf32>
    %44 = arith.addf %42, %43 : vector<128x64xf32>
    %cst_5 = arith.constant 0.000000e+00 : f32
    %45 = vector.broadcast %cst_5 : f32 to vector<128x64xf32>
    %46 = arith.maximumf %44, %45 : vector<128x64xf32>
    %47 = tpu.concatenate %24, %46 in 1 : vector<128x64xf32>, vector<128x64xf32> -> vector<128x128xf32>
    %48 = arith.truncf %47 : vector<128x128xf32> to vector<128x128xbf16>
    %c0_6 = arith.constant 0 : index
    %c0_7 = arith.constant 0 : index
    %49 = vector.load %arg3[%c0_6, %c0_7] : memref<128x1024xbf16, #tpu.memory_space<vmem>>, vector<128x1024xbf16>
    %cst_8 = arith.constant dense<0.000000e+00> : vector<128x1024xf32>
    %50 = tpu.matmul %48, %49, %cst_8 {dimension_numbers = #tpu.dot_dimension_numbers<[1], [0], [0], [1], [0, 0, 1, 1], [], []>} : vector<128x128xbf16>, vector<128x1024xbf16>, vector<128x1024xf32> -> vector<128x1024xf32>
    %c0_9 = arith.constant 0 : index
    %c0_10 = arith.constant 0 : index
    %51 = vector.load %arg4[%c0_9, %c0_10] : memref<1x1024xf32, #tpu.memory_space<vmem>>, vector<1x1024xf32>
    %52 = vector.broadcast %51 : vector<1x1024xf32> to vector<128x1024xf32>
    %53 = arith.addf %50, %52 : vector<128x1024xf32>
    %cst_11 = arith.constant 0.000000e+00 : f32
    %54 = vector.broadcast %cst_11 : f32 to vector<128x1024xf32>
    %55 = arith.maximumf %53, %54 : vector<128x1024xf32>
    %56 = vector.extract_strided_slice %55 {offsets = [0, 0], sizes = [64, 1024], strides = [1, 1]} : vector<128x1024xf32> to vector<64x1024xf32>
    %cst_12 = arith.constant dense<0xFF800000> : vector<1024xf32>
    %57 = vector.multi_reduction <maximumf>, %56, %cst_12 [0] : vector<64x1024xf32> to vector<1024xf32>
    %58 = vector.shape_cast %57 : vector<1024xf32> to vector<1x1024xf32>
    %59 = vector.extract_strided_slice %55 {offsets = [64, 0], sizes = [64, 1024], strides = [1, 1]} : vector<128x1024xf32> to vector<64x1024xf32>
    %cst_13 = arith.constant dense<0xFF800000> : vector<1024xf32>
    %60 = vector.multi_reduction <maximumf>, %59, %cst_13 [0] : vector<64x1024xf32> to vector<1024xf32>
    %61 = vector.shape_cast %60 : vector<1024xf32> to vector<1x1024xf32>
    %62 = tpu.concatenate %58, %61 in 0 : vector<1x1024xf32>, vector<1x1024xf32> -> vector<2x1024xf32>
    %63 = arith.truncf %62 : vector<2x1024xf32> to vector<2x1024xbf16>
    %c0_14 = arith.constant 0 : index
    %c0_15 = arith.constant 0 : index
    %64 = vector.load %arg5[%c0_14, %c0_15] : memref<1024x512xbf16, #tpu.memory_space<vmem>>, vector<1024x512xbf16>
    %cst_16 = arith.constant dense<0.000000e+00> : vector<2x512xf32>
    %65 = tpu.matmul %63, %64, %cst_16 {dimension_numbers = #tpu.dot_dimension_numbers<[1], [0], [0], [1], [0, 0, 1, 1], [], []>} : vector<2x1024xbf16>, vector<1024x512xbf16>, vector<2x512xf32> -> vector<2x512xf32>
    %c0_17 = arith.constant 0 : index
    %c0_18 = arith.constant 0 : index
    %66 = vector.load %arg6[%c0_17, %c0_18] : memref<1x512xf32, #tpu.memory_space<vmem>>, vector<1x512xf32>
    %67 = vector.broadcast %66 : vector<1x512xf32> to vector<2x512xf32>
    %68 = arith.addf %65, %67 : vector<2x512xf32>
    %cst_19 = arith.constant 0.000000e+00 : f32
    %69 = vector.broadcast %cst_19 : f32 to vector<2x512xf32>
    %70 = arith.maximumf %68, %69 : vector<2x512xf32>
    %71 = arith.truncf %70 : vector<2x512xf32> to vector<2x512xbf16>
    %c0_20 = arith.constant 0 : index
    %c0_21 = arith.constant 0 : index
    %72 = vector.load %arg7[%c0_20, %c0_21] : memref<512x128xbf16, #tpu.memory_space<vmem>>, vector<512x128xbf16>
    %cst_22 = arith.constant dense<0.000000e+00> : vector<2x128xf32>
    %73 = tpu.matmul %71, %72, %cst_22 {dimension_numbers = #tpu.dot_dimension_numbers<[1], [0], [0], [1], [0, 0, 1, 1], [], []>} : vector<2x512xbf16>, vector<512x128xbf16>, vector<2x128xf32> -> vector<2x128xf32>
    %c0_23 = arith.constant 0 : index
    %c0_24 = arith.constant 0 : index
    %74 = vector.load %arg8[%c0_23, %c0_24] : memref<1x128xf32, #tpu.memory_space<vmem>>, vector<1x128xf32>
    %75 = vector.broadcast %74 : vector<1x128xf32> to vector<2x128xf32>
    %76 = arith.addf %73, %75 : vector<2x128xf32>
    %cst_25 = arith.constant dense<0xFF800000> : vector<2xf32>
    %77 = vector.multi_reduction <maximumf>, %76, %cst_25 [1] : vector<2x128xf32> to vector<2xf32>
    %78 = vector.shape_cast %77 : vector<2xf32> to vector<2x1xf32>
    %79 = vector.broadcast %78 : vector<2x1xf32> to vector<2x128xf32>
    %80 = arith.subf %76, %79 : vector<2x128xf32>
    %81 = math.exp %80 : vector<2x128xf32>
    %cst_26 = arith.constant dense<0.000000e+00> : vector<2xf32>
    %82 = vector.multi_reduction <add>, %81, %cst_26 [1] : vector<2x128xf32> to vector<2xf32>
    %83 = vector.shape_cast %82 : vector<2xf32> to vector<2x1xf32>
    %84 = vector.broadcast %83 : vector<2x1xf32> to vector<2x128xf32>
    %85 = arith.divf %81, %84 : vector<2x128xf32>
    %c0_27 = arith.constant 0 : index
    %c0_28 = arith.constant 0 : index
    %86 = vector.load %arg9[%c0_27, %c0_28] : memref<2x128xf32, #tpu.memory_space<vmem>>, vector<2x128xf32>
    tpu.vector_store %arg9[%c0_27, %c0_28], %85 {strides = array<i32>} : memref<2x128xf32, #tpu.memory_space<vmem>>, vector<2x128xf32>,
    return
  }
}

</mosaic_0001>

<llo_original>
// kernel: tpu_custom_call.1
$region0: #{tpu_custom_call.1}
  #allocation0 [shape = 'u32[]', space=smem, size = 0x4, offset = 0x4, fixed_abs, tag = 'smem constant byte address 0x4 - core index']
  #allocation1 [shape = 'u32[144,128]{1,0:T(1,128)}', space=vmem, size = 0x12000, scoped, tag = 'internal scratch']
  %s0 = inlined_call_operand.vmem [shape: f32[128,3], index: 0, kind: input, shape index: {}]
  %s1 = inlined_call_operand.vmem [shape: f32[128,3], index: 1, kind: input, shape index: {}]
  %s2 = inlined_call_operand.vmem [shape: f32[8,64], index: 2, kind: input, shape index: {}]
  %s3 = inlined_call_operand.hbm [shape: bf16[128,1024], index: 3, kind: input, shape index: {}]
  %s4 = inlined_call_operand.vmem [shape: f32[1,1024], index: 4, kind: input, shape index: {}]
  %s5 = inlined_call_operand.hbm [shape: bf16[1024,512], index: 5, kind: input, shape index: {}]
  %s6 = inlined_call_operand.vmem [shape: f32[1,512], index: 6, kind: input, shape index: {}]
  %s7 = inlined_call_operand.vmem [shape: bf16[512,128], index: 7, kind: input, shape index: {}]
  %s8 = inlined_call_operand.vmem [shape: f32[1,128], index: 8, kind: input, shape index: {}]
  %s9 = inlined_call_operand.hbm [shape: f32[2,128], index: 9, kind: output, shape index: {}]
  %s10 = sld [smem:[#allocation0]]
  $region54: #{tpu_custom_call.1} parent=0
    _
  %s12 = ssub.s32 1, %s10
  %s13 = scalar_select 0, %s12, %s10
  $region1: #{tpu_custom_call.1} parent=0
    #allocation2 [shape = 'u8[262144]{0}', space=vmem, size = 0x40000, scoped, tag = 'input window, operand 3, single buffered']
    #allocation3 [shape = 's32[1]{0}', space=sflag, size = 0x4, scoped, tag = 'scoped memory for tpu_custom_call.1']
    #allocation4 [shape = 's32[1]{0}', space=sflag, size = 0x4, scoped, tag = 'scoped memory for tpu_custom_call.1']
    #allocation5 [shape = 'u8[1048576]{0}', space=vmem, size = 0x100000, scoped, tag = 'input window, operand 5, single buffered']
    #allocation6 [shape = 's32[1]{0}', space=sflag, size = 0x4, scoped, tag = 'scoped memory for tpu_custom_call.1']
    #allocation7 [shape = 'u8[1024]{0}', space=vmem, size = 0x400, scoped, tag = 'output window, operand 0, single buffered']
    %14 = vsyncpa [#allocation3], 0
    %15 = vsyncpa [#allocation6], 0
    %16 = vsyncpa [#allocation4], 0
    // Predicated region
    $region2: #{tpu_custom_call.1} parent=1 // pred_check
      _
    $region3: #{tpu_custom_call.1} parent=1 // pred_check_branch
      %18 = sbr.rel (0) target = $region5
    $region4: #{tpu_custom_call.1} parent=1 // pred_region
      _
    $region5: #{tpu_custom_call.1} parent=1 // pred_fallthru
      _
    // Predicated region
    $region6: #{tpu_custom_call.1} parent=1 // pred_check
      _
    $region7: #{tpu_custom_call.1} parent=1 // pred_check_branch
      %20 = sbr.rel (0) target = $region9
    $region8: #{tpu_custom_call.1} parent=1 // pred_region
      _
    $region9: #{tpu_custom_call.1} parent=1 // pred_fallthru
      _
    // Predicated region
    $region10: #{tpu_custom_call.1} parent=1 // pred_check
      _
    $region11: #{tpu_custom_call.1} parent=1 // pred_check_branch
      %22 = sbr.rel (0) target = $region13
    $region12: #{tpu_custom_call.1} parent=1 // pred_region
      _
    $region13: #{tpu_custom_call.1} parent=1 // pred_fallthru
      _
    // Predicated region
    $region14: #{tpu_custom_call.1} parent=1 // pred_check
      _
    $region15: #{tpu_custom_call.1} parent=1 // pred_check_branch
      %24 = sbr.rel (0) target = $region17
    $region16: #{tpu_custom_call.1} parent=1 // pred_region
      %s26 = ssub.s32 8192, 8192
      %27 = vsyncadd [#allocation3], %s26
      %s28 = sshll.u32 [#allocation2], 4
      %s29 = int_to_ptr.vmem [resolvable:$true] %s28
      %34 = dma.hbm_to_vmem [thread:$0]  %s3, 8192, %s29, [#allocation3], 512, 512, 32
    $region17: #{tpu_custom_call.1} parent=1 // pred_fallthru
      _
    // Predicated region
    $region18: #{tpu_custom_call.1} parent=1 // pred_check
      _
    $region19: #{tpu_custom_call.1} parent=1 // pred_check_branch
      %36 = sbr.rel (0) target = $region21
    $region20: #{tpu_custom_call.1} parent=1 // pred_region
      _
    $region21: #{tpu_custom_call.1} parent=1 // pred_fallthru
      _
    // Predicated region
    $region22: #{tpu_custom_call.1} parent=1 // pred_check
      _
    $region23: #{tpu_custom_call.1} parent=1 // pred_check_branch
      %38 = sbr.rel (0) target = $region25
    $region24: #{tpu_custom_call.1} parent=1 // pred_region
      %s40 = ssub.s32 32768, 32768
      %41 = vsyncadd [#allocation6], %s40
      %s42 = sshll.u32 [#allocation5], 4
      %s43 = int_to_ptr.vmem [resolvable:$true] %s42
      %48 = dma.hbm_to_vmem [thread:$0]  %s5, 32768, %s43, [#allocation6], 256, 256, 16
    $region25: #{tpu_custom_call.1} parent=1 // pred_fallthru
      _
    // Predicated region
    $region26: #{tpu_custom_call.1} parent=1 // pred_check
      _
    $region27: #{tpu_custom_call.1} parent=1 // pred_check_branch
      %50 = sbr.rel (0) target = $region29
    $region28: #{tpu_custom_call.1} parent=1 // pred_region
      _
    $region29: #{tpu_custom_call.1} parent=1 // pred_fallthru
      _
    // Predicated region
    $region30: #{tpu_custom_call.1} parent=1 // pred_check
      _
    $region31: #{tpu_custom_call.1} parent=1 // pred_check_branch
      %52 = sbr.rel (0) target = $region33
    $region32: #{tpu_custom_call.1} parent=1 // pred_region
      _
    $region33: #{tpu_custom_call.1} parent=1 // pred_fallthru
      _
    // Predicated region
    $region34: #{tpu_custom_call.1} parent=1 // pred_check
      _
    $region35: #{tpu_custom_call.1} parent=1 // pred_check_branch
      %54 = sbr.rel (0) target = $region37
    $region36: #{tpu_custom_call.1} parent=1 // pred_region
      _
    $region37: #{tpu_custom_call.1} parent=1 // pred_fallthru
      _
    // Predicated region
    $region38: #{tpu_custom_call.1} parent=1 // pred_check
      _
    $region39: #{tpu_custom_call.1} parent=1 // pred_check_branch
      %56 = sbr.rel (0) target = $region41
    $region40: #{tpu_custom_call.1} parent=1 // pred_region
      %57 = dma.done [#allocation3], 8192
    $region41: #{tpu_custom_call.1} parent=1 // pred_fallthru
      _
    // Predicated region
    $region42: #{tpu_custom_call.1} parent=1 // pred_check
      _
    $region43: #{tpu_custom_call.1} parent=1 // pred_check_branch
      %59 = sbr.rel (0) target = $region45
    $region44: #{tpu_custom_call.1} parent=1 // pred_region
      %60 = dma.done [#allocation6], 32768
    $region45: #{tpu_custom_call.1} parent=1 // pred_fallthru
      _
    %v62 = vld [vmem:[%s0] sm:$0xff]
    %v63 = vld [vmem:[%s0 + $0x8] sm:$0xff]
    %v64 = vld [vmem:[%s0 + $0x10] sm:$0xff]
    %v65 = vld [vmem:[%s0 + $0x18] sm:$0xff]
    %v66 = vld [vmem:[%s0 + $0x20] sm:$0xff]
    %v67 = vld [vmem:[%s0 + $0x28] sm:$0xff]
    %v68 = vld [vmem:[%s0 + $0x30] sm:$0xff]
    %v69 = vld [vmem:[%s0 + $0x38] sm:$0xff]
    %v70 = vld [vmem:[%s0 + $0x40] sm:$0xff]
    %v71 = vld [vmem:[%s0 + $0x48] sm:$0xff]
    %v72 = vld [vmem:[%s0 + $0x50] sm:$0xff]
    %v73 = vld [vmem:[%s0 + $0x58] sm:$0xff]
    %v74 = vld [vmem:[%s0 + $0x60] sm:$0xff]
    %v75 = vld [vmem:[%s0 + $0x68] sm:$0xff]
    %v76 = vld [vmem:[%s0 + $0x70] sm:$0xff]
    %v77 = vld [vmem:[%s0 + $0x78] sm:$0xff]
    %v78 = vld [vmem:[%s1] sm:$0xff]
    %v79 = vld [vmem:[%s1 + $0x8] sm:$0xff]
    %v80 = vld [vmem:[%s1 + $0x10] sm:$0xff]
    %v81 = vld [vmem:[%s1 + $0x18] sm:$0xff]
    %v82 = vld [vmem:[%s1 + $0x20] sm:$0xff]
    %v83 = vld [vmem:[%s1 + $0x28] sm:$0xff]
    %v84 = vld [vmem:[%s1 + $0x30] sm:$0xff]
    %v85 = vld [vmem:[%s1 + $0x38] sm:$0xff]
    %v86 = vld [vmem:[%s1 + $0x40] sm:$0xff]
    %v87 = vld [vmem:[%s1 + $0x48] sm:$0xff]
    %v88 = vld [vmem:[%s1 + $0x50] sm:$0xff]
    %v89 = vld [vmem:[%s1 + $0x58] sm:$0xff]
    %v90 = vld [vmem:[%s1 + $0x60] sm:$0xff]
    %v91 = vld [vmem:[%s1 + $0x68] sm:$0xff]
    %v92 = vld [vmem:[%s1 + $0x70] sm:$0xff]
    %v93 = vld [vmem:[%s1 + $0x78] sm:$0xff]
    %v94 = vld [vmem:[%s2] sm:$0xff]
    %96 = vset.pattern.permute.xlu0 0
    %97 = vperm.xlu0 %96, %v62
    %v98 = vpop.permute.xlu0 %97
    %101 = vset.pattern.permute.xlu0 0
    %102 = vperm.xlu0 %101, %v63
    %v103 = vpop.permute.xlu0 %102
    %106 = vset.pattern.permute.xlu0 0
    %107 = vperm.xlu0 %106, %v64
    %v108 = vpop.permute.xlu0 %107
    %111 = vset.pattern.permute.xlu0 0
    %112 = vperm.xlu0 %111, %v65
    %v113 = vpop.permute.xlu0 %112
    %116 = vset.pattern.permute.xlu0 0
    %117 = vperm.xlu0 %116, %v66
    %v118 = vpop.permute.xlu0 %117
    %121 = vset.pattern.permute.xlu0 0
    %122 = vperm.xlu0 %121, %v67
    %v123 = vpop.permute.xlu0 %122
    %126 = vset.pattern.permute.xlu0 0
    %127 = vperm.xlu0 %126, %v68
    %v128 = vpop.permute.xlu0 %127
    %131 = vset.pattern.permute.xlu0 0
    %132 = vperm.xlu0 %131, %v69
    %v133 = vpop.permute.xlu0 %132
    %136 = vset.pattern.permute.xlu0 0
    %137 = vperm.xlu0 %136, %v70
    %v138 = vpop.permute.xlu0 %137
    %141 = vset.pattern.permute.xlu0 0
    %142 = vperm.xlu0 %141, %v71
    %v143 = vpop.permute.xlu0 %142
    %146 = vset.pattern.permute.xlu0 0
    %147 = vperm.xlu0 %146, %v72
    %v148 = vpop.permute.xlu0 %147
    %151 = vset.pattern.permute.xlu0 0
    %152 = vperm.xlu0 %151, %v73
    %v153 = vpop.permute.xlu0 %152
    %156 = vset.pattern.permute.xlu0 0
    %157 = vperm.xlu0 %156, %v74
    %v158 = vpop.permute.xlu0 %157
    %161 = vset.pattern.permute.xlu0 0
    %162 = vperm.xlu0 %161, %v75
    %v163 = vpop.permute.xlu0 %162
    %166 = vset.pattern.permute.xlu0 0
    %167 = vperm.xlu0 %166, %v76
    %v168 = vpop.permute.xlu0 %167
    %171 = vset.pattern.permute.xlu0 0
    %172 = vperm.xlu0 %171, %v77
    %v173 = vpop.permute.xlu0 %172
    %v175 = vlaneseq
    %v176 = vshrl.u32 %v175, 7
    %v177 = vsub.s32 0, %v176
    %v178 = vrot.slane %v94, %v177
    %v179 = vmul.f32 %v98, %v178
    %v180 = vmul.f32 %v103, %v178
    %v181 = vmul.f32 %v108, %v178
    %v182 = vmul.f32 %v113, %v178
    %v183 = vmul.f32 %v118, %v178
    %v184 = vmul.f32 %v123, %v178
    %v185 = vmul.f32 %v128, %v178
    %v186 = vmul.f32 %v133, %v178
    %v187 = vmul.f32 %v138, %v178
    %v188 = vmul.f32 %v143, %v178
    %v189 = vmul.f32 %v148, %v178
    %v190 = vmul.f32 %v153, %v178
    %v191 = vmul.f32 %v158, %v178
    %v192 = vmul.f32 %v163, %v178
    %v193 = vmul.f32 %v168, %v178
    %v194 = vmul.f32 %v173, %v178
    %195 = vset.pattern.permute.xlu0 1
    %196 = vperm.xlu0 %195, %v62
    %v197 = vpop.permute.xlu0 %196
    %199 = vset.pattern.permute.xlu0 1
    %200 = vperm.xlu0 %199, %v63
    %v201 = vpop.permute.xlu0 %200
    %203 = vset.pattern.permute.xlu0 1
    %204 = vperm.xlu0 %203, %v64
    %v205 = vpop.permute.xlu0 %204
    %207 = vset.pattern.permute.xlu0 1
    %208 = vperm.xlu0 %207, %v65
    %v209 = vpop.permute.xlu0 %208
    %211 = vset.pattern.permute.xlu0 1
    %212 = vperm.xlu0 %211, %v66
    %v213 = vpop.permute.xlu0 %212
    %215 = vset.pattern.permute.xlu0 1
    %216 = vperm.xlu0 %215, %v67
    %v217 = vpop.permute.xlu0 %216
    %219 = vset.pattern.permute.xlu0 1
    %220 = vperm.xlu0 %219, %v68
    %v221 = vpop.permute.xlu0 %220
    %223 = vset.pattern.permute.xlu0 1
    %224 = vperm.xlu0 %223, %v69
    %v225 = vpop.permute.xlu0 %224
    %227 = vset.pattern.permute.xlu0 1
    %228 = vperm.xlu0 %227, %v70
    %v229 = vpop.permute.xlu0 %228
    %231 = vset.pattern.permute.xlu0 1
    %232 = vperm.xlu0 %231, %v71
    %v233 = vpop.permute.xlu0 %232
    %235 = vset.pattern.permute.xlu0 1
    %236 = vperm.xlu0 %235, %v72
    %v237 = vpop.permute.xlu0 %236
    %239 = vset.pattern.permute.xlu0 1
    %240 = vperm.xlu0 %239, %v73
    %v241 = vpop.permute.xlu0 %240
    %243 = vset.pattern.permute.xlu0 1
    %244 = vperm.xlu0 %243, %v74
    %v245 = vpop.permute.xlu0 %244
    %247 = vset.pattern.permute.xlu0 1
    %248 = vperm.xlu0 %247, %v75
    %v249 = vpop.permute.xlu0 %248
    %251 = vset.pattern.permute.xlu0 1
    %252 = vperm.xlu0 %251, %v76
    %v253 = vpop.permute.xlu0 %252
    %255 = vset.pattern.permute.xlu0 1
    %256 = vperm.xlu0 %255, %v77
    %v257 = vpop.permute.xlu0 %256
    %v259 = vlaneseq
    %v260 = vshrl.u32 %v259, 7
    %v261 = vsub.s32 1, %v260
    %v262 = vrot.slane %v94, %v261
    %v263 = vmul.f32 %v197, %v262
    %v264 = vmul.f32 %v201, %v262
    %v265 = vmul.f32 %v205, %v262
    %v266 = vmul.f32 %v209, %v262
    %v267 = vmul.f32 %v213, %v262
    %v268 = vmul.f32 %v217, %v262
    %v269 = vmul.f32 %v221, %v262
    %v270 = vmul.f32 %v225, %v262
    %v271 = vmul.f32 %v229, %v262
    %v272 = vmul.f32 %v233, %v262
    %v273 = vmul.f32 %v237, %v262
    %v274 = vmul.f32 %v241, %v262
    %v275 = vmul.f32 %v245, %v262
    %v276 = vmul.f32 %v249, %v262
    %v277 = vmul.f32 %v253, %v262
    %v278 = vmul.f32 %v257, %v262
    %v279 = vadd.f32 %v179, %v263
    %v280 = vadd.f32 %v180, %v264
    %v281 = vadd.f32 %v181, %v265
    %v282 = vadd.f32 %v182, %v266
    %v283 = vadd.f32 %v183, %v267
    %v284 = vadd.f32 %v184, %v268
    %v285 = vadd.f32 %v185, %v269
    %v286 = vadd.f32 %v186, %v270
    %v287 = vadd.f32 %v187, %v271
    %v288 = vadd.f32 %v188, %v272
    %v289 = vadd.f32 %v189, %v273
    %v290 = vadd.f32 %v190, %v274
    %v291 = vadd.f32 %v191, %v275
    %v292 = vadd.f32 %v192, %v276
    %v293 = vadd.f32 %v193, %v277
    %v294 = vadd.f32 %v194, %v278
    %295 = vset.pattern.permute.xlu0 2
    %296 = vperm.xlu0 %295, %v62
    %v297 = vpop.permute.xlu0 %296
    %299 = vset.pattern.permute.xlu0 2
    %300 = vperm.xlu0 %299, %v63
    %v301 = vpop.permute.xlu0 %300
    %303 = vset.pattern.permute.xlu0 2
    %304 = vperm.xlu0 %303, %v64
    %v305 = vpop.permute.xlu0 %304
    %307 = vset.pattern.permute.xlu0 2
    %308 = vperm.xlu0 %307, %v65
    %v309 = vpop.permute.xlu0 %308
    %311 = vset.pattern.permute.xlu0 2
    %312 = vperm.xlu0 %311, %v66
    %v313 = vpop.permute.xlu0 %312
    %315 = vset.pattern.permute.xlu0 2
    %316 = vperm.xlu0 %315, %v67
    %v317 = vpop.permute.xlu0 %316
    %319 = vset.pattern.permute.xlu0 2
    %320 = vperm.xlu0 %319, %v68
    %v321 = vpop.permute.xlu0 %320
    %323 = vset.pattern.permute.xlu0 2
    %324 = vperm.xlu0 %323, %v69
    %v325 = vpop.permute.xlu0 %324
    %327 = vset.pattern.permute.xlu0 2
    %328 = vperm.xlu0 %327, %v70
    %v329 = vpop.permute.xlu0 %328
    %331 = vset.pattern.permute.xlu0 2
    %332 = vperm.xlu0 %331, %v71
    %v333 = vpop.permute.xlu0 %332
    %335 = vset.pattern.permute.xlu0 2
    %336 = vperm.xlu0 %335, %v72
    %v337 = vpop.permute.xlu0 %336
    %339 = vset.pattern.permute.xlu0 2
    %340 = vperm.xlu0 %339, %v73
    %v341 = vpop.permute.xlu0 %340
    %343 = vset.pattern.permute.xlu0 2
    %344 = vperm.xlu0 %343, %v74
    %v345 = vpop.permute.xlu0 %344
    %347 = vset.pattern.permute.xlu0 2
    %348 = vperm.xlu0 %347, %v75
    %v349 = vpop.permute.xlu0 %348
    %351 = vset.pattern.permute.xlu0 2
    %352 = vperm.xlu0 %351, %v76
    %v353 = vpop.permute.xlu0 %352
    %355 = vset.pattern.permute.xlu0 2
    %356 = vperm.xlu0 %355, %v77
    %v357 = vpop.permute.xlu0 %356
    %v359 = vlaneseq
    %v360 = vshrl.u32 %v359, 7
    %v361 = vsub.s32 2, %v360
    %v362 = vrot.slane %v94, %v361
    %v363 = vmul.f32 %v297, %v362
    %v364 = vmul.f32 %v301, %v362
    %v365 = vmul.f32 %v305, %v362
    %v366 = vmul.f32 %v309, %v362
    %v367 = vmul.f32 %v313, %v362
    %v368 = vmul.f32 %v317, %v362
    %v369 = vmul.f32 %v321, %v362
    %v370 = vmul.f32 %v325, %v362
    %v371 = vmul.f32 %v329, %v362
    %v372 = vmul.f32 %v333, %v362
    %v373 = vmul.f32 %v337, %v362
    %v374 = vmul.f32 %v341, %v362
    %v375 = vmul.f32 %v345, %v362
    %v376 = vmul.f32 %v349, %v362
    %v377 = vmul.f32 %v353, %v362
    %v378 = vmul.f32 %v357, %v362
    %v379 = vadd.f32 %v279, %v363
    %v380 = vadd.f32 %v280, %v364
    %v381 = vadd.f32 %v281, %v365
    %v382 = vadd.f32 %v282, %v366
    %v383 = vadd.f32 %v283, %v367
    %v384 = vadd.f32 %v284, %v368
    %v385 = vadd.f32 %v285, %v369
    %v386 = vadd.f32 %v286, %v370
    %v387 = vadd.f32 %v287, %v371
    %v388 = vadd.f32 %v288, %v372
    %v389 = vadd.f32 %v289, %v373
    %v390 = vadd.f32 %v290, %v374
    %v391 = vadd.f32 %v291, %v375
    %v392 = vadd.f32 %v292, %v376
    %v393 = vadd.f32 %v293, %v377
    %v394 = vadd.f32 %v294, %v378
    %v395 = vlaneseq
    %v396 = vshrl.u32 %v395, 7
    %v397 = vsub.s32 3, %v396
    %v398 = vrot.slane %v94, %v397
    %v399 = vadd.f32 %v379, %v398
    %v400 = vadd.f32 %v380, %v398
    %v401 = vadd.f32 %v381, %v398
    %v402 = vadd.f32 %v382, %v398
    %v403 = vadd.f32 %v383, %v398
    %v404 = vadd.f32 %v384, %v398
    %v405 = vadd.f32 %v385, %v398
    %v406 = vadd.f32 %v386, %v398
    %v407 = vadd.f32 %v387, %v398
    %v408 = vadd.f32 %v388, %v398
    %v409 = vadd.f32 %v389, %v398
    %v410 = vadd.f32 %v390, %v398
    %v411 = vadd.f32 %v391, %v398
    %v412 = vadd.f32 %v392, %v398
    %v413 = vadd.f32 %v393, %v398
    %v414 = vadd.f32 %v394, %v398
    %v415 = vmax.f32 %v399, 0.0
    %v416 = vmax.f32 %v400, 0.0
    %v417 = vmax.f32 %v401, 0.0
    %v418 = vmax.f32 %v402, 0.0
    %v419 = vmax.f32 %v403, 0.0
    %v420 = vmax.f32 %v404, 0.0
    %v421 = vmax.f32 %v405, 0.0
    %v422 = vmax.f32 %v406, 0.0
    %v423 = vmax.f32 %v407, 0.0
    %v424 = vmax.f32 %v408, 0.0
    %v425 = vmax.f32 %v409, 0.0
    %v426 = vmax.f32 %v410, 0.0
    %v427 = vmax.f32 %v411, 0.0
    %v428 = vmax.f32 %v412, 0.0
    %v429 = vmax.f32 %v413, 0.0
    %v430 = vmax.f32 %v414, 0.0
    %432 = vset.pattern.permute.xlu0 0
    %433 = vperm.xlu0 %432, %v78
    %v434 = vpop.permute.xlu0 %433
    %437 = vset.pattern.permute.xlu0 0
    %438 = vperm.xlu0 %437, %v79
    %v439 = vpop.permute.xlu0 %438
    %442 = vset.pattern.permute.xlu0 0
    %443 = vperm.xlu0 %442, %v80
    %v444 = vpop.permute.xlu0 %443
    %447 = vset.pattern.permute.xlu0 0
    %448 = vperm.xlu0 %447, %v81
    %v449 = vpop.permute.xlu0 %448
    %452 = vset.pattern.permute.xlu0 0
    %453 = vperm.xlu0 %452, %v82
    %v454 = vpop.permute.xlu0 %453
    %457 = vset.pattern.permute.xlu0 0
    %458 = vperm.xlu0 %457, %v83
    %v459 = vpop.permute.xlu0 %458
    %462 = vset.pattern.permute.xlu0 0
    %463 = vperm.xlu0 %462, %v84
    %v464 = vpop.permute.xlu0 %463
    %467 = vset.pattern.permute.xlu0 0
    %468 = vperm.xlu0 %467, %v85
    %v469 = vpop.permute.xlu0 %468
    %472 = vset.pattern.permute.xlu0 0
    %473 = vperm.xlu0 %472, %v86
    %v474 = vpop.permute.xlu0 %473
    %477 = vset.pattern.permute.xlu0 0
    %478 = vperm.xlu0 %477, %v87
    %v479 = vpop.permute.xlu0 %478
    %482 = vset.pattern.permute.xlu0 0
    %483 = vperm.xlu0 %482, %v88
    %v484 = vpop.permute.xlu0 %483
    %487 = vset.pattern.permute.xlu0 0
    %488 = vperm.xlu0 %487, %v89
    %v489 = vpop.permute.xlu0 %488
    %492 = vset.pattern.permute.xlu0 0
    %493 = vperm.xlu0 %492, %v90
    %v494 = vpop.permute.xlu0 %493
    %497 = vset.pattern.permute.xlu0 0
    %498 = vperm.xlu0 %497, %v91
    %v499 = vpop.permute.xlu0 %498
    %502 = vset.pattern.permute.xlu0 0
    %503 = vperm.xlu0 %502, %v92
    %v504 = vpop.permute.xlu0 %503
    %507 = vset.pattern.permute.xlu0 0
    %508 = vperm.xlu0 %507, %v93
    %v509 = vpop.permute.xlu0 %508
    %v511 = vlaneseq
    %v512 = vshrl.u32 %v511, 7
    %v513 = vsub.s32 4, %v512
    %v514 = vrot.slane %v94, %v513
    %v515 = vmul.f32 %v434, %v514
    %v516 = vmul.f32 %v439, %v514
    %v517 = vmul.f32 %v444, %v514
    %v518 = vmul.f32 %v449, %v514
    %v519 = vmul.f32 %v454, %v514
    %v520 = vmul.f32 %v459, %v514
    %v521 = vmul.f32 %v464, %v514
    %v522 = vmul.f32 %v469, %v514
    %v523 = vmul.f32 %v474, %v514
    %v524 = vmul.f32 %v479, %v514
    %v525 = vmul.f32 %v484, %v514
    %v526 = vmul.f32 %v489, %v514
    %v527 = vmul.f32 %v494, %v514
    %v528 = vmul.f32 %v499, %v514
    %v529 = vmul.f32 %v504, %v514
    %v530 = vmul.f32 %v509, %v514
    %531 = vset.pattern.permute.xlu0 1
    %532 = vperm.xlu0 %531, %v78
    %v533 = vpop.permute.xlu0 %532
    %535 = vset.pattern.permute.xlu0 1
    %536 = vperm.xlu0 %535, %v79
    %v537 = vpop.permute.xlu0 %536
    %539 = vset.pattern.permute.xlu0 1
    %540 = vperm.xlu0 %539, %v80
    %v541 = vpop.permute.xlu0 %540
    %543 = vset.pattern.permute.xlu0 1
    %544 = vperm.xlu0 %543, %v81
    %v545 = vpop.permute.xlu0 %544
    %547 = vset.pattern.permute.xlu0 1
    %548 = vperm.xlu0 %547, %v82
    %v549 = vpop.permute.xlu0 %548
    %551 = vset.pattern.permute.xlu0 1
    %552 = vperm.xlu0 %551, %v83
    %v553 = vpop.permute.xlu0 %552
    %555 = vset.pattern.permute.xlu0 1
    %556 = vperm.xlu0 %555, %v84
    %v557 = vpop.permute.xlu0 %556
    %559 = vset.pattern.permute.xlu0 1
    %560 = vperm.xlu0 %559, %v85
    %v561 = vpop.permute.xlu0 %560
    %563 = vset.pattern.permute.xlu0 1
    %564 = vperm.xlu0 %563, %v86
    %v565 = vpop.permute.xlu0 %564
    %567 = vset.pattern.permute.xlu0 1
    %568 = vperm.xlu0 %567, %v87
    %v569 = vpop.permute.xlu0 %568
    %571 = vset.pattern.permute.xlu0 1
    %572 = vperm.xlu0 %571, %v88
    %v573 = vpop.permute.xlu0 %572
    %575 = vset.pattern.permute.xlu0 1
    %576 = vperm.xlu0 %575, %v89
    %v577 = vpop.permute.xlu0 %576
    %579 = vset.pattern.permute.xlu0 1
    %580 = vperm.xlu0 %579, %v90
    %v581 = vpop.permute.xlu0 %580
    %583 = vset.pattern.permute.xlu0 1
    %584 = vperm.xlu0 %583, %v91
    %v585 = vpop.permute.xlu0 %584
    %587 = vset.pattern.permute.xlu0 1
    %588 = vperm.xlu0 %587, %v92
    %v589 = vpop.permute.xlu0 %588
    %591 = vset.pattern.permute.xlu0 1
    %592 = vperm.xlu0 %591, %v93
    %v593 = vpop.permute.xlu0 %592
    %v595 = vlaneseq
    %v596 = vshrl.u32 %v595, 7
    %v597 = vsub.s32 5, %v596
    %v598 = vrot.slane %v94, %v597
    %v599 = vmul.f32 %v533, %v598
    %v600 = vmul.f32 %v537, %v598
    %v601 = vmul.f32 %v541, %v598
    %v602 = vmul.f32 %v545, %v598
    %v603 = vmul.f32 %v549, %v598
    %v604 = vmul.f32 %v553, %v598
    %v605 = vmul.f32 %v557, %v598
    %v606 = vmul.f32 %v561, %v598
    %v607 = vmul.f32 %v565, %v598
    %v608 = vmul.f32 %v569, %v598
    %v609 = vmul.f32 %v573, %v598
    %v610 = vmul.f32 %v577, %v598
    %v611 = vmul.f32 %v581, %v598
    %v612 = vmul.f32 %v585, %v598
    %v613 = vmul.f32 %v589, %v598
    %v614 = vmul.f32 %v593, %v598
    %v615 = vadd.f32 %v515, %v599
    %v616 = vadd.f32 %v516, %v600
    %v617 = vadd.f32 %v517, %v601
    %v618 = vadd.f32 %v518, %v602
    %v619 = vadd.f32 %v519, %v603
    %v620 = vadd.f32 %v520, %v604
    %v621 = vadd.f32 %v521, %v605
    %v622 = vadd.f32 %v522, %v606
    %v623 = vadd.f32 %v523, %v607
    %v624 = vadd.f32 %v524, %v608
    %v625 = vadd.f32 %v525, %v609
    %v626 = vadd.f32 %v526, %v610
    %v627 = vadd.f32 %v527, %v611
    %v628 = vadd.f32 %v528, %v612
    %v629 = vadd.f32 %v529, %v613
    %v630 = vadd.f32 %v530, %v614
    %631 = vset.pattern.permute.xlu0 2
    %632 = vperm.xlu0 %631, %v78
    %v633 = vpop.permute.xlu0 %632
    %635 = vset.pattern.permute.xlu0 2
    %636 = vperm.xlu0 %635, %v79
    %v637 = vpop.permute.xlu0 %636
    %639 = vset.pattern.permute.xlu0 2
    %640 = vperm.xlu0 %639, %v80
    %v641 = vpop.permute.xlu0 %640
    %643 = vset.pattern.permute.xlu0 2
    %644 = vperm.xlu0 %643, %v81
    %v645 = vpop.permute.xlu0 %644
    %647 = vset.pattern.permute.xlu0 2
    %648 = vperm.xlu0 %647, %v82
    %v649 = vpop.permute.xlu0 %648
    %651 = vset.pattern.permute.xlu0 2
    %652 = vperm.xlu0 %651, %v83
    %v653 = vpop.permute.xlu0 %652
    %655 = vset.pattern.permute.xlu0 2
    %656 = vperm.xlu0 %655, %v84
    %v657 = vpop.permute.xlu0 %656
    %659 = vset.pattern.permute.xlu0 2
    %660 = vperm.xlu0 %659, %v85
    %v661 = vpop.permute.xlu0 %660
    %663 = vset.pattern.permute.xlu0 2
    %664 = vperm.xlu0 %663, %v86
    %v665 = vpop.permute.xlu0 %664
    %667 = vset.pattern.permute.xlu0 2
    %668 = vperm.xlu0 %667, %v87
    %v669 = vpop.permute.xlu0 %668
    %671 = vset.pattern.permute.xlu0 2
    %672 = vperm.xlu0 %671, %v88
    %v673 = vpop.permute.xlu0 %672
    %675 = vset.pattern.permute.xlu0 2
    %676 = vperm.xlu0 %675, %v89
    %v677 = vpop.permute.xlu0 %676
    %679 = vset.pattern.permute.xlu0 2
    %680 = vperm.xlu0 %679, %v90
    %v681 = vpop.permute.xlu0 %680
    %683 = vset.pattern.permute.xlu0 2
    %684 = vperm.xlu0 %683, %v91
    %v685 = vpop.permute.xlu0 %684
    %687 = vset.pattern.permute.xlu0 2
    %688 = vperm.xlu0 %687, %v92
    %v689 = vpop.permute.xlu0 %688
    %691 = vset.pattern.permute.xlu0 2
    %692 = vperm.xlu0 %691, %v93
    %v693 = vpop.permute.xlu0 %692
    %v695 = vlaneseq
    %v696 = vshrl.u32 %v695, 7
    %v697 = vsub.s32 6, %v696
    %v698 = vrot.slane %v94, %v697
    %v699 = vmul.f32 %v633, %v698
    %v700 = vmul.f32 %v637, %v698
    %v701 = vmul.f32 %v641, %v698
    %v702 = vmul.f32 %v645, %v698
    %v703 = vmul.f32 %v649, %v698
    %v704 = vmul.f32 %v653, %v698
    %v705 = vmul.f32 %v657, %v698
    %v706 = vmul.f32 %v661, %v698
    %v707 = vmul.f32 %v665, %v698
    %v708 = vmul.f32 %v669, %v698
    %v709 = vmul.f32 %v673, %v698
    %v710 = vmul.f32 %v677, %v698
    %v711 = vmul.f32 %v681, %v698
    %v712 = vmul.f32 %v685, %v698
    %v713 = vmul.f32 %v689, %v698
    %v714 = vmul.f32 %v693, %v698
    %v715 = vadd.f32 %v615, %v699
    %v716 = vadd.f32 %v616, %v700
    %v717 = vadd.f32 %v617, %v701
    %v718 = vadd.f32 %v618, %v702
    %v719 = vadd.f32 %v619, %v703
    %v720 = vadd.f32 %v620, %v704
    %v721 = vadd.f32 %v621, %v705
    %v722 = vadd.f32 %v622, %v706
    %v723 = vadd.f32 %v623, %v707
    %v724 = vadd.f32 %v624, %v708
    %v725 = vadd.f32 %v625, %v709
    %v726 = vadd.f32 %v626, %v710
    %v727 = vadd.f32 %v627, %v711
    %v728 = vadd.f32 %v628, %v712
    %v729 = vadd.f32 %v629, %v713
    %v730 = vadd.f32 %v630, %v714
    %v731 = vlaneseq
    %v732 = vshrl.u32 %v731, 7
    %v733 = vsub.s32 7, %v732
    %v734 = vrot.slane %v94, %v733
    %v735 = vadd.f32 %v715, %v734
    %v736 = vadd.f32 %v716, %v734
    %v737 = vadd.f32 %v717, %v734
    %v738 = vadd.f32 %v718, %v734
    %v739 = vadd.f32 %v719, %v734
    %v740 = vadd.f32 %v720, %v734
    %v741 = vadd.f32 %v721, %v734
    %v742 = vadd.f32 %v722, %v734
    %v743 = vadd.f32 %v723, %v734
    %v744 = vadd.f32 %v724, %v734
    %v745 = vadd.f32 %v725, %v734
    %v746 = vadd.f32 %v726, %v734
    %v747 = vadd.f32 %v727, %v734
    %v748 = vadd.f32 %v728, %v734
    %v749 = vadd.f32 %v729, %v734
    %v750 = vadd.f32 %v730, %v734
    %v751 = vmax.f32 %v735, 0.0
    %v752 = vmax.f32 %v736, 0.0
    %v753 = vmax.f32 %v737, 0.0
    %v754 = vmax.f32 %v738, 0.0
    %v755 = vmax.f32 %v739, 0.0
    %v756 = vmax.f32 %v740, 0.0
    %v757 = vmax.f32 %v741, 0.0
    %v758 = vmax.f32 %v742, 0.0
    %v759 = vmax.f32 %v743, 0.0
    %v760 = vmax.f32 %v744, 0.0
    %v761 = vmax.f32 %v745, 0.0
    %v762 = vmax.f32 %v746, 0.0
    %v763 = vmax.f32 %v747, 0.0
    %v764 = vmax.f32 %v748, 0.0
    %v765 = vmax.f32 %v749, 0.0
    %v766 = vmax.f32 %v750, 0.0
    %783 = vrot.lane.b32.xlu0 %v751, 64
    %v784 = vpop.permute.xlu0 %783
    %785 = vrot.lane.b32.xlu0 %v752, 64
    %v786 = vpop.permute.xlu0 %785
    %787 = vrot.lane.b32.xlu0 %v753, 64
    %v788 = vpop.permute.xlu0 %787
    %789 = vrot.lane.b32.xlu0 %v754, 64
    %v790 = vpop.permute.xlu0 %789
    %791 = vrot.lane.b32.xlu0 %v755, 64
    %v792 = vpop.permute.xlu0 %791
    %793 = vrot.lane.b32.xlu0 %v756, 64
    %v794 = vpop.permute.xlu0 %793
    %795 = vrot.lane.b32.xlu0 %v757, 64
    %v796 = vpop.permute.xlu0 %795
    %797 = vrot.lane.b32.xlu0 %v758, 64
    %v798 = vpop.permute.xlu0 %797
    %799 = vrot.lane.b32.xlu0 %v759, 64
    %v800 = vpop.permute.xlu0 %799
    %801 = vrot.lane.b32.xlu0 %v760, 64
    %v802 = vpop.permute.xlu0 %801
    %803 = vrot.lane.b32.xlu0 %v761, 64
    %v804 = vpop.permute.xlu0 %803
    %805 = vrot.lane.b32.xlu0 %v762, 64
    %v806 = vpop.permute.xlu0 %805
    %807 = vrot.lane.b32.xlu0 %v763, 64
    %v808 = vpop.permute.xlu0 %807
    %809 = vrot.lane.b32.xlu0 %v764, 64
    %v810 = vpop.permute.xlu0 %809
    %811 = vrot.lane.b32.xlu0 %v765, 64
    %v812 = vpop.permute.xlu0 %811
    %813 = vrot.lane.b32.xlu0 %v766, 64
    %v814 = vpop.permute.xlu0 %813
    %vm831 = vcmask 523264
    %v832 = vsel %vm831, %v415, %v784
    %v833 = vsel %vm831, %v416, %v786
    %v834 = vsel %vm831, %v417, %v788
    %v835 = vsel %vm831, %v418, %v790
    %v836 = vsel %vm831, %v419, %v792
    %v837 = vsel %vm831, %v420, %v794
    %v838 = vsel %vm831, %v421, %v796
    %v839 = vsel %vm831, %v422, %v798
    %v840 = vsel %vm831, %v423, %v800
    %v841 = vsel %vm831, %v424, %v802
    %v842 = vsel %vm831, %v425, %v804
    %v843 = vsel %vm831, %v426, %v806
    %v844 = vsel %vm831, %v427, %v808
    %v845 = vsel %vm831, %v428, %v810
    %v846 = vsel %vm831, %v429, %v812
    %v847 = vsel %vm831, %v430, %v814
    %v848 = vpack.c.bf16 %v833, %v832
    %v849 = vpack.c.bf16 %v835, %v834
    %v850 = vpack.c.bf16 %v837, %v836
    %v851 = vpack.c.bf16 %v839, %v838
    %v852 = vpack.c.bf16 %v841, %v840
    %v853 = vpack.c.bf16 %v843, %v842
    %v854 = vpack.c.bf16 %v845, %v844
    %v855 = vpack.c.bf16 %v847, %v846
    %v856 = vld [vmem:[#allocation2] sm:$0xff]
    %v857 = vld [vmem:[#allocation2 + $0x8] sm:$0xff]
    %v858 = vld [vmem:[#allocation2 + $0x10] sm:$0xff]
    %v859 = vld [vmem:[#allocation2 + $0x18] sm:$0xff]
    %v860 = vld [vmem:[#allocation2 + $0x20] sm:$0xff]
    %v861 = vld [vmem:[#allocation2 + $0x28] sm:$0xff]
    %v862 = vld [vmem:[#allocation2 + $0x30] sm:$0xff]
    %v863 = vld [vmem:[#allocation2 + $0x38] sm:$0xff]
    %v864 = vld [vmem:[#allocation2 + $0x40] sm:$0xff]
    %v865 = vld [vmem:[#allocation2 + $0x48] sm:$0xff]
    %v866 = vld [vmem:[#allocation2 + $0x50] sm:$0xff]
    %v867 = vld [vmem:[#allocation2 + $0x58] sm:$0xff]
    %v868 = vld [vmem:[#allocation2 + $0x60] sm:$0xff]
    %v869 = vld [vmem:[#allocation2 + $0x68] sm:$0xff]
    %v870 = vld [vmem:[#allocation2 + $0x70] sm:$0xff]
    %v871 = vld [vmem:[#allocation2 + $0x78] sm:$0xff]
    %v872 = vld [vmem:[#allocation2 + $0x80] sm:$0xff]
    %v873 = vld [vmem:[#allocation2 + $0x88] sm:$0xff]
    %v874 = vld [vmem:[#allocation2 + $0x90] sm:$0xff]
    %v875 = vld [vmem:[#allocation2 + $0x98] sm:$0xff]
    %v876 = vld [vmem:[#allocation2 + $0xa0] sm:$0xff]
    %v877 = vld [vmem:[#allocation2 + $0xa8] sm:$0xff]
    %v878 = vld [vmem:[#allocation2 + $0xb0] sm:$0xff]
    %v879 = vld [vmem:[#allocation2 + $0xb8] sm:$0xff]
    %v880 = vld [vmem:[#allocation2 + $0xc0] sm:$0xff]
    %v881 = vld [vmem:[#allocation2 + $0xc8] sm:$0xff]
    %v882 = vld [vmem:[#allocation2 + $0xd0] sm:$0xff]
    %v883 = vld [vmem:[#allocation2 + $0xd8] sm:$0xff]
    %v884 = vld [vmem:[#allocation2 + $0xe0] sm:$0xff]
    %v885 = vld [vmem:[#allocation2 + $0xe8] sm:$0xff]
    %v886 = vld [vmem:[#allocation2 + $0xf0] sm:$0xff]
    %v887 = vld [vmem:[#allocation2 + $0xf8] sm:$0xff]
    %v888 = vld [vmem:[#allocation2 + $0x100] sm:$0xff]
    %v889 = vld [vmem:[#allocation2 + $0x108] sm:$0xff]
    %v890 = vld [vmem:[#allocation2 + $0x110] sm:$0xff]
    %v891 = vld [vmem:[#allocation2 + $0x118] sm:$0xff]
    %v892 = vld [vmem:[#allocation2 + $0x120] sm:$0xff]
    %v893 = vld [vmem:[#allocation2 + $0x128] sm:$0xff]
    %v894 = vld [vmem:[#allocation2 + $0x130] sm:$0xff]
    %v895 = vld [vmem:[#allocation2 + $0x138] sm:$0xff]
    %v896 = vld [vmem:[#allocation2 + $0x140] sm:$0xff]
    %v897 = vld [vmem:[#allocation2 + $0x148] sm:$0xff]
    %v898 = vld [vmem:[#allocation2 + $0x150] sm:$0xff]
    %v899 = vld [vmem:[#allocation2 + $0x158] sm:$0xff]
    %v900 = vld [vmem:[#allocation2 + $0x160] sm:$0xff]
    %v901 = vld [vmem:[#allocation2 + $0x168] sm:$0xff]
    %v902 = vld [vmem:[#allocation2 + $0x170] sm:$0xff]
    %v903 = vld [vmem:[#allocation2 + $0x178] sm:$0xff]
    %v904 = vld [vmem:[#allocation2 + $0x180] sm:$0xff]
    %v905 = vld [vmem:[#allocation2 + $0x188] sm:$0xff]
    %v906 = vld [vmem:[#allocation2 + $0x190] sm:$0xff]
    %v907 = vld [vmem:[#allocation2 + $0x198] sm:$0xff]
    %v908 = vld [vmem:[#allocation2 + $0x1a0] sm:$0xff]
    %v909 = vld [vmem:[#allocation2 + $0x1a8] sm:$0xff]
    %v910 = vld [vmem:[#allocation2 + $0x1b0] sm:$0xff]
    %v911 = vld [vmem:[#allocation2 + $0x1b8] sm:$0xff]
    %v912 = vld [vmem:[#allocation2 + $0x1c0] sm:$0xff]
    %v913 = vld [vmem:[#allocation2 + $0x1c8] sm:$0xff]
    %v914 = vld [vmem:[#allocation2 + $0x1d0] sm:$0xff]
    %v915 = vld [vmem:[#allocation2 + $0x1d8] sm:$0xff]
    %v916 = vld [vmem:[#allocation2 + $0x1e0] sm:$0xff]
    %v917 = vld [vmem:[#allocation2 + $0x1e8] sm:$0xff]
    %v918 = vld [vmem:[#allocation2 + $0x1f0] sm:$0xff]
    %v919 = vld [vmem:[#allocation2 + $0x1f8] sm:$0xff]
    %v920 = vld [vmem:[%s4] sm:$0xff]
    %v922 = vlaneseq
    %v923 = vshrl.u32 %v922, 7
    %v924 = vsub.s32 0, %v923
    %v925 = vrot.slane %v920, %v924
    %v926 = vlaneseq
    %v927 = vshrl.u32 %v926, 7
    %v928 = vsub.s32 1, %v927
    %v929 = vrot.slane %v920, %v928
    %v930 = vlaneseq
    %v931 = vshrl.u32 %v930, 7
    %v932 = vsub.s32 2, %v931
    %v933 = vrot.slane %v920, %v932
    %v934 = vlaneseq
    %v935 = vshrl.u32 %v934, 7
    %v936 = vsub.s32 3, %v935
    %v937 = vrot.slane %v920, %v936
    %v938 = vlaneseq
    %v939 = vshrl.u32 %v938, 7
    %v940 = vsub.s32 4, %v939
    %v941 = vrot.slane %v920, %v940
    %v942 = vlaneseq
    %v943 = vshrl.u32 %v942, 7
    %v944 = vsub.s32 5, %v943
    %v945 = vrot.slane %v920, %v944
    %v946 = vlaneseq
    %v947 = vshrl.u32 %v946, 7
    %v948 = vsub.s32 6, %v947
    %v949 = vrot.slane %v920, %v948
    %v950 = vlaneseq
    %v951 = vshrl.u32 %v950, 7
    %v952 = vsub.s32 7, %v951
    %v953 = vrot.slane %v920, %v952
    %v1026 = vunpack.c.l.b16 %v856
    %v1027 = vunpack.c.h.b16 %v856
    %v1028 = vunpack.c.l.b16 %v857
    %v1029 = vunpack.c.h.b16 %v857
    %v1030 = vunpack.c.l.b16 %v858
    %v1031 = vunpack.c.h.b16 %v858
    %v1032 = vunpack.c.l.b16 %v859
    %v1033 = vunpack.c.h.b16 %v859
    %v1034 = vunpack.c.l.b16 %v860
    %v1035 = vunpack.c.h.b16 %v860
    %v1036 = vunpack.c.l.b16 %v861
    %v1037 = vunpack.c.h.b16 %v861
    %v1038 = vunpack.c.l.b16 %v862
    %v1039 = vunpack.c.h.b16 %v862
    %v1040 = vunpack.c.l.b16 %v863
    %v1041 = vunpack.c.h.b16 %v863
    %v1042 = vunpack.c.l.b16 %v864
    %v1043 = vunpack.c.h.b16 %v864
    %v1044 = vunpack.c.l.b16 %v865
    %v1045 = vunpack.c.h.b16 %v865
    %v1046 = vunpack.c.l.b16 %v866
    %v1047 = vunpack.c.h.b16 %v866
    %v1048 = vunpack.c.l.b16 %v867
    %v1049 = vunpack.c.h.b16 %v867
    %v1050 = vunpack.c.l.b16 %v868
    %v1051 = vunpack.c.h.b16 %v868
    %v1052 = vunpack.c.l.b16 %v869
    %v1053 = vunpack.c.h.b16 %v869
    %v1054 = vunpack.c.l.b16 %v870
    %v1055 = vunpack.c.h.b16 %v870
    %v1056 = vunpack.c.l.b16 %v871
    %v1057 = vunpack.c.h.b16 %v871
    %v1058 = vunpack.c.l.b16 %v872
    %v1059 = vunpack.c.h.b16 %v872
    %v1060 = vunpack.c.l.b16 %v873
    %v1061 = vunpack.c.h.b16 %v873
    %v1062 = vunpack.c.l.b16 %v874
    %v1063 = vunpack.c.h.b16 %v874
    %v1064 = vunpack.c.l.b16 %v875
    %v1065 = vunpack.c.h.b16 %v875
    %v1066 = vunpack.c.l.b16 %v876
    %v1067 = vunpack.c.h.b16 %v876
    %v1068 = vunpack.c.l.b16 %v877
    %v1069 = vunpack.c.h.b16 %v877
    %v1070 = vunpack.c.l.b16 %v878
    %v1071 = vunpack.c.h.b16 %v878
    %v1072 = vunpack.c.l.b16 %v879
    %v1073 = vunpack.c.h.b16 %v879
    %v1074 = vunpack.c.l.b16 %v880
    %v1075 = vunpack.c.h.b16 %v880
    %v1076 = vunpack.c.l.b16 %v881
    %v1077 = vunpack.c.h.b16 %v881
    %v1078 = vunpack.c.l.b16 %v882
    %v1079 = vunpack.c.h.b16 %v882
    %v1080 = vunpack.c.l.b16 %v883
    %v1081 = vunpack.c.h.b16 %v883
    %v1082 = vunpack.c.l.b16 %v884
    %v1083 = vunpack.c.h.b16 %v884
    %v1084 = vunpack.c.l.b16 %v885
    %v1085 = vunpack.c.h.b16 %v885
    %v1086 = vunpack.c.l.b16 %v886
    %v1087 = vunpack.c.h.b16 %v886
    %v1088 = vunpack.c.l.b16 %v887
    %v1089 = vunpack.c.h.b16 %v887
    %v1090 = vunpack.c.l.b16 %v888
    %v1091 = vunpack.c.h.b16 %v888
    %v1092 = vunpack.c.l.b16 %v889
    %v1093 = vunpack.c.h.b16 %v889
    %v1094 = vunpack.c.l.b16 %v890
    %v1095 = vunpack.c.h.b16 %v890
    %v1096 = vunpack.c.l.b16 %v891
    %v1097 = vunpack.c.h.b16 %v891
    %v1098 = vunpack.c.l.b16 %v892
    %v1099 = vunpack.c.h.b16 %v892
    %v1100 = vunpack.c.l.b16 %v893
    %v1101 = vunpack.c.h.b16 %v893
    %v1102 = vunpack.c.l.b16 %v894
    %v1103 = vunpack.c.h.b16 %v894
    %v1104 = vunpack.c.l.b16 %v895
    %v1105 = vunpack.c.h.b16 %v895
    %v1106 = vunpack.c.l.b16 %v896
    %v1107 = vunpack.c.h.b16 %v896
    %v1108 = vunpack.c.l.b16 %v897
    %v1109 = vunpack.c.h.b16 %v897
    %v1110 = vunpack.c.l.b16 %v898
    %v1111 = vunpack.c.h.b16 %v898
    %v1112 = vunpack.c.l.b16 %v899
    %v1113 = vunpack.c.h.b16 %v899
    %v1114 = vunpack.c.l.b16 %v900
    %v1115 = vunpack.c.h.b16 %v900
    %v1116 = vunpack.c.l.b16 %v901
    %v1117 = vunpack.c.h.b16 %v901
    %v1118 = vunpack.c.l.b16 %v902
    %v1119 = vunpack.c.h.b16 %v902
    %v1120 = vunpack.c.l.b16 %v903
    %v1121 = vunpack.c.h.b16 %v903
    %v1122 = vunpack.c.l.b16 %v904
    %v1123 = vunpack.c.h.b16 %v904
    %v1124 = vunpack.c.l.b16 %v905
    %v1125 = vunpack.c.h.b16 %v905
    %v1126 = vunpack.c.l.b16 %v906
    %v1127 = vunpack.c.h.b16 %v906
    %v1128 = vunpack.c.l.b16 %v907
    %v1129 = vunpack.c.h.b16 %v907
    %v1130 = vunpack.c.l.b16 %v908
    %v1131 = vunpack.c.h.b16 %v908
    %v1132 = vunpack.c.l.b16 %v909
    %v1133 = vunpack.c.h.b16 %v909
    %v1134 = vunpack.c.l.b16 %v910
    %v1135 = vunpack.c.h.b16 %v910
    %v1136 = vunpack.c.l.b16 %v911
    %v1137 = vunpack.c.h.b16 %v911
    %v1138 = vunpack.c.l.b16 %v912
    %v1139 = vunpack.c.h.b16 %v912
    %v1140 = vunpack.c.l.b16 %v913
    %v1141 = vunpack.c.h.b16 %v913
    %v1142 = vunpack.c.l.b16 %v914
    %v1143 = vunpack.c.h.b16 %v914
    %v1144 = vunpack.c.l.b16 %v915
    %v1145 = vunpack.c.h.b16 %v915
    %v1146 = vunpack.c.l.b16 %v916
    %v1147 = vunpack.c.h.b16 %v916
    %v1148 = vunpack.c.l.b16 %v917
    %v1149 = vunpack.c.h.b16 %v917
    %v1150 = vunpack.c.l.b16 %v918
    %v1151 = vunpack.c.h.b16 %v918
    %v1152 = vunpack.c.l.b16 %v919
    %v1153 = vunpack.c.h.b16 %v919
    %v1154 = vpack.c.b16 %v1034, %v1026
    %v1155 = vpack.c.b16 %v1035, %v1027
    %v1156 = vpack.c.b16 %v1036, %v1028
    %v1157 = vpack.c.b16 %v1037, %v1029
    %v1158 = vpack.c.b16 %v1038, %v1030
    %v1159 = vpack.c.b16 %v1039, %v1031
    %v1160 = vpack.c.b16 %v1040, %v1032
    %v1161 = vpack.c.b16 %v1041, %v1033
    %v1162 = vpack.c.b16 %v1050, %v1042
    %v1163 = vpack.c.b16 %v1051, %v1043
    %v1164 = vpack.c.b16 %v1052, %v1044
    %v1165 = vpack.c.b16 %v1053, %v1045
    %v1166 = vpack.c.b16 %v1054, %v1046
    %v1167 = vpack.c.b16 %v1055, %v1047
    %v1168 = vpack.c.b16 %v1056, %v1048
    %v1169 = vpack.c.b16 %v1057, %v1049
    %v1170 = vpack.c.b16 %v1066, %v1058
    %v1171 = vpack.c.b16 %v1067, %v1059
    %v1172 = vpack.c.b16 %v1068, %v1060
    %v1173 = vpack.c.b16 %v1069, %v1061
    %v1174 = vpack.c.b16 %v1070, %v1062
    %v1175 = vpack.c.b16 %v1071, %v1063
    %v1176 = vpack.c.b16 %v1072, %v1064
    %v1177 = vpack.c.b16 %v1073, %v1065
    %v1178 = vpack.c.b16 %v1082, %v1074
    %v1179 = vpack.c.b16 %v1083, %v1075
    %v1180 = vpack.c.b16 %v1084, %v1076
    %v1181 = vpack.c.b16 %v1085, %v1077
    %v1182 = vpack.c.b16 %v1086, %v1078
    %v1183 = vpack.c.b16 %v1087, %v1079
    %v1184 = vpack.c.b16 %v1088, %v1080
    %v1185 = vpack.c.b16 %v1089, %v1081
    %v1186 = vpack.c.b16 %v1098, %v1090
    %v1187 = vpack.c.b16 %v1099, %v1091
    %v1188 = vpack.c.b16 %v1100, %v1092
    %v1189 = vpack.c.b16 %v1101, %v1093
    %v1190 = vpack.c.b16 %v1102, %v1094
    %v1191 = vpack.c.b16 %v1103, %v1095
    %v1192 = vpack.c.b16 %v1104, %v1096
    %v1193 = vpack.c.b16 %v1105, %v1097
    %v1194 = vpack.c.b16 %v1114, %v1106
    %v1195 = vpack.c.b16 %v1115, %v1107
    %v1196 = vpack.c.b16 %v1116, %v1108
    %v1197 = vpack.c.b16 %v1117, %v1109
    %v1198 = vpack.c.b16 %v1118, %v1110
    %v1199 = vpack.c.b16 %v1119, %v1111
    %v1200 = vpack.c.b16 %v1120, %v1112
    %v1201 = vpack.c.b16 %v1121, %v1113
    %v1202 = vpack.c.b16 %v1130, %v1122
    %v1203 = vpack.c.b16 %v1131, %v1123
    %v1204 = vpack.c.b16 %v1132, %v1124
    %v1205 = vpack.c.b16 %v1133, %v1125
    %v1206 = vpack.c.b16 %v1134, %v1126
    %v1207 = vpack.c.b16 %v1135, %v1127
    %v1208 = vpack.c.b16 %v1136, %v1128
    %v1209 = vpack.c.b16 %v1137, %v1129
    %v1210 = vpack.c.b16 %v1146, %v1138
    %v1211 = vpack.c.b16 %v1147, %v1139
    %v1212 = vpack.c.b16 %v1148, %v1140
    %v1213 = vpack.c.b16 %v1149, %v1141
    %v1214 = vpack.c.b16 %v1150, %v1142
    %v1215 = vpack.c.b16 %v1151, %v1143
    %v1216 = vpack.c.b16 %v1152, %v1144
    %v1217 = vpack.c.b16 %v1153, %v1145
    %1282 = vmatprep.subr.bf16.mxu0 %v1155
    %1283 = vmatpush1.bf16.msra.mxu0 %v1154
    %1284 = vmatprep.subr.bf16.mxu0 %v1163
    %1285 = vmatpush1.bf16.msra.mxu0 %v1162
    %1286 = vmatprep.subr.bf16.mxu0 %v1171
    %1287 = vmatpush1.bf16.msra.mxu0 %v1170
    %1288 = vmatprep.subr.bf16.mxu0 %v1179
    %1289 = vmatpush1.bf16.msra.mxu0 %v1178
    %1290 = vmatprep.subr.bf16.mxu0 %v1187
    %1291 = vmatpush1.bf16.msra.mxu0 %v1186
    %1292 = vmatprep.subr.bf16.mxu0 %v1195
    %1293 = vmatpush1.bf16.msra.mxu0 %v1194
    %1294 = vmatprep.subr.bf16.mxu0 %v1203
    %1295 = vmatpush1.bf16.msra.mxu0 %v1202
    %1296 = vmatprep.subr.bf16.mxu0 %v1211
    %1297 = vmatpush1.bf16.msra.mxu0 %v1210
    %1298 = vmatprep.subr.bf16.mxu0 0
    %1299 = vmatpush1.bf16.msra.mxu0 0
    %1300 = vmatprep.subr.bf16.mxu0 0
    %1301 = vmatpush1.bf16.msra.mxu0 0
    %1302 = vmatprep.subr.bf16.mxu0 0
    %1303 = vmatpush1.bf16.msra.mxu0 0
    %1304 = vmatprep.subr.bf16.mxu0 0
    %1305 = vmatpush1.bf16.msra.mxu0 0
    %1306 = vmatprep.subr.bf16.mxu0 0
    %1307 = vmatpush1.bf16.msra.mxu0 0
    %1308 = vmatprep.subr.bf16.mxu0 0
    %1309 = vmatpush1.bf16.msra.mxu0 0
    %1310 = vmatprep.subr.bf16.mxu0 0
    %1311 = vmatpush1.bf16.msra.mxu0 0
    %1312 = vmatprep.subr.bf16.mxu0 0
    %1313 = vmatpush1.bf16.msra.mxu0 0
    %1314 = vmatprep.mubr.bf16.mxu0 0
    %1315 = vmatmul.mubr.bf16.gmra.mrb[0].mxu0 %v848
    %v1316 = vpop.f32.mrb[0].mxu0
    %v1317 = vadd.f32 %v925, %v1316
    %v1318 = vpop.f32.mrb[0].mxu0
    %v1319 = vadd.f32 %v929, %v1318
    %v1320 = vpop.f32.mrb[0].mxu0
    %v1321 = vadd.f32 %v925, %v1320
    %v1322 = vpop.f32.mrb[0].mxu0
    %v1323 = vadd.f32 %v929, %v1322
    %1324 = vmatprep.mubr.bf16.mxu0 0
    %1325 = vmatmul.mubr.bf16.gmra.mrb[0].mxu0 %v849
    %v1326 = vpop.f32.mrb[0].mxu0
    %v1327 = vadd.f32 %v925, %v1326
    %v1328 = vpop.f32.mrb[0].mxu0
    %v1329 = vadd.f32 %v929, %v1328
    %v1330 = vpop.f32.mrb[0].mxu0
    %v1331 = vadd.f32 %v925, %v1330
    %v1332 = vpop.f32.mrb[0].mxu0
    %v1333 = vadd.f32 %v929, %v1332
    %1334 = vmatprep.mubr.bf16.mxu0 0
    %1335 = vmatmul.mubr.bf16.gmra.mrb[0].mxu0 %v850
    %v1336 = vpop.f32.mrb[0].mxu0
    %v1337 = vadd.f32 %v925, %v1336
    %v1338 = vpop.f32.mrb[0].mxu0
    %v1339 = vadd.f32 %v929, %v1338
    %v1340 = vpop.f32.mrb[0].mxu0
    %v1341 = vadd.f32 %v925, %v1340
    %v1342 = vpop.f32.mrb[0].mxu0
    %v1343 = vadd.f32 %v929, %v1342
    %1344 = vmatprep.mubr.bf16.mxu0 0
    %1345 = vmatmul.mubr.bf16.gmra.mrb[0].mxu0 %v851
    %v1346 = vpop.f32.mrb[0].mxu0
    %v1347 = vadd.f32 %v925, %v1346
    %v1348 = vpop.f32.mrb[0].mxu0
    %v1349 = vadd.f32 %v929, %v1348
    %v1350 = vpop.f32.mrb[0].mxu0
    %v1351 = vadd.f32 %v925, %v1350
    %v1352 = vpop.f32.mrb[0].mxu0
    %v1353 = vadd.f32 %v929, %v1352
    %1354 = vmatprep.mubr.bf16.mxu0 0
    %1355 = vmatmul.mubr.bf16.gmra.mrb[0].mxu0 %v852
    %v1356 = vpop.f32.mrb[0].mxu0
    %v1357 = vadd.f32 %v925, %v1356
    %v1358 = vpop.f32.mrb[0].mxu0
    %v1359 = vadd.f32 %v929, %v1358
    %v1360 = vpop.f32.mrb[0].mxu0
    %v1361 = vadd.f32 %v925, %v1360
    %v1362 = vpop.f32.mrb[0].mxu0
    %v1363 = vadd.f32 %v929, %v1362
    %1364 = vmatprep.mubr.bf16.mxu0 0
    %1365 = vmatmul.mubr.bf16.gmra.mrb[0].mxu0 %v853
    %v1366 = vpop.f32.mrb[0].mxu0
    %v1367 = vadd.f32 %v925, %v1366
    %v1368 = vpop.f32.mrb[0].mxu0
    %v1369 = vadd.f32 %v929, %v1368
    %v1370 = vpop.f32.mrb[0].mxu0
    %v1371 = vadd.f32 %v925, %v1370
    %v1372 = vpop.f32.mrb[0].mxu0
    %v1373 = vadd.f32 %v929, %v1372
    %1374 = vmatprep.mubr.bf16.mxu0 0
    %1375 = vmatmul.mubr.bf16.gmra.mrb[0].mxu0 %v854
    %v1376 = vpop.f32.mrb[0].mxu0
    %v1377 = vadd.f32 %v925, %v1376
    %v1378 = vpop.f32.mrb[0].mxu0
    %v1379 = vadd.f32 %v929, %v1378
    %v1380 = vpop.f32.mrb[0].mxu0
    %v1381 = vadd.f32 %v925, %v1380
    %v1382 = vpop.f32.mrb[0].mxu0
    %v1383 = vadd.f32 %v929, %v1382
    %1384 = vmatprep.mubr.bf16.mxu0 0
    %1385 = vmatmul.mubr.bf16.gmra.mrb[0].mxu0 %v855
    %v1386 = vpop.f32.mrb[0].mxu0
    %v1387 = vadd.f32 %v925, %v1386
    %v1388 = vpop.f32.mrb[0].mxu0
    %v1389 = vadd.f32 %v929, %v1388
    %v1390 = vpop.f32.mrb[0].mxu0
    %v1391 = vadd.f32 %v925, %v1390
    %v1392 = vpop.f32.mrb[0].mxu0
    %v1393 = vadd.f32 %v929, %v1392
    %1394 = vdwg.mxu0
    %1395 = vmatprep.subr.bf16.mxu0 %v1157
    %1396 = vmatpush1.bf16.msra.mxu0 %v1156
    %1397 = vmatprep.subr.bf16.mxu0 %v1165
    %1398 = vmatpush1.bf16.msra.mxu0 %v1164
    %1399 = vmatprep.subr.bf16.mxu0 %v1173
    %1400 = vmatpush1.bf16.msra.mxu0 %v1172
    %1401 = vmatprep.subr.bf16.mxu0 %v1181
    %1402 = vmatpush1.bf16.msra.mxu0 %v1180
    %1403 = vmatprep.subr.bf16.mxu0 %v1189
    %1404 = vmatpush1.bf16.msra.mxu0 %v1188
    %1405 = vmatprep.subr.bf16.mxu0 %v1197
    %1406 = vmatpush1.bf16.msra.mxu0 %v1196
    %1407 = vmatprep.subr.bf16.mxu0 %v1205
    %1408 = vmatpush1.bf16.msra.mxu0 %v1204
    %1409 = vmatprep.subr.bf16.mxu0 %v1213
    %1410 = vmatpush1.bf16.msra.mxu0 %v1212
    %1411 = vmatprep.subr.bf16.mxu0 0
    %1412 = vmatpush1.bf16.msra.mxu0 0
    %1413 = vmatprep.subr.bf16.mxu0 0
    %1414 = vmatpush1.bf16.msra.mxu0 0
    %1415 = vmatprep.subr.bf16.mxu0 0
    %1416 = vmatpush1.bf16.msra.mxu0 0
    %1417 = vmatprep.subr.bf16.mxu0 0
    %1418 = vmatpush1.bf16.msra.mxu0 0
    %1419 = vmatprep.subr.bf16.mxu0 0
    %1420 = vmatpush1.bf16.msra.mxu0 0
    %1421 = vmatprep.subr.bf16.mxu0 0
    %1422 = vmatpush1.bf16.msra.mxu0 0
    %1423 = vmatprep.subr.bf16.mxu0 0
    %1424 = vmatpush1.bf16.msra.mxu0 0
    %1425 = vmatprep.subr.bf16.mxu0 0
    %1426 = vmatpush1.bf16.msra.mxu0 0
    %1427 = vmatprep.mubr.bf16.mxu0 0
    %1428 = vmatmul.mubr.bf16.gmra.mrb[0].mxu0 %v848
    %v1429 = vpop.f32.mrb[0].mxu0
    %v1430 = vadd.f32 %v933, %v1429
    %v1431 = vpop.f32.mrb[0].mxu0
    %v1432 = vadd.f32 %v937, %v1431
    %v1433 = vpop.f32.mrb[0].mxu0
    %v1434 = vadd.f32 %v933, %v1433
    %v1435 = vpop.f32.mrb[0].mxu0
    %v1436 = vadd.f32 %v937, %v1435
    %1437 = vmatprep.mubr.bf16.mxu0 0
    %1438 = vmatmul.mubr.bf16.gmra.mrb[0].mxu0 %v849
    %v1439 = vpop.f32.mrb[0].mxu0
    %v1440 = vadd.f32 %v933, %v1439
    %v1441 = vpop.f32.mrb[0].mxu0
    %v1442 = vadd.f32 %v937, %v1441
    %v1443 = vpop.f32.mrb[0].mxu0
    %v1444 = vadd.f32 %v933, %v1443
    %v1445 = vpop.f32.mrb[0].mxu0
    %v1446 = vadd.f32 %v937, %v1445
    %1447 = vmatprep.mubr.bf16.mxu0 0
    %1448 = vmatmul.mubr.bf16.gmra.mrb[0].mxu0 %v850
    %v1449 = vpop.f32.mrb[0].mxu0
    %v1450 = vadd.f32 %v933, %v1449
    %v1451 = vpop.f32.mrb[0].mxu0
    %v1452 = vadd.f32 %v937, %v1451
    %v1453 = vpop.f32.mrb[0].mxu0
    %v1454 = vadd.f32 %v933, %v1453
    %v1455 = vpop.f32.mrb[0].mxu0
    %v1456 = vadd.f32 %v937, %v1455
    %1457 = vmatprep.mubr.bf16.mxu0 0
    %1458 = vmatmul.mubr.bf16.gmra.mrb[0].mxu0 %v851
    %v1459 = vpop.f32.mrb[0].mxu0
    %v1460 = vadd.f32 %v933, %v1459
    %v1461 = vpop.f32.mrb[0].mxu0
    %v1462 = vadd.f32 %v937, %v1461
    %v1463 = vpop.f32.mrb[0].mxu0
    %v1464 = vadd.f32 %v933, %v1463
    %v1465 = vpop.f32.mrb[0].mxu0
    %v1466 = vadd.f32 %v937, %v1465
    %1467 = vmatprep.mubr.bf16.mxu0 0
    %1468 = vmatmul.mubr.bf16.gmra.mrb[0].mxu0 %v852
    %v1469 = vpop.f32.mrb[0].mxu0
    %v1470 = vadd.f32 %v933, %v1469
    %v1471 = vpop.f32.mrb[0].mxu0
    %v1472 = vadd.f32 %v937, %v1471
    %v1473 = vpop.f32.mrb[0].mxu0
    %v1474 = vadd.f32 %v933, %v1473
    %v1475 = vpop.f32.mrb[0].mxu0
    %v1476 = vadd.f32 %v937, %v1475
    %1477 = vmatprep.mubr.bf16.mxu0 0
    %1478 = vmatmul.mubr.bf16.gmra.mrb[0].mxu0 %v853
    %v1479 = vpop.f32.mrb[0].mxu0
    %v1480 = vadd.f32 %v933, %v1479
    %v1481 = vpop.f32.mrb[0].mxu0
    %v1482 = vadd.f32 %v937, %v1481
    %v1483 = vpop.f32.mrb[0].mxu0
    %v1484 = vadd.f32 %v933, %v1483
    %v1485 = vpop.f32.mrb[0].mxu0
    %v1486 = vadd.f32 %v937, %v1485
    %1487 = vmatprep.mubr.bf16.mxu0 0
    %1488 = vmatmul.mubr.bf16.gmra.mrb[0].mxu0 %v854
    %v1489 = vpop.f32.mrb[0].mxu0
    %v1490 = vadd.f32 %v933, %v1489
    %v1491 = vpop.f32.mrb[0].mxu0
    %v1492 = vadd.f32 %v937, %v1491
    %v1493 = vpop.f32.mrb[0].mxu0
    %v1494 = vadd.f32 %v933, %v1493
    %v1495 = vpop.f32.mrb[0].mxu0
    %v1496 = vadd.f32 %v937, %v1495
    %1497 = vmatprep.mubr.bf16.mxu0 0
    %1498 = vmatmul.mubr.bf16.gmra.mrb[0].mxu0 %v855
    %v1499 = vpop.f32.mrb[0].mxu0
    %v1500 = vadd.f32 %v933, %v1499
    %v1501 = vpop.f32.mrb[0].mxu0
    %v1502 = vadd.f32 %v937, %v1501
    %v1503 = vpop.f32.mrb[0].mxu0
    %v1504 = vadd.f32 %v933, %v1503
    %v1505 = vpop.f32.mrb[0].mxu0
    %v1506 = vadd.f32 %v937, %v1505
    %1507 = vdwg.mxu0
    %1508 = vmatprep.subr.bf16.mxu0 %v1159
    %1509 = vmatpush1.bf16.msra.mxu0 %v1158
    %1510 = vmatprep.subr.bf16.mxu0 %v1167
    %1511 = vmatpush1.bf16.msra.mxu0 %v1166
    %1512 = vmatprep.subr.bf16.mxu0 %v1175
    %1513 = vmatpush1.bf16.msra.mxu0 %v1174
    %1514 = vmatprep.subr.bf16.mxu0 %v1183
    %1515 = vmatpush1.bf16.msra.mxu0 %v1182
    %1516 = vmatprep.subr.bf16.mxu0 %v1191
    %1517 = vmatpush1.bf16.msra.mxu0 %v1190
    %1518 = vmatprep.subr.bf16.mxu0 %v1199
    %1519 = vmatpush1.bf16.msra.mxu0 %v1198
    %1520 = vmatprep.subr.bf16.mxu0 %v1207
    %1521 = vmatpush1.bf16.msra.mxu0 %v1206
    %1522 = vmatprep.subr.bf16.mxu0 %v1215
    %1523 = vmatpush1.bf16.msra.mxu0 %v1214
    %1524 = vmatprep.subr.bf16.mxu0 0
    %1525 = vmatpush1.bf16.msra.mxu0 0
    %1526 = vmatprep.subr.bf16.mxu0 0
    %1527 = vmatpush1.bf16.msra.mxu0 0
    %1528 = vmatprep.subr.bf16.mxu0 0
    %1529 = vmatpush1.bf16.msra.mxu0 0
    %1530 = vmatprep.subr.bf16.mxu0 0
    %1531 = vmatpush1.bf16.msra.mxu0 0
    %1532 = vmatprep.subr.bf16.mxu0 0
    %1533 = vmatpush1.bf16.msra.mxu0 0
    %1534 = vmatprep.subr.bf16.mxu0 0
    %1535 = vmatpush1.bf16.msra.mxu0 0
    %1536 = vmatprep.subr.bf16.mxu0 0
    %1537 = vmatpush1.bf16.msra.mxu0 0
    %1538 = vmatprep.subr.bf16.mxu0 0
    %1539 = vmatpush1.bf16.msra.mxu0 0
    %1540 = vmatprep.mubr.bf16.mxu0 0
    %1541 = vmatmul.mubr.bf16.gmra.mrb[0].mxu0 %v848
    %v1542 = vpop.f32.mrb[0].mxu0
    %v1543 = vadd.f32 %v941, %v1542
    %v1544 = vpop.f32.mrb[0].mxu0
    %v1545 = vadd.f32 %v945, %v1544
    %v1546 = vpop.f32.mrb[0].mxu0
    %v1547 = vadd.f32 %v941, %v1546
    %v1548 = vpop.f32.mrb[0].mxu0
    %v1549 = vadd.f32 %v945, %v1548
    %1550 = vmatprep.mubr.bf16.mxu0 0
    %1551 = vmatmul.mubr.bf16.gmra.mrb[0].mxu0 %v849
    %v1552 = vpop.f32.mrb[0].mxu0
    %v1553 = vadd.f32 %v941, %v1552
    %v1554 = vpop.f32.mrb[0].mxu0
    %v1555 = vadd.f32 %v945, %v1554
    %v1556 = vpop.f32.mrb[0].mxu0
    %v1557 = vadd.f32 %v941, %v1556
    %v1558 = vpop.f32.mrb[0].mxu0
    %v1559 = vadd.f32 %v945, %v1558
    %1560 = vmatprep.mubr.bf16.mxu0 0
    %1561 = vmatmul.mubr.bf16.gmra.mrb[0].mxu0 %v850
    %v1562 = vpop.f32.mrb[0].mxu0
    %v1563 = vadd.f32 %v941, %v1562
    %v1564 = vpop.f32.mrb[0].mxu0
    %v1565 = vadd.f32 %v945, %v1564
    %v1566 = vpop.f32.mrb[0].mxu0
    %v1567 = vadd.f32 %v941, %v1566
    %v1568 = vpop.f32.mrb[0].mxu0
    %v1569 = vadd.f32 %v945, %v1568
    %1570 = vmatprep.mubr.bf16.mxu0 0
    %1571 = vmatmul.mubr.bf16.gmra.mrb[0].mxu0 %v851
    %v1572 = vpop.f32.mrb[0].mxu0
    %v1573 = vadd.f32 %v941, %v1572
    %v1574 = vpop.f32.mrb[0].mxu0
    %v1575 = vadd.f32 %v945, %v1574
    %v1576 = vpop.f32.mrb[0].mxu0
    %v1577 = vadd.f32 %v941, %v1576
    %v1578 = vpop.f32.mrb[0].mxu0
    %v1579 = vadd.f32 %v945, %v1578
    %1580 = vmatprep.mubr.bf16.mxu0 0
    %1581 = vmatmul.mubr.bf16.gmra.mrb[0].mxu0 %v852
    %v1582 = vpop.f32.mrb[0].mxu0
    %v1583 = vadd.f32 %v941, %v1582
    %v1584 = vpop.f32.mrb[0].mxu0
    %v1585 = vadd.f32 %v945, %v1584
    %v1586 = vpop.f32.mrb[0].mxu0
    %v1587 = vadd.f32 %v941, %v1586
    %v1588 = vpop.f32.mrb[0].mxu0
    %v1589 = vadd.f32 %v945, %v1588
    %1590 = vmatprep.mubr.bf16.mxu0 0
    %1591 = vmatmul.mubr.bf16.gmra.mrb[0].mxu0 %v853
    %v1592 = vpop.f32.mrb[0].mxu0
    %v1593 = vadd.f32 %v941, %v1592
    %v1594 = vpop.f32.mrb[0].mxu0
    %v1595 = vadd.f32 %v945, %v1594
    %v1596 = vpop.f32.mrb[0].mxu0
    %v1597 = vadd.f32 %v941, %v1596
    %v1598 = vpop.f32.mrb[0].mxu0
    %v1599 = vadd.f32 %v945, %v1598
    %1600 = vmatprep.mubr.bf16.mxu0 0
    %1601 = vmatmul.mubr.bf16.gmra.mrb[0].mxu0 %v854
    %v1602 = vpop.f32.mrb[0].mxu0
    %v1603 = vadd.f32 %v941, %v1602
    %v1604 = vpop.f32.mrb[0].mxu0
    %v1605 = vadd.f32 %v945, %v1604
    %v1606 = vpop.f32.mrb[0].mxu0
    %v1607 = vadd.f32 %v941, %v1606
    %v1608 = vpop.f32.mrb[0].mxu0
    %v1609 = vadd.f32 %v945, %v1608
    %1610 = vmatprep.mubr.bf16.mxu0 0
    %1611 = vmatmul.mubr.bf16.gmra.mrb[0].mxu0 %v855
    %v1612 = vpop.f32.mrb[0].mxu0
    %v1613 = vadd.f32 %v941, %v1612
    %v1614 = vpop.f32.mrb[0].mxu0
    %v1615 = vadd.f32 %v945, %v1614
    %v1616 = vpop.f32.mrb[0].mxu0
    %v1617 = vadd.f32 %v941, %v1616
    %v1618 = vpop.f32.mrb[0].mxu0
    %v1619 = vadd.f32 %v945, %v1618
    %1620 = vdwg.mxu0
    %1621 = vmatprep.subr.bf16.mxu0 %v1161
    %1622 = vmatpush1.bf16.msra.mxu0 %v1160
    %1623 = vmatprep.subr.bf16.mxu0 %v1169
    %1624 = vmatpush1.bf16.msra.mxu0 %v1168
    %1625 = vmatprep.subr.bf16.mxu0 %v1177
    %1626 = vmatpush1.bf16.msra.mxu0 %v1176
    %1627 = vmatprep.subr.bf16.mxu0 %v1185
    %1628 = vmatpush1.bf16.msra.mxu0 %v1184
    %1629 = vmatprep.subr.bf16.mxu0 %v1193
    %1630 = vmatpush1.bf16.msra.mxu0 %v1192
    %1631 = vmatprep.subr.bf16.mxu0 %v1201
    %1632 = vmatpush1.bf16.msra.mxu0 %v1200
    %1633 = vmatprep.subr.bf16.mxu0 %v1209
    %1634 = vmatpush1.bf16.msra.mxu0 %v1208
    %1635 = vmatprep.subr.bf16.mxu0 %v1217
    %1636 = vmatpush1.bf16.msra.mxu0 %v1216
    %1637 = vmatprep.subr.bf16.mxu0 0
    %1638 = vmatpush1.bf16.msra.mxu0 0
    %1639 = vmatprep.subr.bf16.mxu0 0
    %1640 = vmatpush1.bf16.msra.mxu0 0
    %1641 = vmatprep.subr.bf16.mxu0 0
    %1642 = vmatpush1.bf16.msra.mxu0 0
    %1643 = vmatprep.subr.bf16.mxu0 0
    %1644 = vmatpush1.bf16.msra.mxu0 0
    %1645 = vmatprep.subr.bf16.mxu0 0
    %1646 = vmatpush1.bf16.msra.mxu0 0
    %1647 = vmatprep.subr.bf16.mxu0 0
    %1648 = vmatpush1.bf16.msra.mxu0 0
    %1649 = vmatprep.subr.bf16.mxu0 0
    %1650 = vmatpush1.bf16.msra.mxu0 0
    %1651 = vmatprep.subr.bf16.mxu0 0
    %1652 = vmatpush1.bf16.msra.mxu0 0
    %1653 = vmatprep.mubr.bf16.mxu0 0
    %1654 = vmatmul.mubr.bf16.gmra.mrb[0].mxu0 %v848
    %v1655 = vpop.f32.mrb[0].mxu0
    %v1656 = vadd.f32 %v949, %v1655
    %v1657 = vpop.f32.mrb[0].mxu0
    %v1658 = vadd.f32 %v953, %v1657
    %v1659 = vpop.f32.mrb[0].mxu0
    %v1660 = vadd.f32 %v949, %v1659
    %v1661 = vpop.f32.mrb[0].mxu0
    %v1662 = vadd.f32 %v953, %v1661
    %1663 = vmatprep.mubr.bf16.mxu0 0
    %1664 = vmatmul.mubr.bf16.gmra.mrb[0].mxu0 %v849
    %v1665 = vpop.f32.mrb[0].mxu0
    %v1666 = vadd.f32 %v949, %v1665
    %v1667 = vpop.f32.mrb[0].mxu0
    %v1668 = vadd.f32 %v953, %v1667
    %v1669 = vpop.f32.mrb[0].mxu0
    %v1670 = vadd.f32 %v949, %v1669
    %v1671 = vpop.f32.mrb[0].mxu0
    %v1672 = vadd.f32 %v953, %v1671
    %1673 = vmatprep.mubr.bf16.mxu0 0
    %1674 = vmatmul.mubr.bf16.gmra.mrb[0].mxu0 %v850
    %v1675 = vpop.f32.mrb[0].mxu0
    %v1676 = vadd.f32 %v949, %v1675
    %v1677 = vpop.f32.mrb[0].mxu0
    %v1678 = vadd.f32 %v953, %v1677
    %v1679 = vpop.f32.mrb[0].mxu0
    %v1680 = vadd.f32 %v949, %v1679
    %v1681 = vpop.f32.mrb[0].mxu0
    %v1682 = vadd.f32 %v953, %v1681
    %1683 = vmatprep.mubr.bf16.mxu0 0
    %1684 = vmatmul.mubr.bf16.gmra.mrb[0].mxu0 %v851
    %v1685 = vpop.f32.mrb[0].mxu0
    %v1686 = vadd.f32 %v949, %v1685
    %v1687 = vpop.f32.mrb[0].mxu0
    %v1688 = vadd.f32 %v953, %v1687
    %v1689 = vpop.f32.mrb[0].mxu0
    %v1690 = vadd.f32 %v949, %v1689
    %v1691 = vpop.f32.mrb[0].mxu0
    %v1692 = vadd.f32 %v953, %v1691
    %1693 = vmatprep.mubr.bf16.mxu0 0
    %1694 = vmatmul.mubr.bf16.gmra.mrb[0].mxu0 %v852
    %v1695 = vpop.f32.mrb[0].mxu0
    %v1696 = vadd.f32 %v949, %v1695
    %v1697 = vpop.f32.mrb[0].mxu0
    %v1698 = vadd.f32 %v953, %v1697
    %v1699 = vpop.f32.mrb[0].mxu0
    %v1700 = vadd.f32 %v949, %v1699
    %v1701 = vpop.f32.mrb[0].mxu0
    %v1702 = vadd.f32 %v953, %v1701
    %1703 = vmatprep.mubr.bf16.mxu0 0
    %1704 = vmatmul.mubr.bf16.gmra.mrb[0].mxu0 %v853
    %v1705 = vpop.f32.mrb[0].mxu0
    %v1706 = vadd.f32 %v949, %v1705
    %v1707 = vpop.f32.mrb[0].mxu0
    %v1708 = vadd.f32 %v953, %v1707
    %v1709 = vpop.f32.mrb[0].mxu0
    %v1710 = vadd.f32 %v949, %v1709
    %v1711 = vpop.f32.mrb[0].mxu0
    %v1712 = vadd.f32 %v953, %v1711
    %1713 = vmatprep.mubr.bf16.mxu0 0
    %1714 = vmatmul.mubr.bf16.gmra.mrb[0].mxu0 %v854
    %v1715 = vpop.f32.mrb[0].mxu0
    %v1716 = vadd.f32 %v949, %v1715
    %v1717 = vpop.f32.mrb[0].mxu0
    %v1718 = vadd.f32 %v953, %v1717
    %v1719 = vpop.f32.mrb[0].mxu0
    %v1720 = vadd.f32 %v949, %v1719
    %v1721 = vpop.f32.mrb[0].mxu0
    %v1722 = vadd.f32 %v953, %v1721
    %1723 = vmatprep.mubr.bf16.mxu0 0
    %1724 = vmatmul.mubr.bf16.gmra.mrb[0].mxu0 %v855
    %v1725 = vpop.f32.mrb[0].mxu0
    %v1726 = vadd.f32 %v949, %v1725
    %v1727 = vpop.f32.mrb[0].mxu0
    %v1728 = vadd.f32 %v953, %v1727
    %v1729 = vpop.f32.mrb[0].mxu0
    %v1730 = vadd.f32 %v949, %v1729
    %v1731 = vpop.f32.mrb[0].mxu0
    %v1732 = vadd.f32 %v953, %v1731
    %1733 = vdwg.mxu0
    %v1734 = vmax.f32 %v1317, 0.0
    %v1735 = vmax.f32 %v1319, 0.0
    %v1736 = vmax.f32 %v1430, 0.0
    %v1737 = vmax.f32 %v1432, 0.0
    %v1738 = vmax.f32 %v1543, 0.0
    %v1739 = vmax.f32 %v1545, 0.0
    %v1740 = vmax.f32 %v1656, 0.0
    %v1741 = vmax.f32 %v1658, 0.0
    %v1742 = vmax.f32 %v1321, 0.0
    %v1743 = vmax.f32 %v1323, 0.0
    %v1744 = vmax.f32 %v1434, 0.0
    %v1745 = vmax.f32 %v1436, 0.0
    %v1746 = vmax.f32 %v1547, 0.0
    %v1747 = vmax.f32 %v1549, 0.0
    %v1748 = vmax.f32 %v1660, 0.0
    %v1749 = vmax.f32 %v1662, 0.0
    %v1750 = vmax.f32 %v1327, 0.0
    %v1751 = vmax.f32 %v1329, 0.0
    %v1752 = vmax.f32 %v1440, 0.0
    %v1753 = vmax.f32 %v1442, 0.0
    %v1754 = vmax.f32 %v1553, 0.0
    %v1755 = vmax.f32 %v1555, 0.0
    %v1756 = vmax.f32 %v1666, 0.0
    %v1757 = vmax.f32 %v1668, 0.0
    %v1758 = vmax.f32 %v1331, 0.0
    %v1759 = vmax.f32 %v1333, 0.0
    %v1760 = vmax.f32 %v1444, 0.0
    %v1761 = vmax.f32 %v1446, 0.0
    %v1762 = vmax.f32 %v1557, 0.0
    %v1763 = vmax.f32 %v1559, 0.0
    %v1764 = vmax.f32 %v1670, 0.0
    %v1765 = vmax.f32 %v1672, 0.0
    %v1766 = vmax.f32 %v1337, 0.0
    %v1767 = vmax.f32 %v1339, 0.0
    %v1768 = vmax.f32 %v1450, 0.0
    %v1769 = vmax.f32 %v1452, 0.0
    %v1770 = vmax.f32 %v1563, 0.0
    %v1771 = vmax.f32 %v1565, 0.0
    %v1772 = vmax.f32 %v1676, 0.0
    %v1773 = vmax.f32 %v1678, 0.0
    %v1774 = vmax.f32 %v1341, 0.0
    %v1775 = vmax.f32 %v1343, 0.0
    %v1776 = vmax.f32 %v1454, 0.0
    %v1777 = vmax.f32 %v1456, 0.0
    %v1778 = vmax.f32 %v1567, 0.0
    %v1779 = vmax.f32 %v1569, 0.0
    %v1780 = vmax.f32 %v1680, 0.0
    %v1781 = vmax.f32 %v1682, 0.0
    %v1782 = vmax.f32 %v1347, 0.0
    %v1783 = vmax.f32 %v1349, 0.0
    %v1784 = vmax.f32 %v1460, 0.0
    %v1785 = vmax.f32 %v1462, 0.0
    %v1786 = vmax.f32 %v1573, 0.0
    %v1787 = vmax.f32 %v1575, 0.0
    %v1788 = vmax.f32 %v1686, 0.0
    %v1789 = vmax.f32 %v1688, 0.0
    %v1790 = vmax.f32 %v1351, 0.0
    %v1791 = vmax.f32 %v1353, 0.0
    %v1792 = vmax.f32 %v1464, 0.0
    %v1793 = vmax.f32 %v1466, 0.0
    %v1794 = vmax.f32 %v1577, 0.0
    %v1795 = vmax.f32 %v1579, 0.0
    %v1796 = vmax.f32 %v1690, 0.0
    %v1797 = vmax.f32 %v1692, 0.0
    %v1798 = vmax.f32 %v1357, 0.0
    %v1799 = vmax.f32 %v1359, 0.0
    %v1800 = vmax.f32 %v1470, 0.0
    %v1801 = vmax.f32 %v1472, 0.0
    %v1802 = vmax.f32 %v1583, 0.0
    %v1803 = vmax.f32 %v1585, 0.0
    %v1804 = vmax.f32 %v1696, 0.0
    %v1805 = vmax.f32 %v1698, 0.0
    %v1806 = vmax.f32 %v1361, 0.0
    %v1807 = vmax.f32 %v1363, 0.0
    %v1808 = vmax.f32 %v1474, 0.0
    %v1809 = vmax.f32 %v1476, 0.0
    %v1810 = vmax.f32 %v1587, 0.0
    %v1811 = vmax.f32 %v1589, 0.0
    %v1812 = vmax.f32 %v1700, 0.0
    %v1813 = vmax.f32 %v1702, 0.0
    %v1814 = vmax.f32 %v1367, 0.0
    %v1815 = vmax.f32 %v1369, 0.0
    %v1816 = vmax.f32 %v1480, 0.0
    %v1817 = vmax.f32 %v1482, 0.0
    %v1818 = vmax.f32 %v1593, 0.0
    %v1819 = vmax.f32 %v1595, 0.0
    %v1820 = vmax.f32 %v1706, 0.0
    %v1821 = vmax.f32 %v1708, 0.0
    %v1822 = vmax.f32 %v1371, 0.0
    %v1823 = vmax.f32 %v1373, 0.0
    %v1824 = vmax.f32 %v1484, 0.0
    %v1825 = vmax.f32 %v1486, 0.0
    %v1826 = vmax.f32 %v1597, 0.0
    %v1827 = vmax.f32 %v1599, 0.0
    %v1828 = vmax.f32 %v1710, 0.0
    %v1829 = vmax.f32 %v1712, 0.0
    %v1830 = vmax.f32 %v1377, 0.0
    %v1831 = vmax.f32 %v1379, 0.0
    %v1832 = vmax.f32 %v1490, 0.0
    %v1833 = vmax.f32 %v1492, 0.0
    %v1834 = vmax.f32 %v1603, 0.0
    %v1835 = vmax.f32 %v1605, 0.0
    %v1836 = vmax.f32 %v1716, 0.0
    %v1837 = vmax.f32 %v1718, 0.0
    %v1838 = vmax.f32 %v1381, 0.0
    %v1839 = vmax.f32 %v1383, 0.0
    %v1840 = vmax.f32 %v1494, 0.0
    %v1841 = vmax.f32 %v1496, 0.0
    %v1842 = vmax.f32 %v1607, 0.0
    %v1843 = vmax.f32 %v1609, 0.0
    %v1844 = vmax.f32 %v1720, 0.0
    %v1845 = vmax.f32 %v1722, 0.0
    %v1846 = vmax.f32 %v1387, 0.0
    %v1847 = vmax.f32 %v1389, 0.0
    %v1848 = vmax.f32 %v1500, 0.0
    %v1849 = vmax.f32 %v1502, 0.0
    %v1850 = vmax.f32 %v1613, 0.0
    %v1851 = vmax.f32 %v1615, 0.0
    %v1852 = vmax.f32 %v1726, 0.0
    %v1853 = vmax.f32 %v1728, 0.0
    %v1854 = vmax.f32 %v1391, 0.0
    %v1855 = vmax.f32 %v1393, 0.0
    %v1856 = vmax.f32 %v1504, 0.0
    %v1857 = vmax.f32 %v1506, 0.0
    %v1858 = vmax.f32 %v1617, 0.0
    %v1859 = vmax.f32 %v1619, 0.0
    %v1860 = vmax.f32 %v1730, 0.0
    %v1861 = vmax.f32 %v1732, 0.0
    %v1862 = vmax.f32 %v1734, %v1742
    %v1863 = vmax.f32 %v1862, %v1750
    %v1864 = vmax.f32 %v1863, %v1758
    %v1865 = vmax.f32 %v1864, %v1766
    %v1866 = vmax.f32 %v1865, %v1774
    %v1867 = vmax.f32 %v1866, %v1782
    %v1868 = vmax.f32 %v1867, %v1790
    %v1869 = vrot.slane %v1868, 4
    %v1870 = vmax.f32 %v1868, %v1869
    %v1871 = vrot.slane %v1870, 2
    %v1872 = vmax.f32 %v1870, %v1871
    %v1873 = vrot.slane %v1872, 1
    %v1874 = vmax.f32 %v1872, %v1873
    %v1875 = vmax.f32 %v1735, %v1743
    %v1876 = vmax.f32 %v1875, %v1751
    %v1877 = vmax.f32 %v1876, %v1759
    %v1878 = vmax.f32 %v1877, %v1767
    %v1879 = vmax.f32 %v1878, %v1775
    %v1880 = vmax.f32 %v1879, %v1783
    %v1881 = vmax.f32 %v1880, %v1791
    %v1882 = vrot.slane %v1881, 4
    %v1883 = vmax.f32 %v1881, %v1882
    %v1884 = vrot.slane %v1883, 2
    %v1885 = vmax.f32 %v1883, %v1884
    %v1886 = vrot.slane %v1885, 1
    %v1887 = vmax.f32 %v1885, %v1886
    %v1888 = vmax.f32 %v1736, %v1744
    %v1889 = vmax.f32 %v1888, %v1752
    %v1890 = vmax.f32 %v1889, %v1760
    %v1891 = vmax.f32 %v1890, %v1768
    %v1892 = vmax.f32 %v1891, %v1776
    %v1893 = vmax.f32 %v1892, %v1784
    %v1894 = vmax.f32 %v1893, %v1792
    %v1895 = vrot.slane %v1894, 4
    %v1896 = vmax.f32 %v1894, %v1895
    %v1897 = vrot.slane %v1896, 2
    %v1898 = vmax.f32 %v1896, %v1897
    %v1899 = vrot.slane %v1898, 1
    %v1900 = vmax.f32 %v1898, %v1899
    %v1901 = vmax.f32 %v1737, %v1745
    %v1902 = vmax.f32 %v1901, %v1753
    %v1903 = vmax.f32 %v1902, %v1761
    %v1904 = vmax.f32 %v1903, %v1769
    %v1905 = vmax.f32 %v1904, %v1777
    %v1906 = vmax.f32 %v1905, %v1785
    %v1907 = vmax.f32 %v1906, %v1793
    %v1908 = vrot.slane %v1907, 4
    %v1909 = vmax.f32 %v1907, %v1908
    %v1910 = vrot.slane %v1909, 2
    %v1911 = vmax.f32 %v1909, %v1910
    %v1912 = vrot.slane %v1911, 1
    %v1913 = vmax.f32 %v1911, %v1912
    %v1914 = vmax.f32 %v1738, %v1746
    %v1915 = vmax.f32 %v1914, %v1754
    %v1916 = vmax.f32 %v1915, %v1762
    %v1917 = vmax.f32 %v1916, %v1770
    %v1918 = vmax.f32 %v1917, %v1778
    %v1919 = vmax.f32 %v1918, %v1786
    %v1920 = vmax.f32 %v1919, %v1794
    %v1921 = vrot.slane %v1920, 4
    %v1922 = vmax.f32 %v1920, %v1921
    %v1923 = vrot.slane %v1922, 2
    %v1924 = vmax.f32 %v1922, %v1923
    %v1925 = vrot.slane %v1924, 1
    %v1926 = vmax.f32 %v1924, %v1925
    %v1927 = vmax.f32 %v1739, %v1747
    %v1928 = vmax.f32 %v1927, %v1755
    %v1929 = vmax.f32 %v1928, %v1763
    %v1930 = vmax.f32 %v1929, %v1771
    %v1931 = vmax.f32 %v1930, %v1779
    %v1932 = vmax.f32 %v1931, %v1787
    %v1933 = vmax.f32 %v1932, %v1795
    %v1934 = vrot.slane %v1933, 4
    %v1935 = vmax.f32 %v1933, %v1934
    %v1936 = vrot.slane %v1935, 2
    %v1937 = vmax.f32 %v1935, %v1936
    %v1938 = vrot.slane %v1937, 1
    %v1939 = vmax.f32 %v1937, %v1938
    %v1940 = vmax.f32 %v1740, %v1748
    %v1941 = vmax.f32 %v1940, %v1756
    %v1942 = vmax.f32 %v1941, %v1764
    %v1943 = vmax.f32 %v1942, %v1772
    %v1944 = vmax.f32 %v1943, %v1780
    %v1945 = vmax.f32 %v1944, %v1788
    %v1946 = vmax.f32 %v1945, %v1796
    %v1947 = vrot.slane %v1946, 4
    %v1948 = vmax.f32 %v1946, %v1947
    %v1949 = vrot.slane %v1948, 2
    %v1950 = vmax.f32 %v1948, %v1949
    %v1951 = vrot.slane %v1950, 1
    %v1952 = vmax.f32 %v1950, %v1951
    %v1953 = vmax.f32 %v1741, %v1749
    %v1954 = vmax.f32 %v1953, %v1757
    %v1955 = vmax.f32 %v1954, %v1765
    %v1956 = vmax.f32 %v1955, %v1773
    %v1957 = vmax.f32 %v1956, %v1781
    %v1958 = vmax.f32 %v1957, %v1789
    %v1959 = vmax.f32 %v1958, %v1797
    %v1960 = vrot.slane %v1959, 4
    %v1961 = vmax.f32 %v1959, %v1960
    %v1962 = vrot.slane %v1961, 2
    %v1963 = vmax.f32 %v1961, %v1962
    %v1964 = vrot.slane %v1963, 1
    %v1965 = vmax.f32 %v1963, %v1964
    %v1966 = vmax.f32 %v1798, %v1806
    %v1967 = vmax.f32 %v1966, %v1814
    %v1968 = vmax.f32 %v1967, %v1822
    %v1969 = vmax.f32 %v1968, %v1830
    %v1970 = vmax.f32 %v1969, %v1838
    %v1971 = vmax.f32 %v1970, %v1846
    %v1972 = vmax.f32 %v1971, %v1854
    %v1973 = vrot.slane %v1972, 4
    %v1974 = vmax.f32 %v1972, %v1973
    %v1975 = vrot.slane %v1974, 2
    %v1976 = vmax.f32 %v1974, %v1975
    %v1977 = vrot.slane %v1976, 1
    %v1978 = vmax.f32 %v1976, %v1977
    %v1979 = vmax.f32 %v1799, %v1807
    %v1980 = vmax.f32 %v1979, %v1815
    %v1981 = vmax.f32 %v1980, %v1823
    %v1982 = vmax.f32 %v1981, %v1831
    %v1983 = vmax.f32 %v1982, %v1839
    %v1984 = vmax.f32 %v1983, %v1847
    %v1985 = vmax.f32 %v1984, %v1855
    %v1986 = vrot.slane %v1985, 4
    %v1987 = vmax.f32 %v1985, %v1986
    %v1988 = vrot.slane %v1987, 2
    %v1989 = vmax.f32 %v1987, %v1988
    %v1990 = vrot.slane %v1989, 1
    %v1991 = vmax.f32 %v1989, %v1990
    %v1992 = vmax.f32 %v1800, %v1808
    %v1993 = vmax.f32 %v1992, %v1816
    %v1994 = vmax.f32 %v1993, %v1824
    %v1995 = vmax.f32 %v1994, %v1832
    %v1996 = vmax.f32 %v1995, %v1840
    %v1997 = vmax.f32 %v1996, %v1848
    %v1998 = vmax.f32 %v1997, %v1856
    %v1999 = vrot.slane %v1998, 4
    %v2000 = vmax.f32 %v1998, %v1999
    %v2001 = vrot.slane %v2000, 2
    %v2002 = vmax.f32 %v2000, %v2001
    %v2003 = vrot.slane %v2002, 1
    %v2004 = vmax.f32 %v2002, %v2003
    %v2005 = vmax.f32 %v1801, %v1809
    %v2006 = vmax.f32 %v2005, %v1817
    %v2007 = vmax.f32 %v2006, %v1825
    %v2008 = vmax.f32 %v2007, %v1833
    %v2009 = vmax.f32 %v2008, %v1841
    %v2010 = vmax.f32 %v2009, %v1849
    %v2011 = vmax.f32 %v2010, %v1857
    %v2012 = vrot.slane %v2011, 4
    %v2013 = vmax.f32 %v2011, %v2012
    %v2014 = vrot.slane %v2013, 2
    %v2015 = vmax.f32 %v2013, %v2014
    %v2016 = vrot.slane %v2015, 1
    %v2017 = vmax.f32 %v2015, %v2016
    %v2018 = vmax.f32 %v1802, %v1810
    %v2019 = vmax.f32 %v2018, %v1818
    %v2020 = vmax.f32 %v2019, %v1826
    %v2021 = vmax.f32 %v2020, %v1834
    %v2022 = vmax.f32 %v2021, %v1842
    %v2023 = vmax.f32 %v2022, %v1850
    %v2024 = vmax.f32 %v2023, %v1858
    %v2025 = vrot.slane %v2024, 4
    %v2026 = vmax.f32 %v2024, %v2025
    %v2027 = vrot.slane %v2026, 2
    %v2028 = vmax.f32 %v2026, %v2027
    %v2029 = vrot.slane %v2028, 1
    %v2030 = vmax.f32 %v2028, %v2029
    %v2031 = vmax.f32 %v1803, %v1811
    %v2032 = vmax.f32 %v2031, %v1819
    %v2033 = vmax.f32 %v2032, %v1827
    %v2034 = vmax.f32 %v2033, %v1835
    %v2035 = vmax.f32 %v2034, %v1843
    %v2036 = vmax.f32 %v2035, %v1851
    %v2037 = vmax.f32 %v2036, %v1859
    %v2038 = vrot.slane %v2037, 4
    %v2039 = vmax.f32 %v2037, %v2038
    %v2040 = vrot.slane %v2039, 2
    %v2041 = vmax.f32 %v2039, %v2040
    %v2042 = vrot.slane %v2041, 1
    %v2043 = vmax.f32 %v2041, %v2042
    %v2044 = vmax.f32 %v1804, %v1812
    %v2045 = vmax.f32 %v2044, %v1820
    %v2046 = vmax.f32 %v2045, %v1828
    %v2047 = vmax.f32 %v2046, %v1836
    %v2048 = vmax.f32 %v2047, %v1844
    %v2049 = vmax.f32 %v2048, %v1852
    %v2050 = vmax.f32 %v2049, %v1860
    %v2051 = vrot.slane %v2050, 4
    %v2052 = vmax.f32 %v2050, %v2051
    %v2053 = vrot.slane %v2052, 2
    %v2054 = vmax.f32 %v2052, %v2053
    %v2055 = vrot.slane %v2054, 1
    %v2056 = vmax.f32 %v2054, %v2055
    %v2057 = vmax.f32 %v1805, %v1813
    %v2058 = vmax.f32 %v2057, %v1821
    %v2059 = vmax.f32 %v2058, %v1829
    %v2060 = vmax.f32 %v2059, %v1837
    %v2061 = vmax.f32 %v2060, %v1845
    %v2062 = vmax.f32 %v2061, %v1853
    %v2063 = vmax.f32 %v2062, %v1861
    %v2064 = vrot.slane %v2063, 4
    %v2065 = vmax.f32 %v2063, %v2064
    %v2066 = vrot.slane %v2065, 2
    %v2067 = vmax.f32 %v2065, %v2066
    %v2068 = vrot.slane %v2067, 1
    %v2069 = vmax.f32 %v2067, %v2068
    %vm2070 = vcmask 1040384
    %v2071 = vsel %vm2070, %v1874, %v1978
    %v2072 = vsel %vm2070, %v1887, %v1991
    %v2073 = vsel %vm2070, %v1900, %v2004
    %v2074 = vsel %vm2070, %v1913, %v2017
    %v2075 = vsel %vm2070, %v1926, %v2030
    %v2076 = vsel %vm2070, %v1939, %v2043
    %v2077 = vsel %vm2070, %v1952, %v2056
    %v2078 = vsel %vm2070, %v1965, %v2069
    %v2079 = vpack.c.bf16 %v2071, %v2071
    %v2080 = vpack.c.bf16 %v2072, %v2072
    %v2081 = vpack.c.bf16 %v2073, %v2073
    %v2082 = vpack.c.bf16 %v2074, %v2074
    %v2083 = vpack.c.bf16 %v2075, %v2075
    %v2084 = vpack.c.bf16 %v2076, %v2076
    %v2085 = vpack.c.bf16 %v2077, %v2077
    %v2086 = vpack.c.bf16 %v2078, %v2078
    %v2087 = vld [vmem:[#allocation5] sm:$0xff]
    %v2088 = vld [vmem:[#allocation5 + $0x8] sm:$0xff]
    %v2089 = vld [vmem:[#allocation5 + $0x10] sm:$0xff]
    %v2090 = vld [vmem:[#allocation5 + $0x18] sm:$0xff]
    %v2091 = vld [vmem:[#allocation5 + $0x20] sm:$0xff]
    %v2092 = vld [vmem:[#allocation5 + $0x28] sm:$0xff]
    %v2093 = vld [vmem:[#allocation5 + $0x30] sm:$0xff]
    %v2094 = vld [vmem:[#allocation5 + $0x38] sm:$0xff]
    %v2095 = vld [vmem:[#allocation5 + $0x40] sm:$0xff]
    %v2096 = vld [vmem:[#allocation5 + $0x48] sm:$0xff]
    %v2097 = vld [vmem:[#allocation5 + $0x50] sm:$0xff]
    %v2098 = vld [vmem:[#allocation5 + $0x58] sm:$0xff]
    %v2099 = vld [vmem:[#allocation5 + $0x60] sm:$0xff]
    %v2100 = vld [vmem:[#allocation5 + $0x68] sm:$0xff]
    %v2101 = vld [vmem:[#allocation5 + $0x70] sm:$0xff]
    %v2102 = vld [vmem:[#allocation5 + $0x78] sm:$0xff]
    %v2103 = vld [vmem:[#allocation5 + $0x80] sm:$0xff]
    %v2104 = vld [vmem:[#allocation5 + $0x88] sm:$0xff]
    %v2105 = vld [vmem:[#allocation5 + $0x90] sm:$0xff]
    %v2106 = vld [vmem:[#allocation5 + $0x98] sm:$0xff]
    %v2107 = vld [vmem:[#allocation5 + $0xa0] sm:$0xff]
    %v2108 = vld [vmem:[#allocation5 + $0xa8] sm:$0xff]
    %v2109 = vld [vmem:[#allocation5 + $0xb0] sm:$0xff]
    %v2110 = vld [vmem:[#allocation5 + $0xb8] sm:$0xff]
    %v2111 = vld [vmem:[#allocation5 + $0xc0] sm:$0xff]
    %v2112 = vld [vmem:[#allocation5 + $0xc8] sm:$0xff]
    %v2113 = vld [vmem:[#allocation5 + $0xd0] sm:$0xff]
    %v2114 = vld [vmem:[#allocation5 + $0xd8] sm:$0xff]
    %v2115 = vld [vmem:[#allocation5 + $0xe0] sm:$0xff]
    %v2116 = vld [vmem:[#allocation5 + $0xe8] sm:$0xff]
    %v2117 = vld [vmem:[#allocation5 + $0xf0] sm:$0xff]
    %v2118 = vld [vmem:[#allocation5 + $0xf8] sm:$0xff]
    %v2119 = vld [vmem:[#allocation5 + $0x100] sm:$0xff]
    %v2120 = vld [vmem:[#allocation5 + $0x108] sm:$0xff]
    %v2121 = vld [vmem:[#allocation5 + $0x110] sm:$0xff]
    %v2122 = vld [vmem:[#allocation5 + $0x118] sm:$0xff]
    %v2123 = vld [vmem:[#allocation5 + $0x120] sm:$0xff]
    %v2124 = vld [vmem:[#allocation5 + $0x128] sm:$0xff]
    %v2125 = vld [vmem:[#allocation5 + $0x130] sm:$0xff]
    %v2126 = vld [vmem:[#allocation5 + $0x138] sm:$0xff]
    %v2127 = vld [vmem:[#allocation5 + $0x140] sm:$0xff]
    %v2128 = vld [vmem:[#allocation5 + $0x148] sm:$0xff]
    %v2129 = vld [vmem:[#allocation5 + $0x150] sm:$0xff]
    %v2130 = vld [vmem:[#allocation5 + $0x158] sm:$0xff]
    %v2131 = vld [vmem:[#allocation5 + $0x160] sm:$0xff]
    %v2132 = vld [vmem:[#allocation5 + $0x168] sm:$0xff]
    %v2133 = vld [vmem:[#allocation5 + $0x170] sm:$0xff]
    %v2134 = vld [vmem:[#allocation5 + $0x178] sm:$0xff]
    %v2135 = vld [vmem:[#allocation5 + $0x180] sm:$0xff]
    %v2136 = vld [vmem:[#allocation5 + $0x188] sm:$0xff]
    %v2137 = vld [vmem:[#allocation5 + $0x190] sm:$0xff]
    %v2138 = vld [vmem:[#allocation5 + $0x198] sm:$0xff]
    %v2139 = vld [vmem:[#allocation5 + $0x1a0] sm:$0xff]
    %v2140 = vld [vmem:[#allocation5 + $0x1a8] sm:$0xff]
    %v2141 = vld [vmem:[#allocation5 + $0x1b0] sm:$0xff]
    %v2142 = vld [vmem:[#allocation5 + $0x1b8] sm:$0xff]
    %v2143 = vld [vmem:[#allocation5 + $0x1c0] sm:$0xff]
    %v2144 = vld [vmem:[#allocation5 + $0x1c8] sm:$0xff]
    %v2145 = vld [vmem:[#allocation5 + $0x1d0] sm:$0xff]
    %v2146 = vld [vmem:[#allocation5 + $0x1d8] sm:$0xff]
    %v2147 = vld [vmem:[#allocation5 + $0x1e0] sm:$0xff]
    %v2148 = vld [vmem:[#allocation5 + $0x1e8] sm:$0xff]
    %v2149 = vld [vmem:[#allocation5 + $0x1f0] sm:$0xff]
    %v2150 = vld [vmem:[#allocation5 + $0x1f8] sm:$0xff]
    %v2151 = vld [vmem:[#allocation5 + $0x200] sm:$0xff]
    %v2152 = vld [vmem:[#allocation5 + $0x208] sm:$0xff]
    %v2153 = vld [vmem:[#allocation5 + $0x210] sm:$0xff]
    %v2154 = vld [vmem:[#allocation5 + $0x218] sm:$0xff]
    %v2155 = vld [vmem:[#allocation5 + $0x220] sm:$0xff]
    %v2156 = vld [vmem:[#allocation5 + $0x228] sm:$0xff]
    %v2157 = vld [vmem:[#allocation5 + $0x230] sm:$0xff]
    %v2158 = vld [vmem:[#allocation5 + $0x238] sm:$0xff]
    %v2159 = vld [vmem:[#allocation5 + $0x240] sm:$0xff]
    %v2160 = vld [vmem:[#allocation5 + $0x248] sm:$0xff]
    %v2161 = vld [vmem:[#allocation5 + $0x250] sm:$0xff]
    %v2162 = vld [vmem:[#allocation5 + $0x258] sm:$0xff]
    %v2163 = vld [vmem:[#allocation5 + $0x260] sm:$0xff]
    %v2164 = vld [vmem:[#allocation5 + $0x268] sm:$0xff]
    %v2165 = vld [vmem:[#allocation5 + $0x270] sm:$0xff]
    %v2166 = vld [vmem:[#allocation5 + $0x278] sm:$0xff]
    %v2167 = vld [vmem:[#allocation5 + $0x280] sm:$0xff]
    %v2168 = vld [vmem:[#allocation5 + $0x288] sm:$0xff]
    %v2169 = vld [vmem:[#allocation5 + $0x290] sm:$0xff]
    %v2170 = vld [vmem:[#allocation5 + $0x298] sm:$0xff]
    %v2171 = vld [vmem:[#allocation5 + $0x2a0] sm:$0xff]
    %v2172 = vld [vmem:[#allocation5 + $0x2a8] sm:$0xff]
    %v2173 = vld [vmem:[#allocation5 + $0x2b0] sm:$0xff]
    %v2174 = vld [vmem:[#allocation5 + $0x2b8] sm:$0xff]
    %v2175 = vld [vmem:[#allocation5 + $0x2c0] sm:$0xff]
    %v2176 = vld [vmem:[#allocation5 + $0x2c8] sm:$0xff]
    %v2177 = vld [vmem:[#allocation5 + $0x2d0] sm:$0xff]
    %v2178 = vld [vmem:[#allocation5 + $0x2d8] sm:$0xff]
    %v2179 = vld [vmem:[#allocation5 + $0x2e0] sm:$0xff]
    %v2180 = vld [vmem:[#allocation5 + $0x2e8] sm:$0xff]
    %v2181 = vld [vmem:[#allocation5 + $0x2f0] sm:$0xff]
    %v2182 = vld [vmem:[#allocation5 + $0x2f8] sm:$0xff]
    %v2183 = vld [vmem:[#allocation5 + $0x300] sm:$0xff]
    %v2184 = vld [vmem:[#allocation5 + $0x308] sm:$0xff]
    %v2185 = vld [vmem:[#allocation5 + $0x310] sm:$0xff]
    %v2186 = vld [vmem:[#allocation5 + $0x318] sm:$0xff]
    %v2187 = vld [vmem:[#allocation5 + $0x320] sm:$0xff]
    %v2188 = vld [vmem:[#allocation5 + $0x328] sm:$0xff]
    %v2189 = vld [vmem:[#allocation5 + $0x330] sm:$0xff]
    %v2190 = vld [vmem:[#allocation5 + $0x338] sm:$0xff]
    %v2191 = vld [vmem:[#allocation5 + $0x340] sm:$0xff]
    %v2192 = vld [vmem:[#allocation5 + $0x348] sm:$0xff]
    %v2193 = vld [vmem:[#allocation5 + $0x350] sm:$0xff]
    %v2194 = vld [vmem:[#allocation5 + $0x358] sm:$0xff]
    %v2195 = vld [vmem:[#allocation5 + $0x360] sm:$0xff]
    %v2196 = vld [vmem:[#allocation5 + $0x368] sm:$0xff]
    %v2197 = vld [vmem:[#allocation5 + $0x370] sm:$0xff]
    %v2198 = vld [vmem:[#allocation5 + $0x378] sm:$0xff]
    %v2199 = vld [vmem:[#allocation5 + $0x380] sm:$0xff]
    %v2200 = vld [vmem:[#allocation5 + $0x388] sm:$0xff]
    %v2201 = vld [vmem:[#allocation5 + $0x390] sm:$0xff]
    %v2202 = vld [vmem:[#allocation5 + $0x398] sm:$0xff]
    %v2203 = vld [vmem:[#allocation5 + $0x3a0] sm:$0xff]
    %v2204 = vld [vmem:[#allocation5 + $0x3a8] sm:$0xff]
    %v2205 = vld [vmem:[#allocation5 + $0x3b0] sm:$0xff]
    %v2206 = vld [vmem:[#allocation5 + $0x3b8] sm:$0xff]
    %v2207 = vld [vmem:[#allocation5 + $0x3c0] sm:$0xff]
    %v2208 = vld [vmem:[#allocation5 + $0x3c8] sm:$0xff]
    %v2209 = vld [vmem:[#allocation5 + $0x3d0] sm:$0xff]
    %v2210 = vld [vmem:[#allocation5 + $0x3d8] sm:$0xff]
    %v2211 = vld [vmem:[#allocation5 + $0x3e0] sm:$0xff]
    %v2212 = vld [vmem:[#allocation5 + $0x3e8] sm:$0xff]
    %v2213 = vld [vmem:[#allocation5 + $0x3f0] sm:$0xff]
    %v2214 = vld [vmem:[#allocation5 + $0x3f8] sm:$0xff]
    %v2215 = vld [vmem:[#allocation5 + $0x400] sm:$0xff]
    %v2216 = vld [vmem:[#allocation5 + $0x408] sm:$0xff]
    %v2217 = vld [vmem:[#allocation5 + $0x410] sm:$0xff]
    %v2218 = vld [vmem:[#allocation5 + $0x418] sm:$0xff]
    %v2219 = vld [vmem:[#allocation5 + $0x420] sm:$0xff]
    %v2220 = vld [vmem:[#allocation5 + $0x428] sm:$0xff]
    %v2221 = vld [vmem:[#allocation5 + $0x430] sm:$0xff]
    %v2222 = vld [vmem:[#allocation5 + $0x438] sm:$0xff]
    %v2223 = vld [vmem:[#allocation5 + $0x440] sm:$0xff]
    %v2224 = vld [vmem:[#allocation5 + $0x448] sm:$0xff]
    %v2225 = vld [vmem:[#allocation5 + $0x450] sm:$0xff]
    %v2226 = vld [vmem:[#allocation5 + $0x458] sm:$0xff]
    %v2227 = vld [vmem:[#allocation5 + $0x460] sm:$0xff]
    %v2228 = vld [vmem:[#allocation5 + $0x468] sm:$0xff]
    %v2229 = vld [vmem:[#allocation5 + $0x470] sm:$0xff]
    %v2230 = vld [vmem:[#allocation5 + $0x478] sm:$0xff]
    %v2231 = vld [vmem:[#allocation5 + $0x480] sm:$0xff]
    %v2232 = vld [vmem:[#allocation5 + $0x488] sm:$0xff]
    %v2233 = vld [vmem:[#allocation5 + $0x490] sm:$0xff]
    %v2234 = vld [vmem:[#allocation5 + $0x498] sm:$0xff]
    %v2235 = vld [vmem:[#allocation5 + $0x4a0] sm:$0xff]
    %v2236 = vld [vmem:[#allocation5 + $0x4a8] sm:$0xff]
    %v2237 = vld [vmem:[#allocation5 + $0x4b0] sm:$0xff]
    %v2238 = vld [vmem:[#allocation5 + $0x4b8] sm:$0xff]
    %v2239 = vld [vmem:[#allocation5 + $0x4c0] sm:$0xff]
    %v2240 = vld [vmem:[#allocation5 + $0x4c8] sm:$0xff]
    %v2241 = vld [vmem:[#allocation5 + $0x4d0] sm:$0xff]
    %v2242 = vld [vmem:[#allocation5 + $0x4d8] sm:$0xff]
    %v2243 = vld [vmem:[#allocation5 + $0x4e0] sm:$0xff]
    %v2244 = vld [vmem:[#allocation5 + $0x4e8] sm:$0xff]
    %v2245 = vld [vmem:[#allocation5 + $0x4f0] sm:$0xff]
    %v2246 = vld [vmem:[#allocation5 + $0x4f8] sm:$0xff]
    %v2247 = vld [vmem:[#allocation5 + $0x500] sm:$0xff]
    %v2248 = vld [vmem:[#allocation5 + $0x508] sm:$0xff]
    %v2249 = vld [vmem:[#allocation5 + $0x510] sm:$0xff]
    %v2250 = vld [vmem:[#allocation5 + $0x518] sm:$0xff]
    %v2251 = vld [vmem:[#allocation5 + $0x520] sm:$0xff]
    %v2252 = vld [vmem:[#allocation5 + $0x528] sm:$0xff]
    %v2253 = vld [vmem:[#allocation5 + $0x530] sm:$0xff]
    %v2254 = vld [vmem:[#allocation5 + $0x538] sm:$0xff]
    %v2255 = vld [vmem:[#allocation5 + $0x540] sm:$0xff]
    %v2256 = vld [vmem:[#allocation5 + $0x548] sm:$0xff]
    %v2257 = vld [vmem:[#allocation5 + $0x550] sm:$0xff]
    %v2258 = vld [vmem:[#allocation5 + $0x558] sm:$0xff]
    %v2259 = vld [vmem:[#allocation5 + $0x560] sm:$0xff]
    %v2260 = vld [vmem:[#allocation5 + $0x568] sm:$0xff]
    %v2261 = vld [vmem:[#allocation5 + $0x570] sm:$0xff]
    %v2262 = vld [vmem:[#allocation5 + $0x578] sm:$0xff]
    %v2263 = vld [vmem:[#allocation5 + $0x580] sm:$0xff]
    %v2264 = vld [vmem:[#allocation5 + $0x588] sm:$0xff]
    %v2265 = vld [vmem:[#allocation5 + $0x590] sm:$0xff]
    %v2266 = vld [vmem:[#allocation5 + $0x598] sm:$0xff]
    %v2267 = vld [vmem:[#allocation5 + $0x5a0] sm:$0xff]
    %v2268 = vld [vmem:[#allocation5 + $0x5a8] sm:$0xff]
    %v2269 = vld [vmem:[#allocation5 + $0x5b0] sm:$0xff]
    %v2270 = vld [vmem:[#allocation5 + $0x5b8] sm:$0xff]
    %v2271 = vld [vmem:[#allocation5 + $0x5c0] sm:$0xff]
    %v2272 = vld [vmem:[#allocation5 + $0x5c8] sm:$0xff]
    %v2273 = vld [vmem:[#allocation5 + $0x5d0] sm:$0xff]
    %v2274 = vld [vmem:[#allocation5 + $0x5d8] sm:$0xff]
    %v2275 = vld [vmem:[#allocation5 + $0x5e0] sm:$0xff]
    %v2276 = vld [vmem:[#allocation5 + $0x5e8] sm:$0xff]
    %v2277 = vld [vmem:[#allocation5 + $0x5f0] sm:$0xff]
    %v2278 = vld [vmem:[#allocation5 + $0x5f8] sm:$0xff]
    %v2279 = vld [vmem:[#allocation5 + $0x600] sm:$0xff]
    %v2280 = vld [vmem:[#allocation5 + $0x608] sm:$0xff]
    %v2281 = vld [vmem:[#allocation5 + $0x610] sm:$0xff]
    %v2282 = vld [vmem:[#allocation5 + $0x618] sm:$0xff]
    %v2283 = vld [vmem:[#allocation5 + $0x620] sm:$0xff]
    %v2284 = vld [vmem:[#allocation5 + $0x628] sm:$0xff]
    %v2285 = vld [vmem:[#allocation5 + $0x630] sm:$0xff]
    %v2286 = vld [vmem:[#allocation5 + $0x638] sm:$0xff]
    %v2287 = vld [vmem:[#allocation5 + $0x640] sm:$0xff]
    %v2288 = vld [vmem:[#allocation5 + $0x648] sm:$0xff]
    %v2289 = vld [vmem:[#allocation5 + $0x650] sm:$0xff]
    %v2290 = vld [vmem:[#allocation5 + $0x658] sm:$0xff]
    %v2291 = vld [vmem:[#allocation5 + $0x660] sm:$0xff]
    %v2292 = vld [vmem:[#allocation5 + $0x668] sm:$0xff]
    %v2293 = vld [vmem:[#allocation5 + $0x670] sm:$0xff]
    %v2294 = vld [vmem:[#allocation5 + $0x678] sm:$0xff]
    %v2295 = vld [vmem:[#allocation5 + $0x680] sm:$0xff]
    %v2296 = vld [vmem:[#allocation5 + $0x688] sm:$0xff]
    %v2297 = vld [vmem:[#allocation5 + $0x690] sm:$0xff]
    %v2298 = vld [vmem:[#allocation5 + $0x698] sm:$0xff]
    %v2299 = vld [vmem:[#allocation5 + $0x6a0] sm:$0xff]
    %v2300 = vld [vmem:[#allocation5 + $0x6a8] sm:$0xff]
    %v2301 = vld [vmem:[#allocation5 + $0x6b0] sm:$0xff]
    %v2302 = vld [vmem:[#allocation5 + $0x6b8] sm:$0xff]
    %v2303 = vld [vmem:[#allocation5 + $0x6c0] sm:$0xff]
    %v2304 = vld [vmem:[#allocation5 + $0x6c8] sm:$0xff]
    %v2305 = vld [vmem:[#allocation5 + $0x6d0] sm:$0xff]
    %v2306 = vld [vmem:[#allocation5 + $0x6d8] sm:$0xff]
    %v2307 = vld [vmem:[#allocation5 + $0x6e0] sm:$0xff]
    %v2308 = vld [vmem:[#allocation5 + $0x6e8] sm:$0xff]
    %v2309 = vld [vmem:[#allocation5 + $0x6f0] sm:$0xff]
    %v2310 = vld [vmem:[#allocation5 + $0x6f8] sm:$0xff]
    %v2311 = vld [vmem:[#allocation5 + $0x700] sm:$0xff]
    %v2312 = vld [vmem:[#allocation5 + $0x708] sm:$0xff]
    %v2313 = vld [vmem:[#allocation5 + $0x710] sm:$0xff]
    %v2314 = vld [vmem:[#allocation5 + $0x718] sm:$0xff]
    %v2315 = vld [vmem:[#allocation5 + $0x720] sm:$0xff]
    %v2316 = vld [vmem:[#allocation5 + $0x728] sm:$0xff]
    %v2317 = vld [vmem:[#allocation5 + $0x730] sm:$0xff]
    %v2318 = vld [vmem:[#allocation5 + $0x738] sm:$0xff]
    %v2319 = vld [vmem:[#allocation5 + $0x740] sm:$0xff]
    %v2320 = vld [vmem:[#allocation5 + $0x748] sm:$0xff]
    %v2321 = vld [vmem:[#allocation5 + $0x750] sm:$0xff]
    %v2322 = vld [vmem:[#allocation5 + $0x758] sm:$0xff]
    %v2323 = vld [vmem:[#allocation5 + $0x760] sm:$0xff]
    %v2324 = vld [vmem:[#allocation5 + $0x768] sm:$0xff]
    %v2325 = vld [vmem:[#allocation5 + $0x770] sm:$0xff]
    %v2326 = vld [vmem:[#allocation5 + $0x778] sm:$0xff]
    %v2327 = vld [vmem:[#allocation5 + $0x780] sm:$0xff]
    %v2328 = vld [vmem:[#allocation5 + $0x788] sm:$0xff]
    %v2329 = vld [vmem:[#allocation5 + $0x790] sm:$0xff]
    %v2330 = vld [vmem:[#allocation5 + $0x798] sm:$0xff]
    %v2331 = vld [vmem:[#allocation5 + $0x7a0] sm:$0xff]
    %v2332 = vld [vmem:[#allocation5 + $0x7a8] sm:$0xff]
    %v2333 = vld [vmem:[#allocation5 + $0x7b0] sm:$0xff]
    %v2334 = vld [vmem:[#allocation5 + $0x7b8] sm:$0xff]
    %v2335 = vld [vmem:[#allocation5 + $0x7c0] sm:$0xff]
    %v2336 = vld [vmem:[#allocation5 + $0x7c8] sm:$0xff]
    %v2337 = vld [vmem:[#allocation5 + $0x7d0] sm:$0xff]
    %v2338 = vld [vmem:[#allocation5 + $0x7d8] sm:$0xff]
    %v2339 = vld [vmem:[#allocation5 + $0x7e0] sm:$0xff]
    %v2340 = vld [vmem:[#allocation5 + $0x7e8] sm:$0xff]
    %v2341 = vld [vmem:[#allocation5 + $0x7f0] sm:$0xff]
    %v2342 = vld [vmem:[#allocation5 + $0x7f8] sm:$0xff]
    %v2343 = vld [vmem:[%s6] sm:$0xf]
    %v2345 = vlaneseq
    %v2346 = vshrl.u32 %v2345, 7
    %v2347 = vsub.s32 0, %v2346
    %v2348 = vrot.slane %v2343, %v2347
    %v2349 = vlaneseq
    %v2350 = vshrl.u32 %v2349, 7
    %v2351 = vsub.s32 1, %v2350
    %v2352 = vrot.slane %v2343, %v2351
    %v2353 = vlaneseq
    %v2354 = vshrl.u32 %v2353, 7
    %v2355 = vsub.s32 2, %v2354
    %v2356 = vrot.slane %v2343, %v2355
    %v2357 = vlaneseq
    %v2358 = vshrl.u32 %v2357, 7
    %v2359 = vsub.s32 3, %v2358
    %v2360 = vrot.slane %v2343, %v2359
    %v2621 = vunpack.c.l.b16 %v2087
    %v2622 = vunpack.c.h.b16 %v2087
    %v2623 = vunpack.c.l.b16 %v2088
    %v2624 = vunpack.c.h.b16 %v2088
    %v2625 = vunpack.c.l.b16 %v2089
    %v2626 = vunpack.c.h.b16 %v2089
    %v2627 = vunpack.c.l.b16 %v2090
    %v2628 = vunpack.c.h.b16 %v2090
    %v2629 = vunpack.c.l.b16 %v2091
    %v2630 = vunpack.c.h.b16 %v2091
    %v2631 = vunpack.c.l.b16 %v2092
    %v2632 = vunpack.c.h.b16 %v2092
    %v2633 = vunpack.c.l.b16 %v2093
    %v2634 = vunpack.c.h.b16 %v2093
    %v2635 = vunpack.c.l.b16 %v2094
    %v2636 = vunpack.c.h.b16 %v2094
    %v2637 = vunpack.c.l.b16 %v2095
    %v2638 = vunpack.c.h.b16 %v2095
    %v2639 = vunpack.c.l.b16 %v2096
    %v2640 = vunpack.c.h.b16 %v2096
    %v2641 = vunpack.c.l.b16 %v2097
    %v2642 = vunpack.c.h.b16 %v2097
    %v2643 = vunpack.c.l.b16 %v2098
    %v2644 = vunpack.c.h.b16 %v2098
    %v2645 = vunpack.c.l.b16 %v2099
    %v2646 = vunpack.c.h.b16 %v2099
    %v2647 = vunpack.c.l.b16 %v2100
    %v2648 = vunpack.c.h.b16 %v2100
    %v2649 = vunpack.c.l.b16 %v2101
    %v2650 = vunpack.c.h.b16 %v2101
    %v2651 = vunpack.c.l.b16 %v2102
    %v2652 = vunpack.c.h.b16 %v2102
    %v2653 = vunpack.c.l.b16 %v2103
    %v2654 = vunpack.c.h.b16 %v2103
    %v2655 = vunpack.c.l.b16 %v2104
    %v2656 = vunpack.c.h.b16 %v2104
    %v2657 = vunpack.c.l.b16 %v2105
    %v2658 = vunpack.c.h.b16 %v2105
    %v2659 = vunpack.c.l.b16 %v2106
    %v2660 = vunpack.c.h.b16 %v2106
    %v2661 = vunpack.c.l.b16 %v2107
    %v2662 = vunpack.c.h.b16 %v2107
    %v2663 = vunpack.c.l.b16 %v2108
    %v2664 = vunpack.c.h.b16 %v2108
    %v2665 = vunpack.c.l.b16 %v2109
    %v2666 = vunpack.c.h.b16 %v2109
    %v2667 = vunpack.c.l.b16 %v2110
    %v2668 = vunpack.c.h.b16 %v2110
    %v2669 = vunpack.c.l.b16 %v2111
    %v2670 = vunpack.c.h.b16 %v2111
    %v2671 = vunpack.c.l.b16 %v2112
    %v2672 = vunpack.c.h.b16 %v2112
    %v2673 = vunpack.c.l.b16 %v2113
    %v2674 = vunpack.c.h.b16 %v2113
    %v2675 = vunpack.c.l.b16 %v2114
    %v2676 = vunpack.c.h.b16 %v2114
    %v2677 = vunpack.c.l.b16 %v2115
    %v2678 = vunpack.c.h.b16 %v2115
    %v2679 = vunpack.c.l.b16 %v2116
    %v2680 = vunpack.c.h.b16 %v2116
    %v2681 = vunpack.c.l.b16 %v2117
    %v2682 = vunpack.c.h.b16 %v2117
    %v2683 = vunpack.c.l.b16 %v2118
    %v2684 = vunpack.c.h.b16 %v2118
    %v2685 = vunpack.c.l.b16 %v2119
    %v2686 = vunpack.c.h.b16 %v2119
    %v2687 = vunpack.c.l.b16 %v2120
    %v2688 = vunpack.c.h.b16 %v2120
    %v2689 = vunpack.c.l.b16 %v2121
    %v2690 = vunpack.c.h.b16 %v2121
    %v2691 = vunpack.c.l.b16 %v2122
    %v2692 = vunpack.c.h.b16 %v2122
    %v2693 = vunpack.c.l.b16 %v2123
    %v2694 = vunpack.c.h.b16 %v2123
    %v2695 = vunpack.c.l.b16 %v2124
    %v2696 = vunpack.c.h.b16 %v2124
    %v2697 = vunpack.c.l.b16 %v2125
    %v2698 = vunpack.c.h.b16 %v2125
    %v2699 = vunpack.c.l.b16 %v2126
    %v2700 = vunpack.c.h.b16 %v2126
    %v2701 = vunpack.c.l.b16 %v2127
    %v2702 = vunpack.c.h.b16 %v2127
    %v2703 = vunpack.c.l.b16 %v2128
    %v2704 = vunpack.c.h.b16 %v2128
    %v2705 = vunpack.c.l.b16 %v2129
    %v2706 = vunpack.c.h.b16 %v2129
    %v2707 = vunpack.c.l.b16 %v2130
    %v2708 = vunpack.c.h.b16 %v2130
    %v2709 = vunpack.c.l.b16 %v2131
    %v2710 = vunpack.c.h.b16 %v2131
    %v2711 = vunpack.c.l.b16 %v2132
    %v2712 = vunpack.c.h.b16 %v2132
    %v2713 = vunpack.c.l.b16 %v2133
    %v2714 = vunpack.c.h.b16 %v2133
    %v2715 = vunpack.c.l.b16 %v2134
    %v2716 = vunpack.c.h.b16 %v2134
    %v2717 = vunpack.c.l.b16 %v2135
    %v2718 = vunpack.c.h.b16 %v2135
    %v2719 = vunpack.c.l.b16 %v2136
    %v2720 = vunpack.c.h.b16 %v2136
    %v2721 = vunpack.c.l.b16 %v2137
    %v2722 = vunpack.c.h.b16 %v2137
    %v2723 = vunpack.c.l.b16 %v2138
    %v2724 = vunpack.c.h.b16 %v2138
    %v2725 = vunpack.c.l.b16 %v2139
    %v2726 = vunpack.c.h.b16 %v2139
    %v2727 = vunpack.c.l.b16 %v2140
    %v2728 = vunpack.c.h.b16 %v2140
    %v2729 = vunpack.c.l.b16 %v2141
    %v2730 = vunpack.c.h.b16 %v2141
    %v2731 = vunpack.c.l.b16 %v2142
    %v2732 = vunpack.c.h.b16 %v2142
    %v2733 = vunpack.c.l.b16 %v2143
    %v2734 = vunpack.c.h.b16 %v2143
    %v2735 = vunpack.c.l.b16 %v2144
    %v2736 = vunpack.c.h.b16 %v2144
    %v2737 = vunpack.c.l.b16 %v2145
    %v2738 = vunpack.c.h.b16 %v2145
    %v2739 = vunpack.c.l.b16 %v2146
    %v2740 = vunpack.c.h.b16 %v2146
    %v2741 = vunpack.c.l.b16 %v2147
    %v2742 = vunpack.c.h.b16 %v2147
    %v2743 = vunpack.c.l.b16 %v2148
    %v2744 = vunpack.c.h.b16 %v2148
    %v2745 = vunpack.c.l.b16 %v2149
    %v2746 = vunpack.c.h.b16 %v2149
    %v2747 = vunpack.c.l.b16 %v2150
    %v2748 = vunpack.c.h.b16 %v2150
    %v2749 = vunpack.c.l.b16 %v2151
    %v2750 = vunpack.c.h.b16 %v2151
    %v2751 = vunpack.c.l.b16 %v2152
    %v2752 = vunpack.c.h.b16 %v2152
    %v2753 = vunpack.c.l.b16 %v2153
    %v2754 = vunpack.c.h.b16 %v2153
    %v2755 = vunpack.c.l.b16 %v2154
    %v2756 = vunpack.c.h.b16 %v2154
    %v2757 = vunpack.c.l.b16 %v2155
    %v2758 = vunpack.c.h.b16 %v2155
    %v2759 = vunpack.c.l.b16 %v2156
    %v2760 = vunpack.c.h.b16 %v2156
    %v2761 = vunpack.c.l.b16 %v2157
    %v2762 = vunpack.c.h.b16 %v2157
    %v2763 = vunpack.c.l.b16 %v2158
    %v2764 = vunpack.c.h.b16 %v2158
    %v2765 = vunpack.c.l.b16 %v2159
    %v2766 = vunpack.c.h.b16 %v2159
    %v2767 = vunpack.c.l.b16 %v2160
    %v2768 = vunpack.c.h.b16 %v2160
    %v2769 = vunpack.c.l.b16 %v2161
    %v2770 = vunpack.c.h.b16 %v2161
    %v2771 = vunpack.c.l.b16 %v2162
    %v2772 = vunpack.c.h.b16 %v2162
    %v2773 = vunpack.c.l.b16 %v2163
    %v2774 = vunpack.c.h.b16 %v2163
    %v2775 = vunpack.c.l.b16 %v2164
    %v2776 = vunpack.c.h.b16 %v2164
    %v2777 = vunpack.c.l.b16 %v2165
    %v2778 = vunpack.c.h.b16 %v2165
    %v2779 = vunpack.c.l.b16 %v2166
    %v2780 = vunpack.c.h.b16 %v2166
    %v2781 = vunpack.c.l.b16 %v2167
    %v2782 = vunpack.c.h.b16 %v2167
    %v2783 = vunpack.c.l.b16 %v2168
    %v2784 = vunpack.c.h.b16 %v2168
    %v2785 = vunpack.c.l.b16 %v2169
    %v2786 = vunpack.c.h.b16 %v2169
    %v2787 = vunpack.c.l.b16 %v2170
    %v2788 = vunpack.c.h.b16 %v2170
    %v2789 = vunpack.c.l.b16 %v2171
    %v2790 = vunpack.c.h.b16 %v2171
    %v2791 = vunpack.c.l.b16 %v2172
    %v2792 = vunpack.c.h.b16 %v2172
    %v2793 = vunpack.c.l.b16 %v2173
    %v2794 = vunpack.c.h.b16 %v2173
    %v2795 = vunpack.c.l.b16 %v2174
    %v2796 = vunpack.c.h.b16 %v2174
    %v2797 = vunpack.c.l.b16 %v2175
    %v2798 = vunpack.c.h.b16 %v2175
    %v2799 = vunpack.c.l.b16 %v2176
    %v2800 = vunpack.c.h.b16 %v2176
    %v2801 = vunpack.c.l.b16 %v2177
    %v2802 = vunpack.c.h.b16 %v2177
    %v2803 = vunpack.c.l.b16 %v2178
    %v2804 = vunpack.c.h.b16 %v2178
    %v2805 = vunpack.c.l.b16 %v2179
    %v2806 = vunpack.c.h.b16 %v2179
    %v2807 = vunpack.c.l.b16 %v2180
    %v2808 = vunpack.c.h.b16 %v2180
    %v2809 = vunpack.c.l.b16 %v2181
    %v2810 = vunpack.c.h.b16 %v2181
    %v2811 = vunpack.c.l.b16 %v2182
    %v2812 = vunpack.c.h.b16 %v2182
    %v2813 = vunpack.c.l.b16 %v2183
    %v2814 = vunpack.c.h.b16 %v2183
    %v2815 = vunpack.c.l.b16 %v2184
    %v2816 = vunpack.c.h.b16 %v2184
    %v2817 = vunpack.c.l.b16 %v2185
    %v2818 = vunpack.c.h.b16 %v2185
    %v2819 = vunpack.c.l.b16 %v2186
    %v2820 = vunpack.c.h.b16 %v2186
    %v2821 = vunpack.c.l.b16 %v2187
    %v2822 = vunpack.c.h.b16 %v2187
    %v2823 = vunpack.c.l.b16 %v2188
    %v2824 = vunpack.c.h.b16 %v2188
    %v2825 = vunpack.c.l.b16 %v2189
    %v2826 = vunpack.c.h.b16 %v2189
    %v2827 = vunpack.c.l.b16 %v2190
    %v2828 = vunpack.c.h.b16 %v2190
    %v2829 = vunpack.c.l.b16 %v2191
    %v2830 = vunpack.c.h.b16 %v2191
    %v2831 = vunpack.c.l.b16 %v2192
    %v2832 = vunpack.c.h.b16 %v2192
    %v2833 = vunpack.c.l.b16 %v2193
    %v2834 = vunpack.c.h.b16 %v2193
    %v2835 = vunpack.c.l.b16 %v2194
    %v2836 = vunpack.c.h.b16 %v2194
    %v2837 = vunpack.c.l.b16 %v2195
    %v2838 = vunpack.c.h.b16 %v2195
    %v2839 = vunpack.c.l.b16 %v2196
    %v2840 = vunpack.c.h.b16 %v2196
    %v2841 = vunpack.c.l.b16 %v2197
    %v2842 = vunpack.c.h.b16 %v2197
    %v2843 = vunpack.c.l.b16 %v2198
    %v2844 = vunpack.c.h.b16 %v2198
    %v2845 = vunpack.c.l.b16 %v2199
    %v2846 = vunpack.c.h.b16 %v2199
    %v2847 = vunpack.c.l.b16 %v2200
    %v2848 = vunpack.c.h.b16 %v2200
    %v2849 = vunpack.c.l.b16 %v2201
    %v2850 = vunpack.c.h.b16 %v2201
    %v2851 = vunpack.c.l.b16 %v2202
    %v2852 = vunpack.c.h.b16 %v2202
    %v2853 = vunpack.c.l.b16 %v2203
    %v2854 = vunpack.c.h.b16 %v2203
    %v2855 = vunpack.c.l.b16 %v2204
    %v2856 = vunpack.c.h.b16 %v2204
    %v2857 = vunpack.c.l.b16 %v2205
    %v2858 = vunpack.c.h.b16 %v2205
    %v2859 = vunpack.c.l.b16 %v2206
    %v2860 = vunpack.c.h.b16 %v2206
    %v2861 = vunpack.c.l.b16 %v2207
    %v2862 = vunpack.c.h.b16 %v2207
    %v2863 = vunpack.c.l.b16 %v2208
    %v2864 = vunpack.c.h.b16 %v2208
    %v2865 = vunpack.c.l.b16 %v2209
    %v2866 = vunpack.c.h.b16 %v2209
    %v2867 = vunpack.c.l.b16 %v2210
    %v2868 = vunpack.c.h.b16 %v2210
    %v2869 = vunpack.c.l.b16 %v2211
    %v2870 = vunpack.c.h.b16 %v2211
    %v2871 = vunpack.c.l.b16 %v2212
    %v2872 = vunpack.c.h.b16 %v2212
    %v2873 = vunpack.c.l.b16 %v2213
    %v2874 = vunpack.c.h.b16 %v2213
    %v2875 = vunpack.c.l.b16 %v2214
    %v2876 = vunpack.c.h.b16 %v2214
    %v2877 = vunpack.c.l.b16 %v2215
    %v2878 = vunpack.c.h.b16 %v2215
    %v2879 = vunpack.c.l.b16 %v2216
    %v2880 = vunpack.c.h.b16 %v2216
    %v2881 = vunpack.c.l.b16 %v2217
    %v2882 = vunpack.c.h.b16 %v2217
    %v2883 = vunpack.c.l.b16 %v2218
    %v2884 = vunpack.c.h.b16 %v2218
    %v2885 = vunpack.c.l.b16 %v2219
    %v2886 = vunpack.c.h.b16 %v2219
    %v2887 = vunpack.c.l.b16 %v2220
    %v2888 = vunpack.c.h.b16 %v2220
    %v2889 = vunpack.c.l.b16 %v2221
    %v2890 = vunpack.c.h.b16 %v2221
    %v2891 = vunpack.c.l.b16 %v2222
    %v2892 = vunpack.c.h.b16 %v2222
    %v2893 = vunpack.c.l.b16 %v2223
    %v2894 = vunpack.c.h.b16 %v2223
    %v2895 = vunpack.c.l.b16 %v2224
    %v2896 = vunpack.c.h.b16 %v2224
    %v2897 = vunpack.c.l.b16 %v2225
    %v2898 = vunpack.c.h.b16 %v2225
    %v2899 = vunpack.c.l.b16 %v2226
    %v2900 = vunpack.c.h.b16 %v2226
    %v2901 = vunpack.c.l.b16 %v2227
    %v2902 = vunpack.c.h.b16 %v2227
    %v2903 = vunpack.c.l.b16 %v2228
    %v2904 = vunpack.c.h.b16 %v2228
    %v2905 = vunpack.c.l.b16 %v2229
    %v2906 = vunpack.c.h.b16 %v2229
    %v2907 = vunpack.c.l.b16 %v2230
    %v2908 = vunpack.c.h.b16 %v2230
    %v2909 = vunpack.c.l.b16 %v2231
    %v2910 = vunpack.c.h.b16 %v2231
    %v2911 = vunpack.c.l.b16 %v2232
    %v2912 = vunpack.c.h.b16 %v2232
    %v2913 = vunpack.c.l.b16 %v2233
    %v2914 = vunpack.c.h.b16 %v2233
    %v2915 = vunpack.c.l.b16 %v2234
    %v2916 = vunpack.c.h.b16 %v2234
    %v2917 = vunpack.c.l.b16 %v2235
    %v2918 = vunpack.c.h.b16 %v2235
    %v2919 = vunpack.c.l.b16 %v2236
    %v2920 = vunpack.c.h.b16 %v2236
    %v2921 = vunpack.c.l.b16 %v2237
    %v2922 = vunpack.c.h.b16 %v2237
    %v2923 = vunpack.c.l.b16 %v2238
    %v2924 = vunpack.c.h.b16 %v2238
    %v2925 = vunpack.c.l.b16 %v2239
    %v2926 = vunpack.c.h.b16 %v2239
    %v2927 = vunpack.c.l.b16 %v2240
    %v2928 = vunpack.c.h.b16 %v2240
    %v2929 = vunpack.c.l.b16 %v2241
    %v2930 = vunpack.c.h.b16 %v2241
    %v2931 = vunpack.c.l.b16 %v2242
    %v2932 = vunpack.c.h.b16 %v2242
    %v2933 = vunpack.c.l.b16 %v2243
    %v2934 = vunpack.c.h.b16 %v2243
    %v2935 = vunpack.c.l.b16 %v2244
    %v2936 = vunpack.c.h.b16 %v2244
    %v2937 = vunpack.c.l.b16 %v2245
    %v2938 = vunpack.c.h.b16 %v2245
    %v2939 = vunpack.c.l.b16 %v2246
    %v2940 = vunpack.c.h.b16 %v2246
    %v2941 = vunpack.c.l.b16 %v2247
    %v2942 = vunpack.c.h.b16 %v2247
    %v2943 = vunpack.c.l.b16 %v2248
    %v2944 = vunpack.c.h.b16 %v2248
    %v2945 = vunpack.c.l.b16 %v2249
    %v2946 = vunpack.c.h.b16 %v2249
    %v2947 = vunpack.c.l.b16 %v2250
    %v2948 = vunpack.c.h.b16 %v2250
    %v2949 = vunpack.c.l.b16 %v2251
    %v2950 = vunpack.c.h.b16 %v2251
    %v2951 = vunpack.c.l.b16 %v2252
    %v2952 = vunpack.c.h.b16 %v2252
    %v2953 = vunpack.c.l.b16 %v2253
    %v2954 = vunpack.c.h.b16 %v2253
    %v2955 = vunpack.c.l.b16 %v2254
    %v2956 = vunpack.c.h.b16 %v2254
    %v2957 = vunpack.c.l.b16 %v2255
    %v2958 = vunpack.c.h.b16 %v2255
    %v2959 = vunpack.c.l.b16 %v2256
    %v2960 = vunpack.c.h.b16 %v2256
    %v2961 = vunpack.c.l.b16 %v2257
    %v2962 = vunpack.c.h.b16 %v2257
    %v2963 = vunpack.c.l.b16 %v2258
    %v2964 = vunpack.c.h.b16 %v2258
    %v2965 = vunpack.c.l.b16 %v2259
    %v2966 = vunpack.c.h.b16 %v2259
    %v2967 = vunpack.c.l.b16 %v2260
    %v2968 = vunpack.c.h.b16 %v2260
    %v2969 = vunpack.c.l.b16 %v2261
    %v2970 = vunpack.c.h.b16 %v2261
    %v2971 = vunpack.c.l.b16 %v2262
    %v2972 = vunpack.c.h.b16 %v2262
    %v2973 = vunpack.c.l.b16 %v2263
    %v2974 = vunpack.c.h.b16 %v2263
    %v2975 = vunpack.c.l.b16 %v2264
    %v2976 = vunpack.c.h.b16 %v2264
    %v2977 = vunpack.c.l.b16 %v2265
    %v2978 = vunpack.c.h.b16 %v2265
    %v2979 = vunpack.c.l.b16 %v2266
    %v2980 = vunpack.c.h.b16 %v2266
    %v2981 = vunpack.c.l.b16 %v2267
    %v2982 = vunpack.c.h.b16 %v2267
    %v2983 = vunpack.c.l.b16 %v2268
    %v2984 = vunpack.c.h.b16 %v2268
    %v2985 = vunpack.c.l.b16 %v2269
    %v2986 = vunpack.c.h.b16 %v2269
    %v2987 = vunpack.c.l.b16 %v2270
    %v2988 = vunpack.c.h.b16 %v2270
    %v2989 = vunpack.c.l.b16 %v2271
    %v2990 = vunpack.c.h.b16 %v2271
    %v2991 = vunpack.c.l.b16 %v2272
    %v2992 = vunpack.c.h.b16 %v2272
    %v2993 = vunpack.c.l.b16 %v2273
    %v2994 = vunpack.c.h.b16 %v2273
    %v2995 = vunpack.c.l.b16 %v2274
    %v2996 = vunpack.c.h.b16 %v2274
    %v2997 = vunpack.c.l.b16 %v2275
    %v2998 = vunpack.c.h.b16 %v2275
    %v2999 = vunpack.c.l.b16 %v2276
    %v3000 = vunpack.c.h.b16 %v2276
    %v3001 = vunpack.c.l.b16 %v2277
    %v3002 = vunpack.c.h.b16 %v2277
    %v3003 = vunpack.c.l.b16 %v2278
    %v3004 = vunpack.c.h.b16 %v2278
    %v3005 = vunpack.c.l.b16 %v2279
    %v3006 = vunpack.c.h.b16 %v2279
    %v3007 = vunpack.c.l.b16 %v2280
    %v3008 = vunpack.c.h.b16 %v2280
    %v3009 = vunpack.c.l.b16 %v2281
    %v3010 = vunpack.c.h.b16 %v2281
    %v3011 = vunpack.c.l.b16 %v2282
    %v3012 = vunpack.c.h.b16 %v2282
    %v3013 = vunpack.c.l.b16 %v2283
    %v3014 = vunpack.c.h.b16 %v2283
    %v3015 = vunpack.c.l.b16 %v2284
    %v3016 = vunpack.c.h.b16 %v2284
    %v3017 = vunpack.c.l.b16 %v2285
    %v3018 = vunpack.c.h.b16 %v2285
    %v3019 = vunpack.c.l.b16 %v2286
    %v3020 = vunpack.c.h.b16 %v2286
    %v3021 = vunpack.c.l.b16 %v2287
    %v3022 = vunpack.c.h.b16 %v2287
    %v3023 = vunpack.c.l.b16 %v2288
    %v3024 = vunpack.c.h.b16 %v2288
    %v3025 = vunpack.c.l.b16 %v2289
    %v3026 = vunpack.c.h.b16 %v2289
    %v3027 = vunpack.c.l.b16 %v2290
    %v3028 = vunpack.c.h.b16 %v2290
    %v3029 = vunpack.c.l.b16 %v2291
    %v3030 = vunpack.c.h.b16 %v2291
    %v3031 = vunpack.c.l.b16 %v2292
    %v3032 = vunpack.c.h.b16 %v2292
    %v3033 = vunpack.c.l.b16 %v2293
    %v3034 = vunpack.c.h.b16 %v2293
    %v3035 = vunpack.c.l.b16 %v2294
    %v3036 = vunpack.c.h.b16 %v2294
    %v3037 = vunpack.c.l.b16 %v2295
    %v3038 = vunpack.c.h.b16 %v2295
    %v3039 = vunpack.c.l.b16 %v2296
    %v3040 = vunpack.c.h.b16 %v2296
    %v3041 = vunpack.c.l.b16 %v2297
    %v3042 = vunpack.c.h.b16 %v2297
    %v3043 = vunpack.c.l.b16 %v2298
    %v3044 = vunpack.c.h.b16 %v2298
    %v3045 = vunpack.c.l.b16 %v2299
    %v3046 = vunpack.c.h.b16 %v2299
    %v3047 = vunpack.c.l.b16 %v2300
    %v3048 = vunpack.c.h.b16 %v2300
    %v3049 = vunpack.c.l.b16 %v2301
    %v3050 = vunpack.c.h.b16 %v2301
    %v3051 = vunpack.c.l.b16 %v2302
    %v3052 = vunpack.c.h.b16 %v2302
    %v3053 = vunpack.c.l.b16 %v2303
    %v3054 = vunpack.c.h.b16 %v2303
    %v3055 = vunpack.c.l.b16 %v2304
    %v3056 = vunpack.c.h.b16 %v2304
    %v3057 = vunpack.c.l.b16 %v2305
    %v3058 = vunpack.c.h.b16 %v2305
    %v3059 = vunpack.c.l.b16 %v2306
    %v3060 = vunpack.c.h.b16 %v2306
    %v3061 = vunpack.c.l.b16 %v2307
    %v3062 = vunpack.c.h.b16 %v2307
    %v3063 = vunpack.c.l.b16 %v2308
    %v3064 = vunpack.c.h.b16 %v2308
    %v3065 = vunpack.c.l.b16 %v2309
    %v3066 = vunpack.c.h.b16 %v2309
    %v3067 = vunpack.c.l.b16 %v2310
    %v3068 = vunpack.c.h.b16 %v2310
    %v3069 = vunpack.c.l.b16 %v2311
    %v3070 = vunpack.c.h.b16 %v2311
    %v3071 = vunpack.c.l.b16 %v2312
    %v3072 = vunpack.c.h.b16 %v2312
    %v3073 = vunpack.c.l.b16 %v2313
    %v3074 = vunpack.c.h.b16 %v2313
    %v3075 = vunpack.c.l.b16 %v2314
    %v3076 = vunpack.c.h.b16 %v2314
    %v3077 = vunpack.c.l.b16 %v2315
    %v3078 = vunpack.c.h.b16 %v2315
    %v3079 = vunpack.c.l.b16 %v2316
    %v3080 = vunpack.c.h.b16 %v2316
    %v3081 = vunpack.c.l.b16 %v2317
    %v3082 = vunpack.c.h.b16 %v2317
    %v3083 = vunpack.c.l.b16 %v2318
    %v3084 = vunpack.c.h.b16 %v2318
    %v3085 = vunpack.c.l.b16 %v2319
    %v3086 = vunpack.c.h.b16 %v2319
    %v3087 = vunpack.c.l.b16 %v2320
    %v3088 = vunpack.c.h.b16 %v2320
    %v3089 = vunpack.c.l.b16 %v2321
    %v3090 = vunpack.c.h.b16 %v2321
    %v3091 = vunpack.c.l.b16 %v2322
    %v3092 = vunpack.c.h.b16 %v2322
    %v3093 = vunpack.c.l.b16 %v2323
    %v3094 = vunpack.c.h.b16 %v2323
    %v3095 = vunpack.c.l.b16 %v2324
    %v3096 = vunpack.c.h.b16 %v2324
    %v3097 = vunpack.c.l.b16 %v2325
    %v3098 = vunpack.c.h.b16 %v2325
    %v3099 = vunpack.c.l.b16 %v2326
    %v3100 = vunpack.c.h.b16 %v2326
    %v3101 = vunpack.c.l.b16 %v2327
    %v3102 = vunpack.c.h.b16 %v2327
    %v3103 = vunpack.c.l.b16 %v2328
    %v3104 = vunpack.c.h.b16 %v2328
    %v3105 = vunpack.c.l.b16 %v2329
    %v3106 = vunpack.c.h.b16 %v2329
    %v3107 = vunpack.c.l.b16 %v2330
    %v3108 = vunpack.c.h.b16 %v2330
    %v3109 = vunpack.c.l.b16 %v2331
    %v3110 = vunpack.c.h.b16 %v2331
    %v3111 = vunpack.c.l.b16 %v2332
    %v3112 = vunpack.c.h.b16 %v2332
    %v3113 = vunpack.c.l.b16 %v2333
    %v3114 = vunpack.c.h.b16 %v2333
    %v3115 = vunpack.c.l.b16 %v2334
    %v3116 = vunpack.c.h.b16 %v2334
    %v3117 = vunpack.c.l.b16 %v2335
    %v3118 = vunpack.c.h.b16 %v2335
    %v3119 = vunpack.c.l.b16 %v2336
    %v3120 = vunpack.c.h.b16 %v2336
    %v3121 = vunpack.c.l.b16 %v2337
    %v3122 = vunpack.c.h.b16 %v2337
    %v3123 = vunpack.c.l.b16 %v2338
    %v3124 = vunpack.c.h.b16 %v2338
    %v3125 = vunpack.c.l.b16 %v2339
    %v3126 = vunpack.c.h.b16 %v2339
    %v3127 = vunpack.c.l.b16 %v2340
    %v3128 = vunpack.c.h.b16 %v2340
    %v3129 = vunpack.c.l.b16 %v2341
    %v3130 = vunpack.c.h.b16 %v2341
    %v3131 = vunpack.c.l.b16 %v2342
    %v3132 = vunpack.c.h.b16 %v2342
    %v3133 = vpack.c.b16 %v2625, %v2621
    %v3134 = vpack.c.b16 %v2626, %v2622
    %v3135 = vpack.c.b16 %v2627, %v2623
    %v3136 = vpack.c.b16 %v2628, %v2624
    %v3137 = vpack.c.b16 %v2633, %v2629
    %v3138 = vpack.c.b16 %v2634, %v2630
    %v3139 = vpack.c.b16 %v2635, %v2631
    %v3140 = vpack.c.b16 %v2636, %v2632
    %v3141 = vpack.c.b16 %v2641, %v2637
    %v3142 = vpack.c.b16 %v2642, %v2638
    %v3143 = vpack.c.b16 %v2643, %v2639
    %v3144 = vpack.c.b16 %v2644, %v2640
    %v3145 = vpack.c.b16 %v2649, %v2645
    %v3146 = vpack.c.b16 %v2650, %v2646
    %v3147 = vpack.c.b16 %v2651, %v2647
    %v3148 = vpack.c.b16 %v2652, %v2648
    %v3149 = vpack.c.b16 %v2657, %v2653
    %v3150 = vpack.c.b16 %v2658, %v2654
    %v3151 = vpack.c.b16 %v2659, %v2655
    %v3152 = vpack.c.b16 %v2660, %v2656
    %v3153 = vpack.c.b16 %v2665, %v2661
    %v3154 = vpack.c.b16 %v2666, %v2662
    %v3155 = vpack.c.b16 %v2667, %v2663
    %v3156 = vpack.c.b16 %v2668, %v2664
    %v3157 = vpack.c.b16 %v2673, %v2669
    %v3158 = vpack.c.b16 %v2674, %v2670
    %v3159 = vpack.c.b16 %v2675, %v2671
    %v3160 = vpack.c.b16 %v2676, %v2672
    %v3161 = vpack.c.b16 %v2681, %v2677
    %v3162 = vpack.c.b16 %v2682, %v2678
    %v3163 = vpack.c.b16 %v2683, %v2679
    %v3164 = vpack.c.b16 %v2684, %v2680
    %v3165 = vpack.c.b16 %v2689, %v2685
    %v3166 = vpack.c.b16 %v2690, %v2686
    %v3167 = vpack.c.b16 %v2691, %v2687
    %v3168 = vpack.c.b16 %v2692, %v2688
    %v3169 = vpack.c.b16 %v2697, %v2693
    %v3170 = vpack.c.b16 %v2698, %v2694
    %v3171 = vpack.c.b16 %v2699, %v2695
    %v3172 = vpack.c.b16 %v2700, %v2696
    %v3173 = vpack.c.b16 %v2705, %v2701
    %v3174 = vpack.c.b16 %v2706, %v2702
    %v3175 = vpack.c.b16 %v2707, %v2703
    %v3176 = vpack.c.b16 %v2708, %v2704
    %v3177 = vpack.c.b16 %v2713, %v2709
    %v3178 = vpack.c.b16 %v2714, %v2710
    %v3179 = vpack.c.b16 %v2715, %v2711
    %v3180 = vpack.c.b16 %v2716, %v2712
    %v3181 = vpack.c.b16 %v2721, %v2717
    %v3182 = vpack.c.b16 %v2722, %v2718
    %v3183 = vpack.c.b16 %v2723, %v2719
    %v3184 = vpack.c.b16 %v2724, %v2720
    %v3185 = vpack.c.b16 %v2729, %v2725
    %v3186 = vpack.c.b16 %v2730, %v2726
    %v3187 = vpack.c.b16 %v2731, %v2727
    %v3188 = vpack.c.b16 %v2732, %v2728
    %v3189 = vpack.c.b16 %v2737, %v2733
    %v3190 = vpack.c.b16 %v2738, %v2734
    %v3191 = vpack.c.b16 %v2739, %v2735
    %v3192 = vpack.c.b16 %v2740, %v2736
    %v3193 = vpack.c.b16 %v2745, %v2741
    %v3194 = vpack.c.b16 %v2746, %v2742
    %v3195 = vpack.c.b16 %v2747, %v2743
    %v3196 = vpack.c.b16 %v2748, %v2744
    %v3197 = vpack.c.b16 %v2753, %v2749
    %v3198 = vpack.c.b16 %v2754, %v2750
    %v3199 = vpack.c.b16 %v2755, %v2751
    %v3200 = vpack.c.b16 %v2756, %v2752
    %v3201 = vpack.c.b16 %v2761, %v2757
    %v3202 = vpack.c.b16 %v2762, %v2758
    %v3203 = vpack.c.b16 %v2763, %v2759
    %v3204 = vpack.c.b16 %v2764, %v2760
    %v3205 = vpack.c.b16 %v2769, %v2765
    %v3206 = vpack.c.b16 %v2770, %v2766
    %v3207 = vpack.c.b16 %v2771, %v2767
    %v3208 = vpack.c.b16 %v2772, %v2768
    %v3209 = vpack.c.b16 %v2777, %v2773
    %v3210 = vpack.c.b16 %v2778, %v2774
    %v3211 = vpack.c.b16 %v2779, %v2775
    %v3212 = vpack.c.b16 %v2780, %v2776
    %v3213 = vpack.c.b16 %v2785, %v2781
    %v3214 = vpack.c.b16 %v2786, %v2782
    %v3215 = vpack.c.b16 %v2787, %v2783
    %v3216 = vpack.c.b16 %v2788, %v2784
    %v3217 = vpack.c.b16 %v2793, %v2789
    %v3218 = vpack.c.b16 %v2794, %v2790
    %v3219 = vpack.c.b16 %v2795, %v2791
    %v3220 = vpack.c.b16 %v2796, %v2792
    %v3221 = vpack.c.b16 %v2801, %v2797
    %v3222 = vpack.c.b16 %v2802, %v2798
    %v3223 = vpack.c.b16 %v2803, %v2799
    %v3224 = vpack.c.b16 %v2804, %v2800
    %v3225 = vpack.c.b16 %v2809, %v2805
    %v3226 = vpack.c.b16 %v2810, %v2806
    %v3227 = vpack.c.b16 %v2811, %v2807
    %v3228 = vpack.c.b16 %v2812, %v2808
    %v3229 = vpack.c.b16 %v2817, %v2813
    %v3230 = vpack.c.b16 %v2818, %v2814
    %v3231 = vpack.c.b16 %v2819, %v2815
    %v3232 = vpack.c.b16 %v2820, %v2816
    %v3233 = vpack.c.b16 %v2825, %v2821
    %v3234 = vpack.c.b16 %v2826, %v2822
    %v3235 = vpack.c.b16 %v2827, %v2823
    %v3236 = vpack.c.b16 %v2828, %v2824
    %v3237 = vpack.c.b16 %v2833, %v2829
    %v3238 = vpack.c.b16 %v2834, %v2830
    %v3239 = vpack.c.b16 %v2835, %v2831
    %v3240 = vpack.c.b16 %v2836, %v2832
    %v3241 = vpack.c.b16 %v2841, %v2837
    %v3242 = vpack.c.b16 %v2842, %v2838
    %v3243 = vpack.c.b16 %v2843, %v2839
    %v3244 = vpack.c.b16 %v2844, %v2840
    %v3245 = vpack.c.b16 %v2849, %v2845
    %v3246 = vpack.c.b16 %v2850, %v2846
    %v3247 = vpack.c.b16 %v2851, %v2847
    %v3248 = vpack.c.b16 %v2852, %v2848
    %v3249 = vpack.c.b16 %v2857, %v2853
    %v3250 = vpack.c.b16 %v2858, %v2854
    %v3251 = vpack.c.b16 %v2859, %v2855
    %v3252 = vpack.c.b16 %v2860, %v2856
    %v3253 = vpack.c.b16 %v2865, %v2861
    %v3254 = vpack.c.b16 %v2866, %v2862
    %v3255 = vpack.c.b16 %v2867, %v2863
    %v3256 = vpack.c.b16 %v2868, %v2864
    %v3257 = vpack.c.b16 %v2873, %v2869
    %v3258 = vpack.c.b16 %v2874, %v2870
    %v3259 = vpack.c.b16 %v2875, %v2871
    %v3260 = vpack.c.b16 %v2876, %v2872
    %v3261 = vpack.c.b16 %v2881, %v2877
    %v3262 = vpack.c.b16 %v2882, %v2878
    %v3263 = vpack.c.b16 %v2883, %v2879
    %v3264 = vpack.c.b16 %v2884, %v2880
    %v3265 = vpack.c.b16 %v2889, %v2885
    %v3266 = vpack.c.b16 %v2890, %v2886
    %v3267 = vpack.c.b16 %v2891, %v2887
    %v3268 = vpack.c.b16 %v2892, %v2888
    %v3269 = vpack.c.b16 %v2897, %v2893
    %v3270 = vpack.c.b16 %v2898, %v2894
    %v3271 = vpack.c.b16 %v2899, %v2895
    %v3272 = vpack.c.b16 %v2900, %v2896
    %v3273 = vpack.c.b16 %v2905, %v2901
    %v3274 = vpack.c.b16 %v2906, %v2902
    %v3275 = vpack.c.b16 %v2907, %v2903
    %v3276 = vpack.c.b16 %v2908, %v2904
    %v3277 = vpack.c.b16 %v2913, %v2909
    %v3278 = vpack.c.b16 %v2914, %v2910
    %v3279 = vpack.c.b16 %v2915, %v2911
    %v3280 = vpack.c.b16 %v2916, %v2912
    %v3281 = vpack.c.b16 %v2921, %v2917
    %v3282 = vpack.c.b16 %v2922, %v2918
    %v3283 = vpack.c.b16 %v2923, %v2919
    %v3284 = vpack.c.b16 %v2924, %v2920
    %v3285 = vpack.c.b16 %v2929, %v2925
    %v3286 = vpack.c.b16 %v2930, %v2926
    %v3287 = vpack.c.b16 %v2931, %v2927
    %v3288 = vpack.c.b16 %v2932, %v2928
    %v3289 = vpack.c.b16 %v2937, %v2933
    %v3290 = vpack.c.b16 %v2938, %v2934
    %v3291 = vpack.c.b16 %v2939, %v2935
    %v3292 = vpack.c.b16 %v2940, %v2936
    %v3293 = vpack.c.b16 %v2945, %v2941
    %v3294 = vpack.c.b16 %v2946, %v2942
    %v3295 = vpack.c.b16 %v2947, %v2943
    %v3296 = vpack.c.b16 %v2948, %v2944
    %v3297 = vpack.c.b16 %v2953, %v2949
    %v3298 = vpack.c.b16 %v2954, %v2950
    %v3299 = vpack.c.b16 %v2955, %v2951
    %v3300 = vpack.c.b16 %v2956, %v2952
    %v3301 = vpack.c.b16 %v2961, %v2957
    %v3302 = vpack.c.b16 %v2962, %v2958
    %v3303 = vpack.c.b16 %v2963, %v2959
    %v3304 = vpack.c.b16 %v2964, %v2960
    %v3305 = vpack.c.b16 %v2969, %v2965
    %v3306 = vpack.c.b16 %v2970, %v2966
    %v3307 = vpack.c.b16 %v2971, %v2967
    %v3308 = vpack.c.b16 %v2972, %v2968
    %v3309 = vpack.c.b16 %v2977, %v2973
    %v3310 = vpack.c.b16 %v2978, %v2974
    %v3311 = vpack.c.b16 %v2979, %v2975
    %v3312 = vpack.c.b16 %v2980, %v2976
    %v3313 = vpack.c.b16 %v2985, %v2981
    %v3314 = vpack.c.b16 %v2986, %v2982
    %v3315 = vpack.c.b16 %v2987, %v2983
    %v3316 = vpack.c.b16 %v2988, %v2984
    %v3317 = vpack.c.b16 %v2993, %v2989
    %v3318 = vpack.c.b16 %v2994, %v2990
    %v3319 = vpack.c.b16 %v2995, %v2991
    %v3320 = vpack.c.b16 %v2996, %v2992
    %v3321 = vpack.c.b16 %v3001, %v2997
    %v3322 = vpack.c.b16 %v3002, %v2998
    %v3323 = vpack.c.b16 %v3003, %v2999
    %v3324 = vpack.c.b16 %v3004, %v3000
    %v3325 = vpack.c.b16 %v3009, %v3005
    %v3326 = vpack.c.b16 %v3010, %v3006
    %v3327 = vpack.c.b16 %v3011, %v3007
    %v3328 = vpack.c.b16 %v3012, %v3008
    %v3329 = vpack.c.b16 %v3017, %v3013
    %v3330 = vpack.c.b16 %v3018, %v3014
    %v3331 = vpack.c.b16 %v3019, %v3015
    %v3332 = vpack.c.b16 %v3020, %v3016
    %v3333 = vpack.c.b16 %v3025, %v3021
    %v3334 = vpack.c.b16 %v3026, %v3022
    %v3335 = vpack.c.b16 %v3027, %v3023
    %v3336 = vpack.c.b16 %v3028, %v3024
    %v3337 = vpack.c.b16 %v3033, %v3029
    %v3338 = vpack.c.b16 %v3034, %v3030
    %v3339 = vpack.c.b16 %v3035, %v3031
    %v3340 = vpack.c.b16 %v3036, %v3032
    %v3341 = vpack.c.b16 %v3041, %v3037
    %v3342 = vpack.c.b16 %v3042, %v3038
    %v3343 = vpack.c.b16 %v3043, %v3039
    %v3344 = vpack.c.b16 %v3044, %v3040
    %v3345 = vpack.c.b16 %v3049, %v3045
    %v3346 = vpack.c.b16 %v3050, %v3046
    %v3347 = vpack.c.b16 %v3051, %v3047
    %v3348 = vpack.c.b16 %v3052, %v3048
    %v3349 = vpack.c.b16 %v3057, %v3053
    %v3350 = vpack.c.b16 %v3058, %v3054
    %v3351 = vpack.c.b16 %v3059, %v3055
    %v3352 = vpack.c.b16 %v3060, %v3056
    %v3353 = vpack.c.b16 %v3065, %v3061
    %v3354 = vpack.c.b16 %v3066, %v3062
    %v3355 = vpack.c.b16 %v3067, %v3063
    %v3356 = vpack.c.b16 %v3068, %v3064
    %v3357 = vpack.c.b16 %v3073, %v3069
    %v3358 = vpack.c.b16 %v3074, %v3070
    %v3359 = vpack.c.b16 %v3075, %v3071
    %v3360 = vpack.c.b16 %v3076, %v3072
    %v3361 = vpack.c.b16 %v3081, %v3077
    %v3362 = vpack.c.b16 %v3082, %v3078
    %v3363 = vpack.c.b16 %v3083, %v3079
    %v3364 = vpack.c.b16 %v3084, %v3080
    %v3365 = vpack.c.b16 %v3089, %v3085
    %v3366 = vpack.c.b16 %v3090, %v3086
    %v3367 = vpack.c.b16 %v3091, %v3087
    %v3368 = vpack.c.b16 %v3092, %v3088
    %v3369 = vpack.c.b16 %v3097, %v3093
    %v3370 = vpack.c.b16 %v3098, %v3094
    %v3371 = vpack.c.b16 %v3099, %v3095
    %v3372 = vpack.c.b16 %v3100, %v3096
    %v3373 = vpack.c.b16 %v3105, %v3101
    %v3374 = vpack.c.b16 %v3106, %v3102
    %v3375 = vpack.c.b16 %v3107, %v3103
    %v3376 = vpack.c.b16 %v3108, %v3104
    %v3377 = vpack.c.b16 %v3113, %v3109
    %v3378 = vpack.c.b16 %v3114, %v3110
    %v3379 = vpack.c.b16 %v3115, %v3111
    %v3380 = vpack.c.b16 %v3116, %v3112
    %v3381 = vpack.c.b16 %v3121, %v3117
    %v3382 = vpack.c.b16 %v3122, %v3118
    %v3383 = vpack.c.b16 %v3123, %v3119
    %v3384 = vpack.c.b16 %v3124, %v3120
    %v3385 = vpack.c.b16 %v3129, %v3125
    %v3386 = vpack.c.b16 %v3130, %v3126
    %v3387 = vpack.c.b16 %v3131, %v3127
    %v3388 = vpack.c.b16 %v3132, %v3128
    %3645 = vmatprep.subr.bf16.mxu0 %v3134
    %3646 = vmatpush1.bf16.msra.mxu0 %v3133
    %3647 = vmatprep.subr.bf16.mxu0 %v3138
    %3648 = vmatpush1.bf16.msra.mxu0 %v3137
    %3649 = vmatprep.subr.bf16.mxu0 %v3142
    %3650 = vmatpush1.bf16.msra.mxu0 %v3141
    %3651 = vmatprep.subr.bf16.mxu0 %v3146
    %3652 = vmatpush1.bf16.msra.mxu0 %v3145
    %3653 = vmatprep.subr.bf16.mxu0 %v3150
    %3654 = vmatpush1.bf16.msra.mxu0 %v3149
    %3655 = vmatprep.subr.bf16.mxu0 %v3154
    %3656 = vmatpush1.bf16.msra.mxu0 %v3153
    %3657 = vmatprep.subr.bf16.mxu0 %v3158
    %3658 = vmatpush1.bf16.msra.mxu0 %v3157
    %3659 = vmatprep.subr.bf16.mxu0 %v3162
    %3660 = vmatpush1.bf16.msra.mxu0 %v3161
    %3661 = vmatprep.subr.bf16.mxu0 %v3166
    %3662 = vmatpush1.bf16.msra.mxu0 %v3165
    %3663 = vmatprep.subr.bf16.mxu0 %v3170
    %3664 = vmatpush1.bf16.msra.mxu0 %v3169
    %3665 = vmatprep.subr.bf16.mxu0 %v3174
    %3666 = vmatpush1.bf16.msra.mxu0 %v3173
    %3667 = vmatprep.subr.bf16.mxu0 %v3178
    %3668 = vmatpush1.bf16.msra.mxu0 %v3177
    %3669 = vmatprep.subr.bf16.mxu0 %v3182
    %3670 = vmatpush1.bf16.msra.mxu0 %v3181
    %3671 = vmatprep.subr.bf16.mxu0 %v3186
    %3672 = vmatpush1.bf16.msra.mxu0 %v3185
    %3673 = vmatprep.subr.bf16.mxu0 %v3190
    %3674 = vmatpush1.bf16.msra.mxu0 %v3189
    %3675 = vmatprep.subr.bf16.mxu0 %v3194
    %3676 = vmatpush1.bf16.msra.mxu0 %v3193
    %3677 = vmatprep.mubr.bf16.mxu0 %v2080
    %3678 = vmatmul.mubr.bf16.gmra.mrb[0].mxu0 %v2079
    %v3679 = vpop.f32.mrb[0].mxu0
    %v3680 = vadd.f32 %v2348, %v3679
    %v3681 = vpop.f32.mrb[0].mxu0
    %v3682 = vadd.f32 %v2352, %v3681
    %v3683 = vpop.f32.mrb[0].mxu0
    %v3684 = vpop.f32.mrb[0].mxu0
    %3685 = vdwg.mxu0
    %3686 = vmatprep.subr.bf16.mxu0 %v3198
    %3687 = vmatpush1.bf16.msra.mxu0 %v3197
    %3688 = vmatprep.subr.bf16.mxu0 %v3202
    %3689 = vmatpush1.bf16.msra.mxu0 %v3201
    %3690 = vmatprep.subr.bf16.mxu0 %v3206
    %3691 = vmatpush1.bf16.msra.mxu0 %v3205
    %3692 = vmatprep.subr.bf16.mxu0 %v3210
    %3693 = vmatpush1.bf16.msra.mxu0 %v3209
    %3694 = vmatprep.subr.bf16.mxu0 %v3214
    %3695 = vmatpush1.bf16.msra.mxu0 %v3213
    %3696 = vmatprep.subr.bf16.mxu0 %v3218
    %3697 = vmatpush1.bf16.msra.mxu0 %v3217
    %3698 = vmatprep.subr.bf16.mxu0 %v3222
    %3699 = vmatpush1.bf16.msra.mxu0 %v3221
    %3700 = vmatprep.subr.bf16.mxu0 %v3226
    %3701 = vmatpush1.bf16.msra.mxu0 %v3225
    %3702 = vmatprep.subr.bf16.mxu0 %v3230
    %3703 = vmatpush1.bf16.msra.mxu0 %v3229
    %3704 = vmatprep.subr.bf16.mxu0 %v3234
    %3705 = vmatpush1.bf16.msra.mxu0 %v3233
    %3706 = vmatprep.subr.bf16.mxu0 %v3238
    %3707 = vmatpush1.bf16.msra.mxu0 %v3237
    %3708 = vmatprep.subr.bf16.mxu0 %v3242
    %3709 = vmatpush1.bf16.msra.mxu0 %v3241
    %3710 = vmatprep.subr.bf16.mxu0 %v3246
    %3711 = vmatpush1.bf16.msra.mxu0 %v3245
    %3712 = vmatprep.subr.bf16.mxu0 %v3250
    %3713 = vmatpush1.bf16.msra.mxu0 %v3249
    %3714 = vmatprep.subr.bf16.mxu0 %v3254
    %3715 = vmatpush1.bf16.msra.mxu0 %v3253
    %3716 = vmatprep.subr.bf16.mxu0 %v3258
    %3717 = vmatpush1.bf16.msra.mxu0 %v3257
    %3718 = vmatprep.mubr.bf16.mxu0 %v2082
    %3719 = vmatmul.mubr.bf16.gmra.mrb[0].mxu0 %v2081
    %v3720 = vpop.f32.mrb[0].mxu0
    %v3721 = vadd.f32 %v3680, %v3720
    %v3722 = vpop.f32.mrb[0].mxu0
    %v3723 = vadd.f32 %v3682, %v3722
    %v3724 = vpop.f32.mrb[0].mxu0
    %v3725 = vpop.f32.mrb[0].mxu0
    %3726 = vdwg.mxu0
    %3727 = vmatprep.subr.bf16.mxu0 %v3262
    %3728 = vmatpush1.bf16.msra.mxu0 %v3261
    %3729 = vmatprep.subr.bf16.mxu0 %v3266
    %3730 = vmatpush1.bf16.msra.mxu0 %v3265
    %3731 = vmatprep.subr.bf16.mxu0 %v3270
    %3732 = vmatpush1.bf16.msra.mxu0 %v3269
    %3733 = vmatprep.subr.bf16.mxu0 %v3274
    %3734 = vmatpush1.bf16.msra.mxu0 %v3273
    %3735 = vmatprep.subr.bf16.mxu0 %v3278
    %3736 = vmatpush1.bf16.msra.mxu0 %v3277
    %3737 = vmatprep.subr.bf16.mxu0 %v3282
    %3738 = vmatpush1.bf16.msra.mxu0 %v3281
    %3739 = vmatprep.subr.bf16.mxu0 %v3286
    %3740 = vmatpush1.bf16.msra.mxu0 %v3285
    %3741 = vmatprep.subr.bf16.mxu0 %v3290
    %3742 = vmatpush1.bf16.msra.mxu0 %v3289
    %3743 = vmatprep.subr.bf16.mxu0 %v3294
    %3744 = vmatpush1.bf16.msra.mxu0 %v3293
    %3745 = vmatprep.subr.bf16.mxu0 %v3298
    %3746 = vmatpush1.bf16.msra.mxu0 %v3297
    %3747 = vmatprep.subr.bf16.mxu0 %v3302
    %3748 = vmatpush1.bf16.msra.mxu0 %v3301
    %3749 = vmatprep.subr.bf16.mxu0 %v3306
    %3750 = vmatpush1.bf16.msra.mxu0 %v3305
    %3751 = vmatprep.subr.bf16.mxu0 %v3310
    %3752 = vmatpush1.bf16.msra.mxu0 %v3309
    %3753 = vmatprep.subr.bf16.mxu0 %v3314
    %3754 = vmatpush1.bf16.msra.mxu0 %v3313
    %3755 = vmatprep.subr.bf16.mxu0 %v3318
    %3756 = vmatpush1.bf16.msra.mxu0 %v3317
    %3757 = vmatprep.subr.bf16.mxu0 %v3322
    %3758 = vmatpush1.bf16.msra.mxu0 %v3321
    %3759 = vmatprep.mubr.bf16.mxu0 %v2084
    %3760 = vmatmul.mubr.bf16.gmra.mrb[0].mxu0 %v2083
    %v3761 = vpop.f32.mrb[0].mxu0
    %v3762 = vadd.f32 %v3721, %v3761
    %v3763 = vpop.f32.mrb[0].mxu0
    %v3764 = vadd.f32 %v3723, %v3763
    %v3765 = vpop.f32.mrb[0].mxu0
    %v3766 = vpop.f32.mrb[0].mxu0
    %3767 = vdwg.mxu0
    %3768 = vmatprep.subr.bf16.mxu0 %v3326
    %3769 = vmatpush1.bf16.msra.mxu0 %v3325
    %3770 = vmatprep.subr.bf16.mxu0 %v3330
    %3771 = vmatpush1.bf16.msra.mxu0 %v3329
    %3772 = vmatprep.subr.bf16.mxu0 %v3334
    %3773 = vmatpush1.bf16.msra.mxu0 %v3333
    %3774 = vmatprep.subr.bf16.mxu0 %v3338
    %3775 = vmatpush1.bf16.msra.mxu0 %v3337
    %3776 = vmatprep.subr.bf16.mxu0 %v3342
    %3777 = vmatpush1.bf16.msra.mxu0 %v3341
    %3778 = vmatprep.subr.bf16.mxu0 %v3346
    %3779 = vmatpush1.bf16.msra.mxu0 %v3345
    %3780 = vmatprep.subr.bf16.mxu0 %v3350
    %3781 = vmatpush1.bf16.msra.mxu0 %v3349
    %3782 = vmatprep.subr.bf16.mxu0 %v3354
    %3783 = vmatpush1.bf16.msra.mxu0 %v3353
    %3784 = vmatprep.subr.bf16.mxu0 %v3358
    %3785 = vmatpush1.bf16.msra.mxu0 %v3357
    %3786 = vmatprep.subr.bf16.mxu0 %v3362
    %3787 = vmatpush1.bf16.msra.mxu0 %v3361
    %3788 = vmatprep.subr.bf16.mxu0 %v3366
    %3789 = vmatpush1.bf16.msra.mxu0 %v3365
    %3790 = vmatprep.subr.bf16.mxu0 %v3370
    %3791 = vmatpush1.bf16.msra.mxu0 %v3369
    %3792 = vmatprep.subr.bf16.mxu0 %v3374
    %3793 = vmatpush1.bf16.msra.mxu0 %v3373
    %3794 = vmatprep.subr.bf16.mxu0 %v3378
    %3795 = vmatpush1.bf16.msra.mxu0 %v3377
    %3796 = vmatprep.subr.bf16.mxu0 %v3382
    %3797 = vmatpush1.bf16.msra.mxu0 %v3381
    %3798 = vmatprep.subr.bf16.mxu0 %v3386
    %3799 = vmatpush1.bf16.msra.mxu0 %v3385
    %3800 = vmatprep.mubr.bf16.mxu0 %v2086
    %3801 = vmatmul.mubr.bf16.gmra.mrb[0].mxu0 %v2085
    %v3802 = vpop.f32.mrb[0].mxu0
    %v3803 = vadd.f32 %v3762, %v3802
    %v3804 = vpop.f32.mrb[0].mxu0
    %v3805 = vadd.f32 %v3764, %v3804
    %v3806 = vpop.f32.mrb[0].mxu0
    %v3807 = vpop.f32.mrb[0].mxu0
    %3808 = vdwg.mxu0
    %3809 = vmatprep.subr.bf16.mxu0 %v3136
    %3810 = vmatpush1.bf16.msra.mxu0 %v3135
    %3811 = vmatprep.subr.bf16.mxu0 %v3140
    %3812 = vmatpush1.bf16.msra.mxu0 %v3139
    %3813 = vmatprep.subr.bf16.mxu0 %v3144
    %3814 = vmatpush1.bf16.msra.mxu0 %v3143
    %3815 = vmatprep.subr.bf16.mxu0 %v3148
    %3816 = vmatpush1.bf16.msra.mxu0 %v3147
    %3817 = vmatprep.subr.bf16.mxu0 %v3152
    %3818 = vmatpush1.bf16.msra.mxu0 %v3151
    %3819 = vmatprep.subr.bf16.mxu0 %v3156
    %3820 = vmatpush1.bf16.msra.mxu0 %v3155
    %3821 = vmatprep.subr.bf16.mxu0 %v3160
    %3822 = vmatpush1.bf16.msra.mxu0 %v3159
    %3823 = vmatprep.subr.bf16.mxu0 %v3164
    %3824 = vmatpush1.bf16.msra.mxu0 %v3163
    %3825 = vmatprep.subr.bf16.mxu0 %v3168
    %3826 = vmatpush1.bf16.msra.mxu0 %v3167
    %3827 = vmatprep.subr.bf16.mxu0 %v3172
    %3828 = vmatpush1.bf16.msra.mxu0 %v3171
    %3829 = vmatprep.subr.bf16.mxu0 %v3176
    %3830 = vmatpush1.bf16.msra.mxu0 %v3175
    %3831 = vmatprep.subr.bf16.mxu0 %v3180
    %3832 = vmatpush1.bf16.msra.mxu0 %v3179
    %3833 = vmatprep.subr.bf16.mxu0 %v3184
    %3834 = vmatpush1.bf16.msra.mxu0 %v3183
    %3835 = vmatprep.subr.bf16.mxu0 %v3188
    %3836 = vmatpush1.bf16.msra.mxu0 %v3187
    %3837 = vmatprep.subr.bf16.mxu0 %v3192
    %3838 = vmatpush1.bf16.msra.mxu0 %v3191
    %3839 = vmatprep.subr.bf16.mxu0 %v3196
    %3840 = vmatpush1.bf16.msra.mxu0 %v3195
    %3841 = vmatprep.mubr.bf16.mxu0 %v2080
    %3842 = vmatmul.mubr.bf16.gmra.mrb[0].mxu0 %v2079
    %v3843 = vpop.f32.mrb[0].mxu0
    %v3844 = vadd.f32 %v2356, %v3843
    %v3845 = vpop.f32.mrb[0].mxu0
    %v3846 = vadd.f32 %v2360, %v3845
    %v3847 = vpop.f32.mrb[0].mxu0
    %v3848 = vpop.f32.mrb[0].mxu0
    %3849 = vdwg.mxu0
    %3850 = vmatprep.subr.bf16.mxu0 %v3200
    %3851 = vmatpush1.bf16.msra.mxu0 %v3199
    %3852 = vmatprep.subr.bf16.mxu0 %v3204
    %3853 = vmatpush1.bf16.msra.mxu0 %v3203
    %3854 = vmatprep.subr.bf16.mxu0 %v3208
    %3855 = vmatpush1.bf16.msra.mxu0 %v3207
    %3856 = vmatprep.subr.bf16.mxu0 %v3212
    %3857 = vmatpush1.bf16.msra.mxu0 %v3211
    %3858 = vmatprep.subr.bf16.mxu0 %v3216
    %3859 = vmatpush1.bf16.msra.mxu0 %v3215
    %3860 = vmatprep.subr.bf16.mxu0 %v3220
    %3861 = vmatpush1.bf16.msra.mxu0 %v3219
    %3862 = vmatprep.subr.bf16.mxu0 %v3224
    %3863 = vmatpush1.bf16.msra.mxu0 %v3223
    %3864 = vmatprep.subr.bf16.mxu0 %v3228
    %3865 = vmatpush1.bf16.msra.mxu0 %v3227
    %3866 = vmatprep.subr.bf16.mxu0 %v3232
    %3867 = vmatpush1.bf16.msra.mxu0 %v3231
    %3868 = vmatprep.subr.bf16.mxu0 %v3236
    %3869 = vmatpush1.bf16.msra.mxu0 %v3235
    %3870 = vmatprep.subr.bf16.mxu0 %v3240
    %3871 = vmatpush1.bf16.msra.mxu0 %v3239
    %3872 = vmatprep.subr.bf16.mxu0 %v3244
    %3873 = vmatpush1.bf16.msra.mxu0 %v3243
    %3874 = vmatprep.subr.bf16.mxu0 %v3248
    %3875 = vmatpush1.bf16.msra.mxu0 %v3247
    %3876 = vmatprep.subr.bf16.mxu0 %v3252
    %3877 = vmatpush1.bf16.msra.mxu0 %v3251
    %3878 = vmatprep.subr.bf16.mxu0 %v3256
    %3879 = vmatpush1.bf16.msra.mxu0 %v3255
    %3880 = vmatprep.subr.bf16.mxu0 %v3260
    %3881 = vmatpush1.bf16.msra.mxu0 %v3259
    %3882 = vmatprep.mubr.bf16.mxu0 %v2082
    %3883 = vmatmul.mubr.bf16.gmra.mrb[0].mxu0 %v2081
    %v3884 = vpop.f32.mrb[0].mxu0
    %v3885 = vadd.f32 %v3844, %v3884
    %v3886 = vpop.f32.mrb[0].mxu0
    %v3887 = vadd.f32 %v3846, %v3886
    %v3888 = vpop.f32.mrb[0].mxu0
    %v3889 = vpop.f32.mrb[0].mxu0
    %3890 = vdwg.mxu0
    %3891 = vmatprep.subr.bf16.mxu0 %v3264
    %3892 = vmatpush1.bf16.msra.mxu0 %v3263
    %3893 = vmatprep.subr.bf16.mxu0 %v3268
    %3894 = vmatpush1.bf16.msra.mxu0 %v3267
    %3895 = vmatprep.subr.bf16.mxu0 %v3272
    %3896 = vmatpush1.bf16.msra.mxu0 %v3271
    %3897 = vmatprep.subr.bf16.mxu0 %v3276
    %3898 = vmatpush1.bf16.msra.mxu0 %v3275
    %3899 = vmatprep.subr.bf16.mxu0 %v3280
    %3900 = vmatpush1.bf16.msra.mxu0 %v3279
    %3901 = vmatprep.subr.bf16.mxu0 %v3284
    %3902 = vmatpush1.bf16.msra.mxu0 %v3283
    %3903 = vmatprep.subr.bf16.mxu0 %v3288
    %3904 = vmatpush1.bf16.msra.mxu0 %v3287
    %3905 = vmatprep.subr.bf16.mxu0 %v3292
    %3906 = vmatpush1.bf16.msra.mxu0 %v3291
    %3907 = vmatprep.subr.bf16.mxu0 %v3296
    %3908 = vmatpush1.bf16.msra.mxu0 %v3295
    %3909 = vmatprep.subr.bf16.mxu0 %v3300
    %3910 = vmatpush1.bf16.msra.mxu0 %v3299
    %3911 = vmatprep.subr.bf16.mxu0 %v3304
    %3912 = vmatpush1.bf16.msra.mxu0 %v3303
    %3913 = vmatprep.subr.bf16.mxu0 %v3308
    %3914 = vmatpush1.bf16.msra.mxu0 %v3307
    %3915 = vmatprep.subr.bf16.mxu0 %v3312
    %3916 = vmatpush1.bf16.msra.mxu0 %v3311
    %3917 = vmatprep.subr.bf16.mxu0 %v3316
    %3918 = vmatpush1.bf16.msra.mxu0 %v3315
    %3919 = vmatprep.subr.bf16.mxu0 %v3320
    %3920 = vmatpush1.bf16.msra.mxu0 %v3319
    %3921 = vmatprep.subr.bf16.mxu0 %v3324
    %3922 = vmatpush1.bf16.msra.mxu0 %v3323
    %3923 = vmatprep.mubr.bf16.mxu0 %v2084
    %3924 = vmatmul.mubr.bf16.gmra.mrb[0].mxu0 %v2083
    %v3925 = vpop.f32.mrb[0].mxu0
    %v3926 = vadd.f32 %v3885, %v3925
    %v3927 = vpop.f32.mrb[0].mxu0
    %v3928 = vadd.f32 %v3887, %v3927
    %v3929 = vpop.f32.mrb[0].mxu0
    %v3930 = vpop.f32.mrb[0].mxu0
    %3931 = vdwg.mxu0
    %3932 = vmatprep.subr.bf16.mxu0 %v3328
    %3933 = vmatpush1.bf16.msra.mxu0 %v3327
    %3934 = vmatprep.subr.bf16.mxu0 %v3332
    %3935 = vmatpush1.bf16.msra.mxu0 %v3331
    %3936 = vmatprep.subr.bf16.mxu0 %v3336
    %3937 = vmatpush1.bf16.msra.mxu0 %v3335
    %3938 = vmatprep.subr.bf16.mxu0 %v3340
    %3939 = vmatpush1.bf16.msra.mxu0 %v3339
    %3940 = vmatprep.subr.bf16.mxu0 %v3344
    %3941 = vmatpush1.bf16.msra.mxu0 %v3343
    %3942 = vmatprep.subr.bf16.mxu0 %v3348
    %3943 = vmatpush1.bf16.msra.mxu0 %v3347
    %3944 = vmatprep.subr.bf16.mxu0 %v3352
    %3945 = vmatpush1.bf16.msra.mxu0 %v3351
    %3946 = vmatprep.subr.bf16.mxu0 %v3356
    %3947 = vmatpush1.bf16.msra.mxu0 %v3355
    %3948 = vmatprep.subr.bf16.mxu0 %v3360
    %3949 = vmatpush1.bf16.msra.mxu0 %v3359
    %3950 = vmatprep.subr.bf16.mxu0 %v3364
    %3951 = vmatpush1.bf16.msra.mxu0 %v3363
    %3952 = vmatprep.subr.bf16.mxu0 %v3368
    %3953 = vmatpush1.bf16.msra.mxu0 %v3367
    %3954 = vmatprep.subr.bf16.mxu0 %v3372
    %3955 = vmatpush1.bf16.msra.mxu0 %v3371
    %3956 = vmatprep.subr.bf16.mxu0 %v3376
    %3957 = vmatpush1.bf16.msra.mxu0 %v3375
    %3958 = vmatprep.subr.bf16.mxu0 %v3380
    %3959 = vmatpush1.bf16.msra.mxu0 %v3379
    %3960 = vmatprep.subr.bf16.mxu0 %v3384
    %3961 = vmatpush1.bf16.msra.mxu0 %v3383
    %3962 = vmatprep.subr.bf16.mxu0 %v3388
    %3963 = vmatpush1.bf16.msra.mxu0 %v3387
    %3964 = vmatprep.mubr.bf16.mxu0 %v2086
    %3965 = vmatmul.mubr.bf16.gmra.mrb[0].mxu0 %v2085
    %v3966 = vpop.f32.mrb[0].mxu0
    %v3967 = vadd.f32 %v3926, %v3966
    %v3968 = vpop.f32.mrb[0].mxu0
    %v3969 = vadd.f32 %v3928, %v3968
    %v3970 = vpop.f32.mrb[0].mxu0
    %v3971 = vpop.f32.mrb[0].mxu0
    %3972 = vdwg.mxu0
    %v3973 = vmax.f32 %v3803, 0.0
    %v3974 = vmax.f32 %v3805, 0.0
    %v3975 = vmax.f32 %v3967, 0.0
    %v3976 = vmax.f32 %v3969, 0.0
    %v3977 = vpack.c.bf16 %v3973, %v3973
    %v3978 = vpack.c.bf16 %v3974, %v3974
    %v3979 = vpack.c.bf16 %v3975, %v3975
    %v3980 = vpack.c.bf16 %v3976, %v3976
    %v3981 = vld [vmem:[%s7] sm:$0xf]
    %v3982 = vld [vmem:[%s7 + $0x4] sm:$0xf]
    %v3983 = vld [vmem:[%s7 + $0x8] sm:$0xf]
    %v3984 = vld [vmem:[%s7 + $0xc] sm:$0xf]
    %v3985 = vld [vmem:[%s7 + $0x10] sm:$0xf]
    %v3986 = vld [vmem:[%s7 + $0x14] sm:$0xf]
    %v3987 = vld [vmem:[%s7 + $0x18] sm:$0xf]
    %v3988 = vld [vmem:[%s7 + $0x1c] sm:$0xf]
    %v3989 = vld [vmem:[%s7 + $0x20] sm:$0xf]
    %v3990 = vld [vmem:[%s7 + $0x24] sm:$0xf]
    %v3991 = vld [vmem:[%s7 + $0x28] sm:$0xf]
    %v3992 = vld [vmem:[%s7 + $0x2c] sm:$0xf]
    %v3993 = vld [vmem:[%s7 + $0x30] sm:$0xf]
    %v3994 = vld [vmem:[%s7 + $0x34] sm:$0xf]
    %v3995 = vld [vmem:[%s7 + $0x38] sm:$0xf]
    %v3996 = vld [vmem:[%s7 + $0x3c] sm:$0xf]
    %v3997 = vld [vmem:[%s7 + $0x40] sm:$0xf]
    %v3998 = vld [vmem:[%s7 + $0x44] sm:$0xf]
    %v3999 = vld [vmem:[%s7 + $0x48] sm:$0xf]
    %v4000 = vld [vmem:[%s7 + $0x4c] sm:$0xf]
    %v4001 = vld [vmem:[%s7 + $0x50] sm:$0xf]
    %v4002 = vld [vmem:[%s7 + $0x54] sm:$0xf]
    %v4003 = vld [vmem:[%s7 + $0x58] sm:$0xf]
    %v4004 = vld [vmem:[%s7 + $0x5c] sm:$0xf]
    %v4005 = vld [vmem:[%s7 + $0x60] sm:$0xf]
    %v4006 = vld [vmem:[%s7 + $0x64] sm:$0xf]
    %v4007 = vld [vmem:[%s7 + $0x68] sm:$0xf]
    %v4008 = vld [vmem:[%s7 + $0x6c] sm:$0xf]
    %v4009 = vld [vmem:[%s7 + $0x70] sm:$0xf]
    %v4010 = vld [vmem:[%s7 + $0x74] sm:$0xf]
    %v4011 = vld [vmem:[%s7 + $0x78] sm:$0xf]
    %v4012 = vld [vmem:[%s7 + $0x7c] sm:$0xf]
    %v4013 = vld [vmem:[%s7 + $0x80] sm:$0xf]
    %v4014 = vld [vmem:[%s7 + $0x84] sm:$0xf]
    %v4015 = vld [vmem:[%s7 + $0x88] sm:$0xf]
    %v4016 = vld [vmem:[%s7 + $0x8c] sm:$0xf]
    %v4017 = vld [vmem:[%s7 + $0x90] sm:$0xf]
    %v4018 = vld [vmem:[%s7 + $0x94] sm:$0xf]
    %v4019 = vld [vmem:[%s7 + $0x98] sm:$0xf]
    %v4020 = vld [vmem:[%s7 + $0x9c] sm:$0xf]
    %v4021 = vld [vmem:[%s7 + $0xa0] sm:$0xf]
    %v4022 = vld [vmem:[%s7 + $0xa4] sm:$0xf]
    %v4023 = vld [vmem:[%s7 + $0xa8] sm:$0xf]
    %v4024 = vld [vmem:[%s7 + $0xac] sm:$0xf]
    %v4025 = vld [vmem:[%s7 + $0xb0] sm:$0xf]
    %v4026 = vld [vmem:[%s7 + $0xb4] sm:$0xf]
    %v4027 = vld [vmem:[%s7 + $0xb8] sm:$0xf]
    %v4028 = vld [vmem:[%s7 + $0xbc] sm:$0xf]
    %v4029 = vld [vmem:[%s7 + $0xc0] sm:$0xf]
    %v4030 = vld [vmem:[%s7 + $0xc4] sm:$0xf]
    %v4031 = vld [vmem:[%s7 + $0xc8] sm:$0xf]
    %v4032 = vld [vmem:[%s7 + $0xcc] sm:$0xf]
    %v4033 = vld [vmem:[%s7 + $0xd0] sm:$0xf]
    %v4034 = vld [vmem:[%s7 + $0xd4] sm:$0xf]
    %v4035 = vld [vmem:[%s7 + $0xd8] sm:$0xf]
    %v4036 = vld [vmem:[%s7 + $0xdc] sm:$0xf]
    %v4037 = vld [vmem:[%s7 + $0xe0] sm:$0xf]
    %v4038 = vld [vmem:[%s7 + $0xe4] sm:$0xf]
    %v4039 = vld [vmem:[%s7 + $0xe8] sm:$0xf]
    %v4040 = vld [vmem:[%s7 + $0xec] sm:$0xf]
    %v4041 = vld [vmem:[%s7 + $0xf0] sm:$0xf]
    %v4042 = vld [vmem:[%s7 + $0xf4] sm:$0xf]
    %v4043 = vld [vmem:[%s7 + $0xf8] sm:$0xf]
    %v4044 = vld [vmem:[%s7 + $0xfc] sm:$0xf]
    %v4045 = vld [vmem:[%s8] sm:$0x1]
    %v4047 = vlaneseq
    %v4048 = vshrl.u32 %v4047, 7
    %v4049 = vsub.s32 0, %v4048
    %v4050 = vrot.slane %v4045, %v4049
    %v4116 = vunpack.c.l.b16 %v3981
    %v4117 = vunpack.c.l.b16 %v3982
    %v4118 = vunpack.c.l.b16 %v3983
    %v4119 = vunpack.c.l.b16 %v3984
    %v4120 = vunpack.c.l.b16 %v3985
    %v4121 = vunpack.c.l.b16 %v3986
    %v4122 = vunpack.c.l.b16 %v3987
    %v4123 = vunpack.c.l.b16 %v3988
    %v4124 = vunpack.c.l.b16 %v3989
    %v4125 = vunpack.c.l.b16 %v3990
    %v4126 = vunpack.c.l.b16 %v3991
    %v4127 = vunpack.c.l.b16 %v3992
    %v4128 = vunpack.c.l.b16 %v3993
    %v4129 = vunpack.c.l.b16 %v3994
    %v4130 = vunpack.c.l.b16 %v3995
    %v4131 = vunpack.c.l.b16 %v3996
    %v4132 = vunpack.c.l.b16 %v3997
    %v4133 = vunpack.c.l.b16 %v3998
    %v4134 = vunpack.c.l.b16 %v3999
    %v4135 = vunpack.c.l.b16 %v4000
    %v4136 = vunpack.c.l.b16 %v4001
    %v4137 = vunpack.c.l.b16 %v4002
    %v4138 = vunpack.c.l.b16 %v4003
    %v4139 = vunpack.c.l.b16 %v4004
    %v4140 = vunpack.c.l.b16 %v4005
    %v4141 = vunpack.c.l.b16 %v4006
    %v4142 = vunpack.c.l.b16 %v4007
    %v4143 = vunpack.c.l.b16 %v4008
    %v4144 = vunpack.c.l.b16 %v4009
    %v4145 = vunpack.c.l.b16 %v4010
    %v4146 = vunpack.c.l.b16 %v4011
    %v4147 = vunpack.c.l.b16 %v4012
    %v4148 = vunpack.c.l.b16 %v4013
    %v4149 = vunpack.c.l.b16 %v4014
    %v4150 = vunpack.c.l.b16 %v4015
    %v4151 = vunpack.c.l.b16 %v4016
    %v4152 = vunpack.c.l.b16 %v4017
    %v4153 = vunpack.c.l.b16 %v4018
    %v4154 = vunpack.c.l.b16 %v4019
    %v4155 = vunpack.c.l.b16 %v4020
    %v4156 = vunpack.c.l.b16 %v4021
    %v4157 = vunpack.c.l.b16 %v4022
    %v4158 = vunpack.c.l.b16 %v4023
    %v4159 = vunpack.c.l.b16 %v4024
    %v4160 = vunpack.c.l.b16 %v4025
    %v4161 = vunpack.c.l.b16 %v4026
    %v4162 = vunpack.c.l.b16 %v4027
    %v4163 = vunpack.c.l.b16 %v4028
    %v4164 = vunpack.c.l.b16 %v4029
    %v4165 = vunpack.c.l.b16 %v4030
    %v4166 = vunpack.c.l.b16 %v4031
    %v4167 = vunpack.c.l.b16 %v4032
    %v4168 = vunpack.c.l.b16 %v4033
    %v4169 = vunpack.c.l.b16 %v4034
    %v4170 = vunpack.c.l.b16 %v4035
    %v4171 = vunpack.c.l.b16 %v4036
    %v4172 = vunpack.c.l.b16 %v4037
    %v4173 = vunpack.c.l.b16 %v4038
    %v4174 = vunpack.c.l.b16 %v4039
    %v4175 = vunpack.c.l.b16 %v4040
    %v4176 = vunpack.c.l.b16 %v4041
    %v4177 = vunpack.c.l.b16 %v4042
    %v4178 = vunpack.c.l.b16 %v4043
    %v4179 = vunpack.c.l.b16 %v4044
    %v4180 = vpack.c.b16 %v4117, %v4116
    %v4181 = vpack.c.b16 %v4119, %v4118
    %v4182 = vpack.c.b16 %v4121, %v4120
    %v4183 = vpack.c.b16 %v4123, %v4122
    %v4184 = vpack.c.b16 %v4125, %v4124
    %v4185 = vpack.c.b16 %v4127, %v4126
    %v4186 = vpack.c.b16 %v4129, %v4128
    %v4187 = vpack.c.b16 %v4131, %v4130
    %v4188 = vpack.c.b16 %v4133, %v4132
    %v4189 = vpack.c.b16 %v4135, %v4134
    %v4190 = vpack.c.b16 %v4137, %v4136
    %v4191 = vpack.c.b16 %v4139, %v4138
    %v4192 = vpack.c.b16 %v4141, %v4140
    %v4193 = vpack.c.b16 %v4143, %v4142
    %v4194 = vpack.c.b16 %v4145, %v4144
    %v4195 = vpack.c.b16 %v4147, %v4146
    %v4196 = vpack.c.b16 %v4149, %v4148
    %v4197 = vpack.c.b16 %v4151, %v4150
    %v4198 = vpack.c.b16 %v4153, %v4152
    %v4199 = vpack.c.b16 %v4155, %v4154
    %v4200 = vpack.c.b16 %v4157, %v4156
    %v4201 = vpack.c.b16 %v4159, %v4158
    %v4202 = vpack.c.b16 %v4161, %v4160
    %v4203 = vpack.c.b16 %v4163, %v4162
    %v4204 = vpack.c.b16 %v4165, %v4164
    %v4205 = vpack.c.b16 %v4167, %v4166
    %v4206 = vpack.c.b16 %v4169, %v4168
    %v4207 = vpack.c.b16 %v4171, %v4170
    %v4208 = vpack.c.b16 %v4173, %v4172
    %v4209 = vpack.c.b16 %v4175, %v4174
    %v4210 = vpack.c.b16 %v4177, %v4176
    %v4211 = vpack.c.b16 %v4179, %v4178
    %4244 = vmatprep.subr.bf16.mxu0 0
    %4245 = vmatpush1.bf16.msra.mxu0 %v4180
    %4246 = vmatprep.subr.bf16.mxu0 0
    %4247 = vmatpush1.bf16.msra.mxu0 %v4181
    %4248 = vmatprep.subr.bf16.mxu0 0
    %4249 = vmatpush1.bf16.msra.mxu0 %v4182
    %4250 = vmatprep.subr.bf16.mxu0 0
    %4251 = vmatpush1.bf16.msra.mxu0 %v4183
    %4252 = vmatprep.subr.bf16.mxu0 0
    %4253 = vmatpush1.bf16.msra.mxu0 %v4184
    %4254 = vmatprep.subr.bf16.mxu0 0
    %4255 = vmatpush1.bf16.msra.mxu0 %v4185
    %4256 = vmatprep.subr.bf16.mxu0 0
    %4257 = vmatpush1.bf16.msra.mxu0 %v4186
    %4258 = vmatprep.subr.bf16.mxu0 0
    %4259 = vmatpush1.bf16.msra.mxu0 %v4187
    %4260 = vmatprep.subr.bf16.mxu0 0
    %4261 = vmatpush1.bf16.msra.mxu0 %v4188
    %4262 = vmatprep.subr.bf16.mxu0 0
    %4263 = vmatpush1.bf16.msra.mxu0 %v4189
    %4264 = vmatprep.subr.bf16.mxu0 0
    %4265 = vmatpush1.bf16.msra.mxu0 %v4190
    %4266 = vmatprep.subr.bf16.mxu0 0
    %4267 = vmatpush1.bf16.msra.mxu0 %v4191
    %4268 = vmatprep.subr.bf16.mxu0 0
    %4269 = vmatpush1.bf16.msra.mxu0 %v4192
    %4270 = vmatprep.subr.bf16.mxu0 0
    %4271 = vmatpush1.bf16.msra.mxu0 %v4193
    %4272 = vmatprep.subr.bf16.mxu0 0
    %4273 = vmatpush1.bf16.msra.mxu0 %v4194
    %4274 = vmatprep.subr.bf16.mxu0 0
    %4275 = vmatpush1.bf16.msra.mxu0 %v4195
    %4276 = vmatprep.mubr.bf16.mxu0 %v3978
    %4277 = vmatmul.mubr.bf16.gmra.mrb[0].mxu0 %v3977
    %v4278 = vpop.f32.mrb[0].mxu0
    %v4279 = vadd.f32 %v4050, %v4278
    %v4280 = vpop.f32.mrb[0].mxu0
    %v4281 = vpop.f32.mrb[0].mxu0
    %v4282 = vpop.f32.mrb[0].mxu0
    %4283 = vdwg.mxu0
    %4284 = vmatprep.subr.bf16.mxu0 0
    %4285 = vmatpush1.bf16.msra.mxu0 %v4196
    %4286 = vmatprep.subr.bf16.mxu0 0
    %4287 = vmatpush1.bf16.msra.mxu0 %v4197
    %4288 = vmatprep.subr.bf16.mxu0 0
    %4289 = vmatpush1.bf16.msra.mxu0 %v4198
    %4290 = vmatprep.subr.bf16.mxu0 0
    %4291 = vmatpush1.bf16.msra.mxu0 %v4199
    %4292 = vmatprep.subr.bf16.mxu0 0
    %4293 = vmatpush1.bf16.msra.mxu0 %v4200
    %4294 = vmatprep.subr.bf16.mxu0 0
    %4295 = vmatpush1.bf16.msra.mxu0 %v4201
    %4296 = vmatprep.subr.bf16.mxu0 0
    %4297 = vmatpush1.bf16.msra.mxu0 %v4202
    %4298 = vmatprep.subr.bf16.mxu0 0
    %4299 = vmatpush1.bf16.msra.mxu0 %v4203
    %4300 = vmatprep.subr.bf16.mxu0 0
    %4301 = vmatpush1.bf16.msra.mxu0 %v4204
    %4302 = vmatprep.subr.bf16.mxu0 0
    %4303 = vmatpush1.bf16.msra.mxu0 %v4205
    %4304 = vmatprep.subr.bf16.mxu0 0
    %4305 = vmatpush1.bf16.msra.mxu0 %v4206
    %4306 = vmatprep.subr.bf16.mxu0 0
    %4307 = vmatpush1.bf16.msra.mxu0 %v4207
    %4308 = vmatprep.subr.bf16.mxu0 0
    %4309 = vmatpush1.bf16.msra.mxu0 %v4208
    %4310 = vmatprep.subr.bf16.mxu0 0
    %4311 = vmatpush1.bf16.msra.mxu0 %v4209
    %4312 = vmatprep.subr.bf16.mxu0 0
    %4313 = vmatpush1.bf16.msra.mxu0 %v4210
    %4314 = vmatprep.subr.bf16.mxu0 0
    %4315 = vmatpush1.bf16.msra.mxu0 %v4211
    %4316 = vmatprep.mubr.bf16.mxu0 %v3980
    %4317 = vmatmul.mubr.bf16.gmra.mrb[0].mxu0 %v3979
    %v4318 = vpop.f32.mrb[0].mxu0
    %v4319 = vadd.f32 %v4279, %v4318
    %v4320 = vpop.f32.mrb[0].mxu0
    %v4321 = vpop.f32.mrb[0].mxu0
    %v4322 = vpop.f32.mrb[0].mxu0
    %4323 = vdwg.mxu0
    %vm4324 = vcmask 1041408
    %v4325 = vsel %vm4324, %v4319, -inf
    %4326 = vmax.xlane.f32.xlu0 %v4325
    %v4327 = vpop.xlane.xlu0 %4326
    %v4328 = vsub.f32 %v4319, %v4327
    %v4329 = vmul.f32 %v4328, 1.442695
    %v4330 = vpow.pop %v4329
    %v4331 = vsel %vm4324, %v4330, 0.0
    %4332 = vadd.xlane.f32.xlu0 %v4331
    %v4333 = vpop.xlane.xlu0 %4332
    %v4334 = vrcp.pop %v4333
    %v4335 = vmul.f32 %v4330, %v4334
    %4336 = vst [vmem:[#allocation7] sm:$0x3] %v4335
    // Predicated region
    $region46: #{tpu_custom_call.1} parent=1 // pred_check
      _
    $region47: #{tpu_custom_call.1} parent=1 // pred_check_branch
      %4338 = sbr.rel (0) target = $region49
    $region48: #{tpu_custom_call.1} parent=1 // pred_region
      %s4340 = ssub.s32 32, 32
      %4341 = vsyncadd [#allocation4], %s4340
      %s4343 = sshll.u32 [#allocation7], 4
      %s4344 = int_to_ptr.vmem [resolvable:$true] %s4343
      %4346 = dma.vmem_to_hbm [thread:$0]  %s4344, 32, %s9, [#allocation4]
    $region49: #{tpu_custom_call.1} parent=1 // pred_fallthru
      _
    // Predicated region
    $region50: #{tpu_custom_call.1} parent=1 // pred_check
      _
    $region51: #{tpu_custom_call.1} parent=1 // pred_check_branch
      %4348 = sbr.rel (0) target = $region53
    $region52: #{tpu_custom_call.1} parent=1 // pred_region
      %4349 = dma.done [#allocation4], 32
    $region53: #{tpu_custom_call.1} parent=1 // pred_fallthru
      _
    %4350 = vsyncpa [#allocation3], 1
    %4351 = vsyncpa [#allocation6], 1
    %4352 = vsyncpa [#allocation4], 1

</llo_original>
